<compile_context>
chip_gen: v5e
topology: v5e:2x2
jax: 0.10.0
libtpu: 0.0.40
codegen_flags: <defaults>
</compile_context>

<pallas_src>
import math
from functools import partial

import jax
import jax.numpy as jnp
from jax.experimental import pallas as pl
from jax.experimental.pallas import tpu as pltpu  # noqa: F401


# ----------------------------- in-kernel helpers -----------------------------

def _layernorm(x, gamma, beta, eps=1e-5):
    mu = jnp.mean(x, axis=-1, keepdims=True)
    var = jnp.mean((x - mu) ** 2, axis=-1, keepdims=True)
    return (x - mu) * jax.lax.rsqrt(var + eps) * gamma + beta


def _softmax_approx(x):
    # softmax over the last axis; reciprocal runs on the EUP slot (essentially free).
    m = jnp.max(x, axis=-1, keepdims=True)
    e = jnp.exp(x - m)
    return e * pl.reciprocal(jnp.sum(e, axis=-1, keepdims=True), approx=True)


# ----------------------------- fused forward kernel --------------------------
# Single invocation (no grid): the whole batch, all encoder layers and the head.

def fused_forward_kernel(x_ref, bias_ref, wqkv_ref, bqkv_ref, wo_ref,
                         w1_ref, b1_ref, w2_ref, vecs_ref,
                         wfc_ref, bfc_ref, wl_ref, bl_ref,
                         o_ref, *, num_layers, num_heads, head_dim):
    x = x_ref[...]                       # (B, S, H)
    bias = bias_ref[...]                 # (B*heads, 1, S) additive key-padding bias
    B, S, H = x.shape
    BH = B * num_heads
    scale = jnp.float32(1.0 / math.sqrt(head_dim))

    for l in range(num_layers):          # static unroll over encoder layers
        # ---- multi-head self-attention, batched over (batch * heads) ----
        # Only leading-dim broadcast / reshape (tiled (S, H) dims untouched).
        xh = jnp.broadcast_to(x[:, None, :, :], (B, num_heads, S, H)).reshape(BH, S, H)
        q = jnp.einsum('nse,ned->nsd', xh, wqkv_ref[3 * l + 0],
                       preferred_element_type=jnp.float32) + bqkv_ref[3 * l + 0]
        k = jnp.einsum('nse,ned->nsd', xh, wqkv_ref[3 * l + 1],
                       preferred_element_type=jnp.float32) + bqkv_ref[3 * l + 1]
        v = jnp.einsum('nse,ned->nsd', xh, wqkv_ref[3 * l + 2],
                       preferred_element_type=jnp.float32) + bqkv_ref[3 * l + 2]
        s = jnp.einsum('nqd,nkd->nqk', q, k,
                       preferred_element_type=jnp.float32) * scale + bias
        p = _softmax_approx(s)
        ctx = jnp.einsum('nqk,nkd->nqd', p, v, preferred_element_type=jnp.float32)
        # per-head output projection then sum over heads  ==  concat(heads) @ Wo
        attn = jnp.einsum('nsd,nde->nse', ctx, wo_ref[l],
                          preferred_element_type=jnp.float32)       # (BH, S, H)
        attn = jnp.sum(attn.reshape(B, num_heads, S, H), axis=1)    # (B, S, H)

        vl = vecs_ref[l]                 # (6, H): [bo, g1, be1, b2, g2, be2]
        h1 = _layernorm(x + attn + vl[0:1], vl[1:2], vl[2:3])

        # ---- feed-forward (weights pre-broadcast over batch -> one batched dot each) ----
        ff = jnp.einsum('bse,bef->bsf', h1, w1_ref[l],
                        preferred_element_type=jnp.float32) + b1_ref[l]
        ff = jnp.maximum(ff, 0.0)
        ff = jnp.einsum('bsf,bfe->bse', ff, w2_ref[l],
                        preferred_element_type=jnp.float32) + vl[3:4]
        x = _layernorm(h1 + ff, vl[4:5], vl[5:6])

    # ---- head: mean over sequence -> fc -> hidden2label -> softmax ----
    pooled = jnp.mean(x, axis=1)         # (B, H); includes padded tokens, matching torch.mean
    code = jnp.dot(pooled, wfc_ref[...], preferred_element_type=jnp.float32) + bfc_ref[...]
    logits = jnp.dot(code, wl_ref[...], preferred_element_type=jnp.float32) + bl_ref[...]
    m = jnp.max(logits, axis=-1, keepdims=True)          # exact softmax for the final output
    e = jnp.exp(logits - m)
    o_ref[...] = e / jnp.sum(e, axis=-1, keepdims=True)  # (B, 128) lane-dense store


# ------------------------------ model wrapper --------------------------------

class PallasTPTransModel:
    def __init__(self, key, *, hidden=32, embedding_size=32, heads=4,
                 layers=2, d_ff=64, n_labels=104):
        self.hidden = hidden
        self.heads = heads
        self.head_dim = hidden // heads
        self.layers = layers
        self.d_ff = d_ff
        self.n_labels = n_labels
        self.padded_labels = ((n_labels + 127) // 128) * 128    # lane-dense output width

        def w(k, shape, scale=0.02):
            return (scale * jax.random.normal(k, shape)).astype(jnp.float32)

        keys = iter(jax.random.split(key, 8 * layers + 4))
        self.layer_params = []
        for _ in range(layers):
            self.layer_params.append(dict(
                wq=w(next(keys), (hidden, hidden)), bq=jnp.zeros((1, hidden), jnp.float32),
                wk=w(next(keys), (hidden, hidden)), bk=jnp.zeros((1, hidden), jnp.float32),
                wv=w(next(keys), (hidden, hidden)), bv=jnp.zeros((1, hidden), jnp.float32),
                wo=w(next(keys), (hidden, hidden)), bo=jnp.zeros((1, hidden), jnp.float32),
                g1=jnp.ones((1, hidden), jnp.float32), be1=jnp.zeros((1, hidden), jnp.float32),
                w1=w(next(keys), (hidden, d_ff)), b1=jnp.zeros((1, d_ff), jnp.float32),
                w2=w(next(keys), (d_ff, hidden)), b2=jnp.zeros((1, hidden), jnp.float32),
                g2=jnp.ones((1, hidden), jnp.float32), be2=jnp.zeros((1, hidden), jnp.float32),
            ))
        self.wfc = w(next(keys), (hidden, embedding_size))
        self.bfc = jnp.zeros((1, embedding_size), jnp.float32)
        wl = w(next(keys), (embedding_size, n_labels))
        # Pad labels to 128 lanes: zero weight columns, -1e9 bias => softmax gives exact 0s there.
        self.wl_pad = jnp.zeros((embedding_size, self.padded_labels),
                                jnp.float32).at[:, :n_labels].set(wl)
        self.bl_pad = jnp.full((1, self.padded_labels), -1e9,
                               jnp.float32).at[:, :n_labels].set(0.0)
        # TODO(synk): W_a / Model.attention() / LeftEmbedding / PathEmbedding are unused in
        # forward() (relation_path = absolute_path = False, content_ is pre-embedded) -> omitted.
        self.content_mask = None

    def prepare_attr(self, content_mask, path_map=None, r_path_idx=None):
        self.content_mask = content_mask

    def _pack(self, B):
        """Pack per-layer weights into a few stacked, per-head, batch-broadcast arrays."""
        H, heads, hd, F = self.hidden, self.heads, self.head_dim, self.d_ff
        BH = B * heads
        wqkv, bqkv, wo_l, w1_l, b1_l, w2_l, vecs_l = [], [], [], [], [], [], []
        for p in self.layer_params:
            for wn, bn in (("wq", "bq"), ("wk", "bk"), ("wv", "bv")):
                wh = p[wn].reshape(H, heads, hd).transpose(1, 0, 2)              # (heads, H, hd)
                wqkv.append(jnp.broadcast_to(wh[None], (B, heads, H, hd)).reshape(BH, H, hd))
                bh = p[bn].reshape(heads, 1, hd)
                bqkv.append(jnp.broadcast_to(bh[None], (B, heads, 1, hd)).reshape(BH, 1, hd))
            woh = p["wo"].reshape(heads, hd, H)       # sum_h ctx_h @ woh[h] == concat(heads) @ Wo
            wo_l.append(jnp.broadcast_to(woh[None], (B, heads, hd, H)).reshape(BH, hd, H))
            w1_l.append(jnp.broadcast_to(p["w1"][None], (B, H, F)))
            b1_l.append(p["b1"])
            w2_l.append(jnp.broadcast_to(p["w2"][None], (B, F, H)))
            vecs_l.append(jnp.stack([p["bo"][0], p["g1"][0], p["be1"][0],
                                     p["b2"][0], p["g2"][0], p["be2"][0]]))
        return (jnp.stack(wqkv),    # (L*3, BH, H, hd)
                jnp.stack(bqkv),    # (L*3, BH, 1, hd)
                jnp.stack(wo_l),    # (L,   BH, hd, H)
                jnp.stack(w1_l),    # (L,   B,  H,  F)
                jnp.stack(b1_l),    # (L,   1,  F)
                jnp.stack(w2_l),    # (L,   B,  F,  H)
                jnp.stack(vecs_l))  # (L,   6,  H)

    def forward(self, content_, paths_=None, r_paths_=None):
        B, S, H = content_.shape
        heads, hd = self.heads, self.head_dim
        BH = B * heads
        # encode_attr: key-padding mask hoisted into a single additive bias (0 valid, -1e9 pad).
        neg = jnp.where(self.content_mask > 0, 0.0, -1e9).astype(jnp.float32)        # (B, S)
        bias = jnp.broadcast_to(neg[:, None, None, :], (B, heads, 1, S)).reshape(BH, 1, S)

        wqkv, bqkv, wo, w1, b1, w2, vecs = self._pack(B)

        out = pl.pallas_call(
            partial(fused_forward_kernel, num_layers=self.layers,
                    num_heads=heads, head_dim=hd),
            out_shape=jax.ShapeDtypeStruct((B, self.padded_labels), jnp.float32),
        )(content_, bias, wqkv, bqkv, wo, w1, b1, w2, vecs,
          self.wfc, self.bfc, self.wl_pad, self.bl_pad)
        return out[:, :self.n_labels]    # padded columns are exact zeros; slice back to 104

    __call__ = forward


# ----------------------------------- main ------------------------------------

if __name__ == "__main__":
    B, S, H, E = 2, 8, 32, 32
    HEADS, LAYERS, FF, N_LABELS = 4, 2, 64, 104

    key = jax.random.PRNGKey(0)
    k_data, k_model = jax.random.split(key)

    content_ = jax.random.normal(k_data, (B, S, H), dtype=jnp.float32)
    lengths = jnp.array([S, 5], dtype=jnp.int32)
    content_mask = (jnp.arange(S)[None, :] < lengths[:, None]).astype(jnp.float32)  # (B, S)

    model = PallasTPTransModel(k_model, hidden=H, embedding_size=E, heads=HEADS,
                               layers=LAYERS, d_ff=FF, n_labels=N_LABELS)
    model.prepare_attr(content_mask)

    out = model(content_, None, None)          # (B, 104), rows sum to 1
    out = jax.block_until_ready(out)

    assert out.shape == (B, N_LABELS)
    assert jnp.allclose(jnp.sum(out, axis=-1), 1.0, atol=1e-4)
    print("KERNEL_OK")
</pallas_src>

<mosaic_0001>
module attributes {stable_mosaic.version = 11 : i64} {
  func.func @fused_forward_kernel(%arg0: memref<2x8x32xf32, #tpu.memory_space<vmem>>, %arg1: memref<8x1x8xf32, #tpu.memory_space<vmem>>, %arg2: memref<6x8x32x8xf32, #tpu.memory_space<vmem>>, %arg3: memref<6x8x1x8xf32, #tpu.memory_space<vmem>>, %arg4: memref<2x8x8x32xf32, #tpu.memory_space<vmem>>, %arg5: memref<2x2x32x64xf32, #tpu.memory_space<vmem>>, %arg6: memref<2x1x64xf32, #tpu.memory_space<vmem>>, %arg7: memref<2x2x64x32xf32, #tpu.memory_space<vmem>>, %arg8: memref<2x6x32xf32, #tpu.memory_space<vmem>>, %arg9: memref<32x32xf32, #tpu.memory_space<vmem>>, %arg10: memref<1x32xf32, #tpu.memory_space<vmem>>, %arg11: memref<32x128xf32, #tpu.memory_space<vmem>>, %arg12: memref<1x128xf32, #tpu.memory_space<vmem>>, %arg13: memref<2x128xf32, #tpu.memory_space<vmem>>) attributes {dimension_semantics = [], scalar_prefetch = 0 : i64, scratch_operands = 0 : i64, tpu.core_type = #tpu.core_type<tc>} {
    %c0 = arith.constant 0 : index
    %c0_0 = arith.constant 0 : index
    %c0_1 = arith.constant 0 : index
    %0 = vector.load %arg0[%c0, %c0_0, %c0_1] : memref<2x8x32xf32, #tpu.memory_space<vmem>>, vector<2x8x32xf32>
    %c0_2 = arith.constant 0 : index
    %c0_3 = arith.constant 0 : index
    %c0_4 = arith.constant 0 : index
    %1 = vector.load %arg1[%c0_2, %c0_3, %c0_4] : memref<8x1x8xf32, #tpu.memory_space<vmem>>, vector<8x1x8xf32>
    %2 = vector.shape_cast %0 : vector<2x8x32xf32> to vector<2x1x8x32xf32>
    %3 = vector.shape_cast %2 : vector<2x1x8x32xf32> to vector<2x1x8x32xf32>
    %4 = vector.broadcast %3 : vector<2x1x8x32xf32> to vector<2x4x8x32xf32>
    %5 = vector.shape_cast %4 : vector<2x4x8x32xf32> to vector<8x8x32xf32>
    %c0_5 = arith.constant 0 : index
    %c0_6 = arith.constant 0 : index
    %c0_7 = arith.constant 0 : index
    %c0_8 = arith.constant 0 : index
    %6 = vector.load %arg2[%c0_5, %c0_6, %c0_7, %c0_8] : memref<6x8x32x8xf32, #tpu.memory_space<vmem>>, vector<1x8x32x8xf32>
    %7 = vector.shape_cast %6 : vector<1x8x32x8xf32> to vector<8x32x8xf32>
    "tpu.trace_start"() <{level = 10 : i32, message = "nse,ned->nsd"}> : () -> ()
    %cst = arith.constant dense<0.000000e+00> : vector<8x8x8xf32>
    %8 = tpu.matmul %5, %7, %cst {dimension_numbers = #tpu.dot_dimension_numbers<[2], [1], [1], [2], [0, 0, 0, 1, 1, 2], [0], [0]>} : vector<8x8x32xf32>, vector<8x32x8xf32>, vector<8x8x8xf32> -> vector<8x8x8xf32>
    "tpu.trace_stop"() : () -> ()
    %c0_9 = arith.constant 0 : index
    %c0_10 = arith.constant 0 : index
    %c0_11 = arith.constant 0 : index
    %c0_12 = arith.constant 0 : index
    %9 = vector.load %arg3[%c0_9, %c0_10, %c0_11, %c0_12] : memref<6x8x1x8xf32, #tpu.memory_space<vmem>>, vector<1x8x1x8xf32>
    %10 = vector.shape_cast %9 : vector<1x8x1x8xf32> to vector<8x1x8xf32>
    %11 = vector.broadcast %10 : vector<8x1x8xf32> to vector<8x8x8xf32>
    %12 = arith.addf %8, %11 : vector<8x8x8xf32>
    %c1 = arith.constant 1 : index
    %c0_13 = arith.constant 0 : index
    %c0_14 = arith.constant 0 : index
    %c0_15 = arith.constant 0 : index
    %13 = vector.load %arg2[%c1, %c0_13, %c0_14, %c0_15] : memref<6x8x32x8xf32, #tpu.memory_space<vmem>>, vector<1x8x32x8xf32>
    %14 = vector.shape_cast %13 : vector<1x8x32x8xf32> to vector<8x32x8xf32>
    "tpu.trace_start"() <{level = 10 : i32, message = "nse,ned->nsd"}> : () -> ()
    %cst_16 = arith.constant dense<0.000000e+00> : vector<8x8x8xf32>
    %15 = tpu.matmul %5, %14, %cst_16 {dimension_numbers = #tpu.dot_dimension_numbers<[2], [1], [1], [2], [0, 0, 0, 1, 1, 2], [0], [0]>} : vector<8x8x32xf32>, vector<8x32x8xf32>, vector<8x8x8xf32> -> vector<8x8x8xf32>
    "tpu.trace_stop"() : () -> ()
    %c1_17 = arith.constant 1 : index
    %c0_18 = arith.constant 0 : index
    %c0_19 = arith.constant 0 : index
    %c0_20 = arith.constant 0 : index
    %16 = vector.load %arg3[%c1_17, %c0_18, %c0_19, %c0_20] : memref<6x8x1x8xf32, #tpu.memory_space<vmem>>, vector<1x8x1x8xf32>
    %17 = vector.shape_cast %16 : vector<1x8x1x8xf32> to vector<8x1x8xf32>
    %18 = vector.broadcast %17 : vector<8x1x8xf32> to vector<8x8x8xf32>
    %19 = arith.addf %15, %18 : vector<8x8x8xf32>
    %c2 = arith.constant 2 : index
    %c0_21 = arith.constant 0 : index
    %c0_22 = arith.constant 0 : index
    %c0_23 = arith.constant 0 : index
    %20 = vector.load %arg2[%c2, %c0_21, %c0_22, %c0_23] : memref<6x8x32x8xf32, #tpu.memory_space<vmem>>, vector<1x8x32x8xf32>
    %21 = vector.shape_cast %20 : vector<1x8x32x8xf32> to vector<8x32x8xf32>
    "tpu.trace_start"() <{level = 10 : i32, message = "nse,ned->nsd"}> : () -> ()
    %cst_24 = arith.constant dense<0.000000e+00> : vector<8x8x8xf32>
    %22 = tpu.matmul %5, %21, %cst_24 {dimension_numbers = #tpu.dot_dimension_numbers<[2], [1], [1], [2], [0, 0, 0, 1, 1, 2], [0], [0]>} : vector<8x8x32xf32>, vector<8x32x8xf32>, vector<8x8x8xf32> -> vector<8x8x8xf32>
    "tpu.trace_stop"() : () -> ()
    %c2_25 = arith.constant 2 : index
    %c0_26 = arith.constant 0 : index
    %c0_27 = arith.constant 0 : index
    %c0_28 = arith.constant 0 : index
    %23 = vector.load %arg3[%c2_25, %c0_26, %c0_27, %c0_28] : memref<6x8x1x8xf32, #tpu.memory_space<vmem>>, vector<1x8x1x8xf32>
    %24 = vector.shape_cast %23 : vector<1x8x1x8xf32> to vector<8x1x8xf32>
    %25 = vector.broadcast %24 : vector<8x1x8xf32> to vector<8x8x8xf32>
    %26 = arith.addf %22, %25 : vector<8x8x8xf32>
    "tpu.trace_start"() <{level = 10 : i32, message = "nqd,nkd->nqk"}> : () -> ()
    %cst_29 = arith.constant dense<0.000000e+00> : vector<8x8x8xf32>
    %27 = tpu.matmul %12, %19, %cst_29 {dimension_numbers = #tpu.dot_dimension_numbers<[2], [2], [1], [1], [0, 0, 0, 1, 1, 1], [0], [0]>} : vector<8x8x8xf32>, vector<8x8x8xf32>, vector<8x8x8xf32> -> vector<8x8x8xf32>
    "tpu.trace_stop"() : () -> ()
    %cst_30 = arith.constant 0.353553385 : f32
    %28 = vector.broadcast %cst_30 : f32 to vector<8x8x8xf32>
    %29 = arith.mulf %27, %28 : vector<8x8x8xf32>
    %30 = vector.broadcast %1 : vector<8x1x8xf32> to vector<8x8x8xf32>
    %31 = arith.addf %29, %30 : vector<8x8x8xf32>
    %cst_31 = arith.constant dense<0xFF800000> : vector<8x8xf32>
    %32 = vector.multi_reduction <maximumf>, %31, %cst_31 [2] : vector<8x8x8xf32> to vector<8x8xf32>
    %33 = vector.shape_cast %32 : vector<8x8xf32> to vector<8x8x1xf32>
    %34 = vector.broadcast %33 : vector<8x8x1xf32> to vector<8x8x8xf32>
    %35 = arith.subf %31, %34 : vector<8x8x8xf32>
    %36 = math.exp %35 : vector<8x8x8xf32>
    %cst_32 = arith.constant dense<0.000000e+00> : vector<8x8xf32>
    %37 = vector.multi_reduction <add>, %36, %cst_32 [2] : vector<8x8x8xf32> to vector<8x8xf32>
    %38 = vector.shape_cast %37 : vector<8x8xf32> to vector<8x8x1xf32>
    %39 = tpu.reciprocal %38 {approx = true} : vector<8x8x1xf32> -> vector<8x8x1xf32>
    %40 = vector.broadcast %39 : vector<8x8x1xf32> to vector<8x8x8xf32>
    %41 = arith.mulf %36, %40 : vector<8x8x8xf32>
    "tpu.trace_start"() <{level = 10 : i32, message = "nqk,nkd->nqd"}> : () -> ()
    %cst_33 = arith.constant dense<0.000000e+00> : vector<8x8x8xf32>
    %42 = tpu.matmul %41, %26, %cst_33 {dimension_numbers = #tpu.dot_dimension_numbers<[2], [1], [1], [2], [0, 0, 0, 1, 1, 2], [0], [0]>} : vector<8x8x8xf32>, vector<8x8x8xf32>, vector<8x8x8xf32> -> vector<8x8x8xf32>
    "tpu.trace_stop"() : () -> ()
    %c0_34 = arith.constant 0 : index
    %c0_35 = arith.constant 0 : index
    %c0_36 = arith.constant 0 : index
    %c0_37 = arith.constant 0 : index
    %43 = vector.load %arg4[%c0_34, %c0_35, %c0_36, %c0_37] : memref<2x8x8x32xf32, #tpu.memory_space<vmem>>, vector<1x8x8x32xf32>
    %44 = vector.shape_cast %43 : vector<1x8x8x32xf32> to vector<8x8x32xf32>
    "tpu.trace_start"() <{level = 10 : i32, message = "nsd,nde->nse"}> : () -> ()
    %cst_38 = arith.constant dense<0.000000e+00> : vector<8x8x32xf32>
    %45 = tpu.matmul %42, %44, %cst_38 {dimension_numbers = #tpu.dot_dimension_numbers<[2], [1], [1], [2], [0, 0, 0, 1, 1, 2], [0], [0]>} : vector<8x8x8xf32>, vector<8x8x32xf32>, vector<8x8x32xf32> -> vector<8x8x32xf32>
    "tpu.trace_stop"() : () -> ()
    %46 = vector.shape_cast %45 : vector<8x8x32xf32> to vector<2x4x8x32xf32>
    %cst_39 = arith.constant dense<0.000000e+00> : vector<2x8x32xf32>
    %47 = vector.multi_reduction <add>, %46, %cst_39 [1] : vector<2x4x8x32xf32> to vector<2x8x32xf32>
    %c0_40 = arith.constant 0 : index
    %c0_41 = arith.constant 0 : index
    %c0_42 = arith.constant 0 : index
    %48 = vector.load %arg8[%c0_40, %c0_41, %c0_42] : memref<2x6x32xf32, #tpu.memory_space<vmem>>, vector<1x6x32xf32>
    %49 = vector.shape_cast %48 : vector<1x6x32xf32> to vector<6x32xf32>
    %50 = arith.addf %0, %47 : vector<2x8x32xf32>
    %51 = vector.extract_strided_slice %49 {offsets = [0, 0], sizes = [1, 32], strides = [1, 1]} : vector<6x32xf32> to vector<1x32xf32>
    %52 = vector.shape_cast %51 : vector<1x32xf32> to vector<1x1x32xf32>
    %53 = vector.broadcast %52 : vector<1x1x32xf32> to vector<2x8x32xf32>
    %54 = arith.addf %50, %53 : vector<2x8x32xf32>
    %55 = vector.extract_strided_slice %49 {offsets = [1, 0], sizes = [1, 32], strides = [1, 1]} : vector<6x32xf32> to vector<1x32xf32>
    %56 = vector.extract_strided_slice %49 {offsets = [2, 0], sizes = [1, 32], strides = [1, 1]} : vector<6x32xf32> to vector<1x32xf32>
    %cst_43 = arith.constant dense<0.000000e+00> : vector<2x8xf32>
    %57 = vector.multi_reduction <add>, %54, %cst_43 [2] : vector<2x8x32xf32> to vector<2x8xf32>
    %58 = vector.shape_cast %57 : vector<2x8xf32> to vector<2x8x1xf32>
    %cst_44 = arith.constant 3.200000e+01 : f32
    %59 = vector.broadcast %cst_44 : f32 to vector<2x8x1xf32>
    %60 = arith.divf %58, %59 : vector<2x8x1xf32>
    %61 = vector.broadcast %60 : vector<2x8x1xf32> to vector<2x8x32xf32>
    %62 = arith.subf %54, %61 : vector<2x8x32xf32>
    %63 = arith.mulf %62, %62 : vector<2x8x32xf32>
    %cst_45 = arith.constant dense<0.000000e+00> : vector<2x8xf32>
    %64 = vector.multi_reduction <add>, %63, %cst_45 [2] : vector<2x8x32xf32> to vector<2x8xf32>
    %65 = vector.shape_cast %64 : vector<2x8xf32> to vector<2x8x1xf32>
    %cst_46 = arith.constant 3.200000e+01 : f32
    %66 = vector.broadcast %cst_46 : f32 to vector<2x8x1xf32>
    %67 = arith.divf %65, %66 : vector<2x8x1xf32>
    %68 = vector.broadcast %60 : vector<2x8x1xf32> to vector<2x8x32xf32>
    %69 = arith.subf %54, %68 : vector<2x8x32xf32>
    %cst_47 = arith.constant 9.99999974E-6 : f32
    %70 = vector.broadcast %cst_47 : f32 to vector<2x8x1xf32>
    %71 = arith.addf %67, %70 : vector<2x8x1xf32>
    %72 = math.rsqrt %71 : vector<2x8x1xf32>
    %73 = vector.broadcast %72 : vector<2x8x1xf32> to vector<2x8x32xf32>
    %74 = arith.mulf %69, %73 : vector<2x8x32xf32>
    %75 = vector.shape_cast %55 : vector<1x32xf32> to vector<1x1x32xf32>
    %76 = vector.broadcast %75 : vector<1x1x32xf32> to vector<2x8x32xf32>
    %77 = arith.mulf %74, %76 : vector<2x8x32xf32>
    %78 = vector.shape_cast %56 : vector<1x32xf32> to vector<1x1x32xf32>
    %79 = vector.broadcast %78 : vector<1x1x32xf32> to vector<2x8x32xf32>
    %80 = arith.addf %77, %79 : vector<2x8x32xf32>
    %c0_48 = arith.constant 0 : index
    %c0_49 = arith.constant 0 : index
    %c0_50 = arith.constant 0 : index
    %c0_51 = arith.constant 0 : index
    %81 = vector.load %arg5[%c0_48, %c0_49, %c0_50, %c0_51] : memref<2x2x32x64xf32, #tpu.memory_space<vmem>>, vector<1x2x32x64xf32>
    %82 = vector.shape_cast %81 : vector<1x2x32x64xf32> to vector<2x32x64xf32>
    "tpu.trace_start"() <{level = 10 : i32, message = "bse,bef->bsf"}> : () -> ()
    %cst_52 = arith.constant dense<0.000000e+00> : vector<2x8x64xf32>
    %83 = tpu.matmul %80, %82, %cst_52 {dimension_numbers = #tpu.dot_dimension_numbers<[2], [1], [1], [2], [0, 0, 0, 1, 1, 2], [0], [0]>} : vector<2x8x32xf32>, vector<2x32x64xf32>, vector<2x8x64xf32> -> vector<2x8x64xf32>
    "tpu.trace_stop"() : () -> ()
    %c0_53 = arith.constant 0 : index
    %c0_54 = arith.constant 0 : index
    %c0_55 = arith.constant 0 : index
    %84 = vector.load %arg6[%c0_53, %c0_54, %c0_55] : memref<2x1x64xf32, #tpu.memory_space<vmem>>, vector<1x1x64xf32>
    %85 = vector.shape_cast %84 : vector<1x1x64xf32> to vector<1x64xf32>
    %86 = vector.shape_cast %85 : vector<1x64xf32> to vector<1x1x64xf32>
    %87 = vector.broadcast %86 : vector<1x1x64xf32> to vector<2x8x64xf32>
    %88 = arith.addf %83, %87 : vector<2x8x64xf32>
    %cst_56 = arith.constant 0.000000e+00 : f32
    %89 = vector.broadcast %cst_56 : f32 to vector<2x8x64xf32>
    %90 = arith.maximumf %88, %89 : vector<2x8x64xf32>
    %c0_57 = arith.constant 0 : index
    %c0_58 = arith.constant 0 : index
    %c0_59 = arith.constant 0 : index
    %c0_60 = arith.constant 0 : index
    %91 = vector.load %arg7[%c0_57, %c0_58, %c0_59, %c0_60] : memref<2x2x64x32xf32, #tpu.memory_space<vmem>>, vector<1x2x64x32xf32>
    %92 = vector.shape_cast %91 : vector<1x2x64x32xf32> to vector<2x64x32xf32>
    "tpu.trace_start"() <{level = 10 : i32, message = "bsf,bfe->bse"}> : () -> ()
    %cst_61 = arith.constant dense<0.000000e+00> : vector<2x8x32xf32>
    %93 = tpu.matmul %90, %92, %cst_61 {dimension_numbers = #tpu.dot_dimension_numbers<[2], [1], [1], [2], [0, 0, 0, 1, 1, 2], [0], [0]>} : vector<2x8x64xf32>, vector<2x64x32xf32>, vector<2x8x32xf32> -> vector<2x8x32xf32>
    "tpu.trace_stop"() : () -> ()
    %94 = vector.extract_strided_slice %49 {offsets = [3, 0], sizes = [1, 32], strides = [1, 1]} : vector<6x32xf32> to vector<1x32xf32>
    %95 = vector.shape_cast %94 : vector<1x32xf32> to vector<1x1x32xf32>
    %96 = vector.broadcast %95 : vector<1x1x32xf32> to vector<2x8x32xf32>
    %97 = arith.addf %93, %96 : vector<2x8x32xf32>
    %98 = arith.addf %80, %97 : vector<2x8x32xf32>
    %99 = vector.extract_strided_slice %49 {offsets = [4, 0], sizes = [1, 32], strides = [1, 1]} : vector<6x32xf32> to vector<1x32xf32>
    %100 = vector.extract_strided_slice %49 {offsets = [5, 0], sizes = [1, 32], strides = [1, 1]} : vector<6x32xf32> to vector<1x32xf32>
    %cst_62 = arith.constant dense<0.000000e+00> : vector<2x8xf32>
    %101 = vector.multi_reduction <add>, %98, %cst_62 [2] : vector<2x8x32xf32> to vector<2x8xf32>
    %102 = vector.shape_cast %101 : vector<2x8xf32> to vector<2x8x1xf32>
    %cst_63 = arith.constant 3.200000e+01 : f32
    %103 = vector.broadcast %cst_63 : f32 to vector<2x8x1xf32>
    %104 = arith.divf %102, %103 : vector<2x8x1xf32>
    %105 = vector.broadcast %104 : vector<2x8x1xf32> to vector<2x8x32xf32>
    %106 = arith.subf %98, %105 : vector<2x8x32xf32>
    %107 = arith.mulf %106, %106 : vector<2x8x32xf32>
    %cst_64 = arith.constant dense<0.000000e+00> : vector<2x8xf32>
    %108 = vector.multi_reduction <add>, %107, %cst_64 [2] : vector<2x8x32xf32> to vector<2x8xf32>
    %109 = vector.shape_cast %108 : vector<2x8xf32> to vector<2x8x1xf32>
    %cst_65 = arith.constant 3.200000e+01 : f32
    %110 = vector.broadcast %cst_65 : f32 to vector<2x8x1xf32>
    %111 = arith.divf %109, %110 : vector<2x8x1xf32>
    %112 = vector.broadcast %104 : vector<2x8x1xf32> to vector<2x8x32xf32>
    %113 = arith.subf %98, %112 : vector<2x8x32xf32>
    %cst_66 = arith.constant 9.99999974E-6 : f32
    %114 = vector.broadcast %cst_66 : f32 to vector<2x8x1xf32>
    %115 = arith.addf %111, %114 : vector<2x8x1xf32>
    %116 = math.rsqrt %115 : vector<2x8x1xf32>
    %117 = vector.broadcast %116 : vector<2x8x1xf32> to vector<2x8x32xf32>
    %118 = arith.mulf %113, %117 : vector<2x8x32xf32>
    %119 = vector.shape_cast %99 : vector<1x32xf32> to vector<1x1x32xf32>
    %120 = vector.broadcast %119 : vector<1x1x32xf32> to vector<2x8x32xf32>
    %121 = arith.mulf %118, %120 : vector<2x8x32xf32>
    %122 = vector.shape_cast %100 : vector<1x32xf32> to vector<1x1x32xf32>
    %123 = vector.broadcast %122 : vector<1x1x32xf32> to vector<2x8x32xf32>
    %124 = arith.addf %121, %123 : vector<2x8x32xf32>
    %125 = vector.shape_cast %124 : vector<2x8x32xf32> to vector<2x1x8x32xf32>
    %126 = vector.shape_cast %125 : vector<2x1x8x32xf32> to vector<2x1x8x32xf32>
    %127 = vector.broadcast %126 : vector<2x1x8x32xf32> to vector<2x4x8x32xf32>
    %128 = vector.shape_cast %127 : vector<2x4x8x32xf32> to vector<8x8x32xf32>
    %c3 = arith.constant 3 : index
    %c0_67 = arith.constant 0 : index
    %c0_68 = arith.constant 0 : index
    %c0_69 = arith.constant 0 : index
    %129 = vector.load %arg2[%c3, %c0_67, %c0_68, %c0_69] : memref<6x8x32x8xf32, #tpu.memory_space<vmem>>, vector<1x8x32x8xf32>
    %130 = vector.shape_cast %129 : vector<1x8x32x8xf32> to vector<8x32x8xf32>
    "tpu.trace_start"() <{level = 10 : i32, message = "nse,ned->nsd"}> : () -> ()
    %cst_70 = arith.constant dense<0.000000e+00> : vector<8x8x8xf32>
    %131 = tpu.matmul %128, %130, %cst_70 {dimension_numbers = #tpu.dot_dimension_numbers<[2], [1], [1], [2], [0, 0, 0, 1, 1, 2], [0], [0]>} : vector<8x8x32xf32>, vector<8x32x8xf32>, vector<8x8x8xf32> -> vector<8x8x8xf32>
    "tpu.trace_stop"() : () -> ()
    %c3_71 = arith.constant 3 : index
    %c0_72 = arith.constant 0 : index
    %c0_73 = arith.constant 0 : index
    %c0_74 = arith.constant 0 : index
    %132 = vector.load %arg3[%c3_71, %c0_72, %c0_73, %c0_74] : memref<6x8x1x8xf32, #tpu.memory_space<vmem>>, vector<1x8x1x8xf32>
    %133 = vector.shape_cast %132 : vector<1x8x1x8xf32> to vector<8x1x8xf32>
    %134 = vector.broadcast %133 : vector<8x1x8xf32> to vector<8x8x8xf32>
    %135 = arith.addf %131, %134 : vector<8x8x8xf32>
    %c4 = arith.constant 4 : index
    %c0_75 = arith.constant 0 : index
    %c0_76 = arith.constant 0 : index
    %c0_77 = arith.constant 0 : index
    %136 = vector.load %arg2[%c4, %c0_75, %c0_76, %c0_77] : memref<6x8x32x8xf32, #tpu.memory_space<vmem>>, vector<1x8x32x8xf32>
    %137 = vector.shape_cast %136 : vector<1x8x32x8xf32> to vector<8x32x8xf32>
    "tpu.trace_start"() <{level = 10 : i32, message = "nse,ned->nsd"}> : () -> ()
    %cst_78 = arith.constant dense<0.000000e+00> : vector<8x8x8xf32>
    %138 = tpu.matmul %128, %137, %cst_78 {dimension_numbers = #tpu.dot_dimension_numbers<[2], [1], [1], [2], [0, 0, 0, 1, 1, 2], [0], [0]>} : vector<8x8x32xf32>, vector<8x32x8xf32>, vector<8x8x8xf32> -> vector<8x8x8xf32>
    "tpu.trace_stop"() : () -> ()
    %c4_79 = arith.constant 4 : index
    %c0_80 = arith.constant 0 : index
    %c0_81 = arith.constant 0 : index
    %c0_82 = arith.constant 0 : index
    %139 = vector.load %arg3[%c4_79, %c0_80, %c0_81, %c0_82] : memref<6x8x1x8xf32, #tpu.memory_space<vmem>>, vector<1x8x1x8xf32>
    %140 = vector.shape_cast %139 : vector<1x8x1x8xf32> to vector<8x1x8xf32>
    %141 = vector.broadcast %140 : vector<8x1x8xf32> to vector<8x8x8xf32>
    %142 = arith.addf %138, %141 : vector<8x8x8xf32>
    %c5 = arith.constant 5 : index
    %c0_83 = arith.constant 0 : index
    %c0_84 = arith.constant 0 : index
    %c0_85 = arith.constant 0 : index
    %143 = vector.load %arg2[%c5, %c0_83, %c0_84, %c0_85] : memref<6x8x32x8xf32, #tpu.memory_space<vmem>>, vector<1x8x32x8xf32>
    %144 = vector.shape_cast %143 : vector<1x8x32x8xf32> to vector<8x32x8xf32>
    "tpu.trace_start"() <{level = 10 : i32, message = "nse,ned->nsd"}> : () -> ()
    %cst_86 = arith.constant dense<0.000000e+00> : vector<8x8x8xf32>
    %145 = tpu.matmul %128, %144, %cst_86 {dimension_numbers = #tpu.dot_dimension_numbers<[2], [1], [1], [2], [0, 0, 0, 1, 1, 2], [0], [0]>} : vector<8x8x32xf32>, vector<8x32x8xf32>, vector<8x8x8xf32> -> vector<8x8x8xf32>
    "tpu.trace_stop"() : () -> ()
    %c5_87 = arith.constant 5 : index
    %c0_88 = arith.constant 0 : index
    %c0_89 = arith.constant 0 : index
    %c0_90 = arith.constant 0 : index
    %146 = vector.load %arg3[%c5_87, %c0_88, %c0_89, %c0_90] : memref<6x8x1x8xf32, #tpu.memory_space<vmem>>, vector<1x8x1x8xf32>
    %147 = vector.shape_cast %146 : vector<1x8x1x8xf32> to vector<8x1x8xf32>
    %148 = vector.broadcast %147 : vector<8x1x8xf32> to vector<8x8x8xf32>
    %149 = arith.addf %145, %148 : vector<8x8x8xf32>
    "tpu.trace_start"() <{level = 10 : i32, message = "nqd,nkd->nqk"}> : () -> ()
    %cst_91 = arith.constant dense<0.000000e+00> : vector<8x8x8xf32>
    %150 = tpu.matmul %135, %142, %cst_91 {dimension_numbers = #tpu.dot_dimension_numbers<[2], [2], [1], [1], [0, 0, 0, 1, 1, 1], [0], [0]>} : vector<8x8x8xf32>, vector<8x8x8xf32>, vector<8x8x8xf32> -> vector<8x8x8xf32>
    "tpu.trace_stop"() : () -> ()
    %cst_92 = arith.constant 0.353553385 : f32
    %151 = vector.broadcast %cst_92 : f32 to vector<8x8x8xf32>
    %152 = arith.mulf %150, %151 : vector<8x8x8xf32>
    %153 = vector.broadcast %1 : vector<8x1x8xf32> to vector<8x8x8xf32>
    %154 = arith.addf %152, %153 : vector<8x8x8xf32>
    %cst_93 = arith.constant dense<0xFF800000> : vector<8x8xf32>
    %155 = vector.multi_reduction <maximumf>, %154, %cst_93 [2] : vector<8x8x8xf32> to vector<8x8xf32>
    %156 = vector.shape_cast %155 : vector<8x8xf32> to vector<8x8x1xf32>
    %157 = vector.broadcast %156 : vector<8x8x1xf32> to vector<8x8x8xf32>
    %158 = arith.subf %154, %157 : vector<8x8x8xf32>
    %159 = math.exp %158 : vector<8x8x8xf32>
    %cst_94 = arith.constant dense<0.000000e+00> : vector<8x8xf32>
    %160 = vector.multi_reduction <add>, %159, %cst_94 [2] : vector<8x8x8xf32> to vector<8x8xf32>
    %161 = vector.shape_cast %160 : vector<8x8xf32> to vector<8x8x1xf32>
    %162 = tpu.reciprocal %161 {approx = true} : vector<8x8x1xf32> -> vector<8x8x1xf32>
    %163 = vector.broadcast %162 : vector<8x8x1xf32> to vector<8x8x8xf32>
    %164 = arith.mulf %159, %163 : vector<8x8x8xf32>
    "tpu.trace_start"() <{level = 10 : i32, message = "nqk,nkd->nqd"}> : () -> ()
    %cst_95 = arith.constant dense<0.000000e+00> : vector<8x8x8xf32>
    %165 = tpu.matmul %164, %149, %cst_95 {dimension_numbers = #tpu.dot_dimension_numbers<[2], [1], [1], [2], [0, 0, 0, 1, 1, 2], [0], [0]>} : vector<8x8x8xf32>, vector<8x8x8xf32>, vector<8x8x8xf32> -> vector<8x8x8xf32>
    "tpu.trace_stop"() : () -> ()
    %c1_96 = arith.constant 1 : index
    %c0_97 = arith.constant 0 : index
    %c0_98 = arith.constant 0 : index
    %c0_99 = arith.constant 0 : index
    %166 = vector.load %arg4[%c1_96, %c0_97, %c0_98, %c0_99] : memref<2x8x8x32xf32, #tpu.memory_space<vmem>>, vector<1x8x8x32xf32>
    %167 = vector.shape_cast %166 : vector<1x8x8x32xf32> to vector<8x8x32xf32>
    "tpu.trace_start"() <{level = 10 : i32, message = "nsd,nde->nse"}> : () -> ()
    %cst_100 = arith.constant dense<0.000000e+00> : vector<8x8x32xf32>
    %168 = tpu.matmul %165, %167, %cst_100 {dimension_numbers = #tpu.dot_dimension_numbers<[2], [1], [1], [2], [0, 0, 0, 1, 1, 2], [0], [0]>} : vector<8x8x8xf32>, vector<8x8x32xf32>, vector<8x8x32xf32> -> vector<8x8x32xf32>
    "tpu.trace_stop"() : () -> ()
    %169 = vector.shape_cast %168 : vector<8x8x32xf32> to vector<2x4x8x32xf32>
    %cst_101 = arith.constant dense<0.000000e+00> : vector<2x8x32xf32>
    %170 = vector.multi_reduction <add>, %169, %cst_101 [1] : vector<2x4x8x32xf32> to vector<2x8x32xf32>
    %c1_102 = arith.constant 1 : index
    %c0_103 = arith.constant 0 : index
    %c0_104 = arith.constant 0 : index
    %171 = vector.load %arg8[%c1_102, %c0_103, %c0_104] : memref<2x6x32xf32, #tpu.memory_space<vmem>>, vector<1x6x32xf32>
    %172 = vector.shape_cast %171 : vector<1x6x32xf32> to vector<6x32xf32>
    %173 = arith.addf %124, %170 : vector<2x8x32xf32>
    %174 = vector.extract_strided_slice %172 {offsets = [0, 0], sizes = [1, 32], strides = [1, 1]} : vector<6x32xf32> to vector<1x32xf32>
    %175 = vector.shape_cast %174 : vector<1x32xf32> to vector<1x1x32xf32>
    %176 = vector.broadcast %175 : vector<1x1x32xf32> to vector<2x8x32xf32>
    %177 = arith.addf %173, %176 : vector<2x8x32xf32>
    %178 = vector.extract_strided_slice %172 {offsets = [1, 0], sizes = [1, 32], strides = [1, 1]} : vector<6x32xf32> to vector<1x32xf32>
    %179 = vector.extract_strided_slice %172 {offsets = [2, 0], sizes = [1, 32], strides = [1, 1]} : vector<6x32xf32> to vector<1x32xf32>
    %cst_105 = arith.constant dense<0.000000e+00> : vector<2x8xf32>
    %180 = vector.multi_reduction <add>, %177, %cst_105 [2] : vector<2x8x32xf32> to vector<2x8xf32>
    %181 = vector.shape_cast %180 : vector<2x8xf32> to vector<2x8x1xf32>
    %cst_106 = arith.constant 3.200000e+01 : f32
    %182 = vector.broadcast %cst_106 : f32 to vector<2x8x1xf32>
    %183 = arith.divf %181, %182 : vector<2x8x1xf32>
    %184 = vector.broadcast %183 : vector<2x8x1xf32> to vector<2x8x32xf32>
    %185 = arith.subf %177, %184 : vector<2x8x32xf32>
    %186 = arith.mulf %185, %185 : vector<2x8x32xf32>
    %cst_107 = arith.constant dense<0.000000e+00> : vector<2x8xf32>
    %187 = vector.multi_reduction <add>, %186, %cst_107 [2] : vector<2x8x32xf32> to vector<2x8xf32>
    %188 = vector.shape_cast %187 : vector<2x8xf32> to vector<2x8x1xf32>
    %cst_108 = arith.constant 3.200000e+01 : f32
    %189 = vector.broadcast %cst_108 : f32 to vector<2x8x1xf32>
    %190 = arith.divf %188, %189 : vector<2x8x1xf32>
    %191 = vector.broadcast %183 : vector<2x8x1xf32> to vector<2x8x32xf32>
    %192 = arith.subf %177, %191 : vector<2x8x32xf32>
    %cst_109 = arith.constant 9.99999974E-6 : f32
    %193 = vector.broadcast %cst_109 : f32 to vector<2x8x1xf32>
    %194 = arith.addf %190, %193 : vector<2x8x1xf32>
    %195 = math.rsqrt %194 : vector<2x8x1xf32>
    %196 = vector.broadcast %195 : vector<2x8x1xf32> to vector<2x8x32xf32>
    %197 = arith.mulf %192, %196 : vector<2x8x32xf32>
    %198 = vector.shape_cast %178 : vector<1x32xf32> to vector<1x1x32xf32>
    %199 = vector.broadcast %198 : vector<1x1x32xf32> to vector<2x8x32xf32>
    %200 = arith.mulf %197, %199 : vector<2x8x32xf32>
    %201 = vector.shape_cast %179 : vector<1x32xf32> to vector<1x1x32xf32>
    %202 = vector.broadcast %201 : vector<1x1x32xf32> to vector<2x8x32xf32>
    %203 = arith.addf %200, %202 : vector<2x8x32xf32>
    %c1_110 = arith.constant 1 : index
    %c0_111 = arith.constant 0 : index
    %c0_112 = arith.constant 0 : index
    %c0_113 = arith.constant 0 : index
    %204 = vector.load %arg5[%c1_110, %c0_111, %c0_112, %c0_113] : memref<2x2x32x64xf32, #tpu.memory_space<vmem>>, vector<1x2x32x64xf32>
    %205 = vector.shape_cast %204 : vector<1x2x32x64xf32> to vector<2x32x64xf32>
    "tpu.trace_start"() <{level = 10 : i32, message = "bse,bef->bsf"}> : () -> ()
    %cst_114 = arith.constant dense<0.000000e+00> : vector<2x8x64xf32>
    %206 = tpu.matmul %203, %205, %cst_114 {dimension_numbers = #tpu.dot_dimension_numbers<[2], [1], [1], [2], [0, 0, 0, 1, 1, 2], [0], [0]>} : vector<2x8x32xf32>, vector<2x32x64xf32>, vector<2x8x64xf32> -> vector<2x8x64xf32>
    "tpu.trace_stop"() : () -> ()
    %c1_115 = arith.constant 1 : index
    %c0_116 = arith.constant 0 : index
    %c0_117 = arith.constant 0 : index
    %207 = vector.load %arg6[%c1_115, %c0_116, %c0_117] : memref<2x1x64xf32, #tpu.memory_space<vmem>>, vector<1x1x64xf32>
    %208 = vector.shape_cast %207 : vector<1x1x64xf32> to vector<1x64xf32>
    %209 = vector.shape_cast %208 : vector<1x64xf32> to vector<1x1x64xf32>
    %210 = vector.broadcast %209 : vector<1x1x64xf32> to vector<2x8x64xf32>
    %211 = arith.addf %206, %210 : vector<2x8x64xf32>
    %cst_118 = arith.constant 0.000000e+00 : f32
    %212 = vector.broadcast %cst_118 : f32 to vector<2x8x64xf32>
    %213 = arith.maximumf %211, %212 : vector<2x8x64xf32>
    %c1_119 = arith.constant 1 : index
    %c0_120 = arith.constant 0 : index
    %c0_121 = arith.constant 0 : index
    %c0_122 = arith.constant 0 : index
    %214 = vector.load %arg7[%c1_119, %c0_120, %c0_121, %c0_122] : memref<2x2x64x32xf32, #tpu.memory_space<vmem>>, vector<1x2x64x32xf32>
    %215 = vector.shape_cast %214 : vector<1x2x64x32xf32> to vector<2x64x32xf32>
    "tpu.trace_start"() <{level = 10 : i32, message = "bsf,bfe->bse"}> : () -> ()
    %cst_123 = arith.constant dense<0.000000e+00> : vector<2x8x32xf32>
    %216 = tpu.matmul %213, %215, %cst_123 {dimension_numbers = #tpu.dot_dimension_numbers<[2], [1], [1], [2], [0, 0, 0, 1, 1, 2], [0], [0]>} : vector<2x8x64xf32>, vector<2x64x32xf32>, vector<2x8x32xf32> -> vector<2x8x32xf32>
    "tpu.trace_stop"() : () -> ()
    %217 = vector.extract_strided_slice %172 {offsets = [3, 0], sizes = [1, 32], strides = [1, 1]} : vector<6x32xf32> to vector<1x32xf32>
    %218 = vector.shape_cast %217 : vector<1x32xf32> to vector<1x1x32xf32>
    %219 = vector.broadcast %218 : vector<1x1x32xf32> to vector<2x8x32xf32>
    %220 = arith.addf %216, %219 : vector<2x8x32xf32>
    %221 = arith.addf %203, %220 : vector<2x8x32xf32>
    %222 = vector.extract_strided_slice %172 {offsets = [4, 0], sizes = [1, 32], strides = [1, 1]} : vector<6x32xf32> to vector<1x32xf32>
    %223 = vector.extract_strided_slice %172 {offsets = [5, 0], sizes = [1, 32], strides = [1, 1]} : vector<6x32xf32> to vector<1x32xf32>
    %cst_124 = arith.constant dense<0.000000e+00> : vector<2x8xf32>
    %224 = vector.multi_reduction <add>, %221, %cst_124 [2] : vector<2x8x32xf32> to vector<2x8xf32>
    %225 = vector.shape_cast %224 : vector<2x8xf32> to vector<2x8x1xf32>
    %cst_125 = arith.constant 3.200000e+01 : f32
    %226 = vector.broadcast %cst_125 : f32 to vector<2x8x1xf32>
    %227 = arith.divf %225, %226 : vector<2x8x1xf32>
    %228 = vector.broadcast %227 : vector<2x8x1xf32> to vector<2x8x32xf32>
    %229 = arith.subf %221, %228 : vector<2x8x32xf32>
    %230 = arith.mulf %229, %229 : vector<2x8x32xf32>
    %cst_126 = arith.constant dense<0.000000e+00> : vector<2x8xf32>
    %231 = vector.multi_reduction <add>, %230, %cst_126 [2] : vector<2x8x32xf32> to vector<2x8xf32>
    %232 = vector.shape_cast %231 : vector<2x8xf32> to vector<2x8x1xf32>
    %cst_127 = arith.constant 3.200000e+01 : f32
    %233 = vector.broadcast %cst_127 : f32 to vector<2x8x1xf32>
    %234 = arith.divf %232, %233 : vector<2x8x1xf32>
    %235 = vector.broadcast %227 : vector<2x8x1xf32> to vector<2x8x32xf32>
    %236 = arith.subf %221, %235 : vector<2x8x32xf32>
    %cst_128 = arith.constant 9.99999974E-6 : f32
    %237 = vector.broadcast %cst_128 : f32 to vector<2x8x1xf32>
    %238 = arith.addf %234, %237 : vector<2x8x1xf32>
    %239 = math.rsqrt %238 : vector<2x8x1xf32>
    %240 = vector.broadcast %239 : vector<2x8x1xf32> to vector<2x8x32xf32>
    %241 = arith.mulf %236, %240 : vector<2x8x32xf32>
    %242 = vector.shape_cast %222 : vector<1x32xf32> to vector<1x1x32xf32>
    %243 = vector.broadcast %242 : vector<1x1x32xf32> to vector<2x8x32xf32>
    %244 = arith.mulf %241, %243 : vector<2x8x32xf32>
    %245 = vector.shape_cast %223 : vector<1x32xf32> to vector<1x1x32xf32>
    %246 = vector.broadcast %245 : vector<1x1x32xf32> to vector<2x8x32xf32>
    %247 = arith.addf %244, %246 : vector<2x8x32xf32>
    %cst_129 = arith.constant dense<0.000000e+00> : vector<2x32xf32>
    %248 = vector.multi_reduction <add>, %247, %cst_129 [1] : vector<2x8x32xf32> to vector<2x32xf32>
    %cst_130 = arith.constant 8.000000e+00 : f32
    %249 = vector.broadcast %cst_130 : f32 to vector<2x32xf32>
    %250 = arith.divf %248, %249 : vector<2x32xf32>
    %c0_131 = arith.constant 0 : index
    %c0_132 = arith.constant 0 : index
    %251 = vector.load %arg9[%c0_131, %c0_132] : memref<32x32xf32, #tpu.memory_space<vmem>>, vector<32x32xf32>
    %cst_133 = arith.constant dense<0.000000e+00> : vector<2x32xf32>
    %252 = tpu.matmul %250, %251, %cst_133 {dimension_numbers = #tpu.dot_dimension_numbers<[1], [0], [0], [1], [0, 0, 1, 1], [], []>} : vector<2x32xf32>, vector<32x32xf32>, vector<2x32xf32> -> vector<2x32xf32>
    %c0_134 = arith.constant 0 : index
    %c0_135 = arith.constant 0 : index
    %253 = vector.load %arg10[%c0_134, %c0_135] : memref<1x32xf32, #tpu.memory_space<vmem>>, vector<1x32xf32>
    %254 = vector.broadcast %253 : vector<1x32xf32> to vector<2x32xf32>
    %255 = arith.addf %252, %254 : vector<2x32xf32>
    %c0_136 = arith.constant 0 : index
    %c0_137 = arith.constant 0 : index
    %256 = vector.load %arg11[%c0_136, %c0_137] : memref<32x128xf32, #tpu.memory_space<vmem>>, vector<32x128xf32>
    %cst_138 = arith.constant dense<0.000000e+00> : vector<2x128xf32>
    %257 = tpu.matmul %255, %256, %cst_138 {dimension_numbers = #tpu.dot_dimension_numbers<[1], [0], [0], [1], [0, 0, 1, 1], [], []>} : vector<2x32xf32>, vector<32x128xf32>, vector<2x128xf32> -> vector<2x128xf32>
    %c0_139 = arith.constant 0 : index
    %c0_140 = arith.constant 0 : index
    %258 = vector.load %arg12[%c0_139, %c0_140] : memref<1x128xf32, #tpu.memory_space<vmem>>, vector<1x128xf32>
    %259 = vector.broadcast %258 : vector<1x128xf32> to vector<2x128xf32>
    %260 = arith.addf %257, %259 : vector<2x128xf32>
    %cst_141 = arith.constant dense<0xFF800000> : vector<2xf32>
    %261 = vector.multi_reduction <maximumf>, %260, %cst_141 [1] : vector<2x128xf32> to vector<2xf32>
    %262 = vector.shape_cast %261 : vector<2xf32> to vector<2x1xf32>
    %263 = vector.broadcast %262 : vector<2x1xf32> to vector<2x128xf32>
    %264 = arith.subf %260, %263 : vector<2x128xf32>
    %265 = math.exp %264 : vector<2x128xf32>
    %cst_142 = arith.constant dense<0.000000e+00> : vector<2xf32>
    %266 = vector.multi_reduction <add>, %265, %cst_142 [1] : vector<2x128xf32> to vector<2xf32>
    %267 = vector.shape_cast %266 : vector<2xf32> to vector<2x1xf32>
    %268 = vector.broadcast %267 : vector<2x1xf32> to vector<2x128xf32>
    %269 = arith.divf %265, %268 : vector<2x128xf32>
    %c0_143 = arith.constant 0 : index
    %c0_144 = arith.constant 0 : index
    %270 = vector.load %arg13[%c0_143, %c0_144] : memref<2x128xf32, #tpu.memory_space<vmem>>, vector<2x128xf32>
    tpu.vector_store %arg13[%c0_143, %c0_144], %269 {strides = array<i32>} : memref<2x128xf32, #tpu.memory_space<vmem>>, vector<2x128xf32>,
    return
  }
}

</mosaic_0001>

<llo_original>
// kernel: tpu_custom_call.1
$region0: #{tpu_custom_call.1}
  #allocation0 [shape = 'u32[]', space=smem, size = 0x4, offset = 0x4, fixed_abs, tag = 'smem constant byte address 0x4 - core index']
  #allocation1 [shape = 'u32[72,128]{1,0:T(1,128)}', space=vmem, size = 0x9000, scoped, tag = 'internal scratch']
  %s0 = inlined_call_operand.vmem [shape: f32[2,8,32], index: 0, kind: input, shape index: {}]
  %s1 = inlined_call_operand.vmem [shape: f32[8,1,8], index: 1, kind: input, shape index: {}]
  %s2 = inlined_call_operand.vmem [shape: f32[6,8,32,8], index: 2, kind: input, shape index: {}]
  %s3 = inlined_call_operand.vmem [shape: f32[6,8,1,8], index: 3, kind: input, shape index: {}]
  %s4 = inlined_call_operand.vmem [shape: f32[2,8,8,32], index: 4, kind: input, shape index: {}]
  %s5 = inlined_call_operand.vmem [shape: f32[2,2,32,64], index: 5, kind: input, shape index: {}]
  %s6 = inlined_call_operand.vmem [shape: f32[2,1,64], index: 6, kind: input, shape index: {}]
  %s7 = inlined_call_operand.vmem [shape: f32[2,2,64,32], index: 7, kind: input, shape index: {}]
  %s8 = inlined_call_operand.vmem [shape: f32[2,6,32], index: 8, kind: input, shape index: {}]
  %s9 = inlined_call_operand.vmem [shape: f32[32,32], index: 9, kind: input, shape index: {}]
  %s10 = inlined_call_operand.vmem [shape: f32[1,32], index: 10, kind: input, shape index: {}]
  %s11 = inlined_call_operand.vmem [shape: f32[32,128], index: 11, kind: input, shape index: {}]
  %s12 = inlined_call_operand.vmem [shape: f32[1,128], index: 12, kind: input, shape index: {}]
  %s13 = inlined_call_operand.hbm [shape: f32[2,128], index: 13, kind: output, shape index: {}]
  %s14 = sld [smem:[#allocation0]]
  $region62: #{tpu_custom_call.1} parent=0
    _
  %s16 = ssub.s32 1, %s14
  %s17 = scalar_select 0, %s16, %s14
  $region1: #{tpu_custom_call.1} parent=0
    #allocation2 [shape = 'u8[1024]{0}', space=vmem, size = 0x400, scoped, tag = 'output window, operand 0, single buffered']
    #allocation3 [shape = 's32[1]{0}', space=sflag, size = 0x4, scoped, tag = 'scoped memory for tpu_custom_call.1']
    %18 = vsyncpa [#allocation3], 0
    // Predicated region
    $region2: #{tpu_custom_call.1} parent=1 // pred_check
      _
    $region3: #{tpu_custom_call.1} parent=1 // pred_check_branch
      %20 = sbr.rel (0) target = $region5
    $region4: #{tpu_custom_call.1} parent=1 // pred_region
      _
    $region5: #{tpu_custom_call.1} parent=1 // pred_fallthru
      _
    // Predicated region
    $region6: #{tpu_custom_call.1} parent=1 // pred_check
      _
    $region7: #{tpu_custom_call.1} parent=1 // pred_check_branch
      %22 = sbr.rel (0) target = $region9
    $region8: #{tpu_custom_call.1} parent=1 // pred_region
      _
    $region9: #{tpu_custom_call.1} parent=1 // pred_fallthru
      _
    // Predicated region
    $region10: #{tpu_custom_call.1} parent=1 // pred_check
      _
    $region11: #{tpu_custom_call.1} parent=1 // pred_check_branch
      %24 = sbr.rel (0) target = $region13
    $region12: #{tpu_custom_call.1} parent=1 // pred_region
      _
    $region13: #{tpu_custom_call.1} parent=1 // pred_fallthru
      _
    // Predicated region
    $region14: #{tpu_custom_call.1} parent=1 // pred_check
      _
    $region15: #{tpu_custom_call.1} parent=1 // pred_check_branch
      %26 = sbr.rel (0) target = $region17
    $region16: #{tpu_custom_call.1} parent=1 // pred_region
      _
    $region17: #{tpu_custom_call.1} parent=1 // pred_fallthru
      _
    // Predicated region
    $region18: #{tpu_custom_call.1} parent=1 // pred_check
      _
    $region19: #{tpu_custom_call.1} parent=1 // pred_check_branch
      %28 = sbr.rel (0) target = $region21
    $region20: #{tpu_custom_call.1} parent=1 // pred_region
      _
    $region21: #{tpu_custom_call.1} parent=1 // pred_fallthru
      _
    // Predicated region
    $region22: #{tpu_custom_call.1} parent=1 // pred_check
      _
    $region23: #{tpu_custom_call.1} parent=1 // pred_check_branch
      %30 = sbr.rel (0) target = $region25
    $region24: #{tpu_custom_call.1} parent=1 // pred_region
      _
    $region25: #{tpu_custom_call.1} parent=1 // pred_fallthru
      _
    // Predicated region
    $region26: #{tpu_custom_call.1} parent=1 // pred_check
      _
    $region27: #{tpu_custom_call.1} parent=1 // pred_check_branch
      %32 = sbr.rel (0) target = $region29
    $region28: #{tpu_custom_call.1} parent=1 // pred_region
      _
    $region29: #{tpu_custom_call.1} parent=1 // pred_fallthru
      _
    // Predicated region
    $region30: #{tpu_custom_call.1} parent=1 // pred_check
      _
    $region31: #{tpu_custom_call.1} parent=1 // pred_check_branch
      %34 = sbr.rel (0) target = $region33
    $region32: #{tpu_custom_call.1} parent=1 // pred_region
      _
    $region33: #{tpu_custom_call.1} parent=1 // pred_fallthru
      _
    // Predicated region
    $region34: #{tpu_custom_call.1} parent=1 // pred_check
      _
    $region35: #{tpu_custom_call.1} parent=1 // pred_check_branch
      %36 = sbr.rel (0) target = $region37
    $region36: #{tpu_custom_call.1} parent=1 // pred_region
      _
    $region37: #{tpu_custom_call.1} parent=1 // pred_fallthru
      _
    // Predicated region
    $region38: #{tpu_custom_call.1} parent=1 // pred_check
      _
    $region39: #{tpu_custom_call.1} parent=1 // pred_check_branch
      %38 = sbr.rel (0) target = $region41
    $region40: #{tpu_custom_call.1} parent=1 // pred_region
      _
    $region41: #{tpu_custom_call.1} parent=1 // pred_fallthru
      _
    // Predicated region
    $region42: #{tpu_custom_call.1} parent=1 // pred_check
      _
    $region43: #{tpu_custom_call.1} parent=1 // pred_check_branch
      %40 = sbr.rel (0) target = $region45
    $region44: #{tpu_custom_call.1} parent=1 // pred_region
      _
    $region45: #{tpu_custom_call.1} parent=1 // pred_fallthru
      _
    // Predicated region
    $region46: #{tpu_custom_call.1} parent=1 // pred_check
      _
    $region47: #{tpu_custom_call.1} parent=1 // pred_check_branch
      %42 = sbr.rel (0) target = $region49
    $region48: #{tpu_custom_call.1} parent=1 // pred_region
      _
    $region49: #{tpu_custom_call.1} parent=1 // pred_fallthru
      _
    // Predicated region
    $region50: #{tpu_custom_call.1} parent=1 // pred_check
      _
    $region51: #{tpu_custom_call.1} parent=1 // pred_check_branch
      %44 = sbr.rel (0) target = $region53
    $region52: #{tpu_custom_call.1} parent=1 // pred_region
      _
    $region53: #{tpu_custom_call.1} parent=1 // pred_fallthru
      _
    %v45 = vld [vmem:[%s0] sm:$0xff]
    %v46 = vld [vmem:[%s0 + $0x8] sm:$0xff]
    %v47 = vld [vmem:[%s1] sm:$0x1]
    %v48 = vld [vmem:[%s1 + $0x1] sm:$0x1]
    %v49 = vld [vmem:[%s1 + $0x2] sm:$0x1]
    %v50 = vld [vmem:[%s1 + $0x3] sm:$0x1]
    %v51 = vld [vmem:[%s1 + $0x4] sm:$0x1]
    %v52 = vld [vmem:[%s1 + $0x5] sm:$0x1]
    %v53 = vld [vmem:[%s1 + $0x6] sm:$0x1]
    %v54 = vld [vmem:[%s1 + $0x7] sm:$0x1]
    %v55 = vld [vmem:[%s2] sm:$0xff]
    %v56 = vld [vmem:[%s2 + $0x8] sm:$0xff]
    %v57 = vld [vmem:[%s2 + $0x10] sm:$0xff]
    %v58 = vld [vmem:[%s2 + $0x18] sm:$0xff]
    %v59 = vld [vmem:[%s2 + $0x20] sm:$0xff]
    %v60 = vld [vmem:[%s2 + $0x28] sm:$0xff]
    %v61 = vld [vmem:[%s2 + $0x30] sm:$0xff]
    %v62 = vld [vmem:[%s2 + $0x38] sm:$0xff]
    %v63 = vld [vmem:[%s2 + $0x40] sm:$0xff]
    %v64 = vld [vmem:[%s2 + $0x48] sm:$0xff]
    %v65 = vld [vmem:[%s2 + $0x50] sm:$0xff]
    %v66 = vld [vmem:[%s2 + $0x58] sm:$0xff]
    %v67 = vld [vmem:[%s2 + $0x60] sm:$0xff]
    %v68 = vld [vmem:[%s2 + $0x68] sm:$0xff]
    %v69 = vld [vmem:[%s2 + $0x70] sm:$0xff]
    %v70 = vld [vmem:[%s2 + $0x78] sm:$0xff]
    %v71 = vld [vmem:[%s2 + $0x80] sm:$0xff]
    %v72 = vld [vmem:[%s2 + $0x88] sm:$0xff]
    %v73 = vld [vmem:[%s2 + $0x90] sm:$0xff]
    %v74 = vld [vmem:[%s2 + $0x98] sm:$0xff]
    %v75 = vld [vmem:[%s2 + $0xa0] sm:$0xff]
    %v76 = vld [vmem:[%s2 + $0xa8] sm:$0xff]
    %v77 = vld [vmem:[%s2 + $0xb0] sm:$0xff]
    %v78 = vld [vmem:[%s2 + $0xb8] sm:$0xff]
    %v79 = vld [vmem:[%s2 + $0xc0] sm:$0xff]
    %v80 = vld [vmem:[%s2 + $0xc8] sm:$0xff]
    %v81 = vld [vmem:[%s2 + $0xd0] sm:$0xff]
    %v82 = vld [vmem:[%s2 + $0xd8] sm:$0xff]
    %v83 = vld [vmem:[%s2 + $0xe0] sm:$0xff]
    %v84 = vld [vmem:[%s2 + $0xe8] sm:$0xff]
    %v85 = vld [vmem:[%s2 + $0xf0] sm:$0xff]
    %v86 = vld [vmem:[%s2 + $0xf8] sm:$0xff]
    %v87 = vld [vmem:[%s3] sm:$0x1]
    %v88 = vld [vmem:[%s3 + $0x1] sm:$0x1]
    %v89 = vld [vmem:[%s3 + $0x2] sm:$0x1]
    %v90 = vld [vmem:[%s3 + $0x3] sm:$0x1]
    %v91 = vld [vmem:[%s3 + $0x4] sm:$0x1]
    %v92 = vld [vmem:[%s3 + $0x5] sm:$0x1]
    %v93 = vld [vmem:[%s3 + $0x6] sm:$0x1]
    %v94 = vld [vmem:[%s3 + $0x7] sm:$0x1]
    %v103 = vperm.slane %v87, 0
    %v104 = vperm.slane %v88, 0
    %v105 = vperm.slane %v89, 0
    %v106 = vperm.slane %v90, 0
    %v107 = vperm.slane %v91, 0
    %v108 = vperm.slane %v92, 0
    %v109 = vperm.slane %v93, 0
    %v110 = vperm.slane %v94, 0
    %vm119 = vcmask 261120
    %v121 = vsel %vm119, %v45, 0
    %123 = vmatpush.msra.mxu0 0.0
    %124 = vmatpush.msra.mxu0 0.0
    %125 = vmatpush.msra.mxu0 0.0
    %126 = vmatpush.msra.mxu0 0.0
    %127 = vmatpush.msra.mxu0 0.0
    %128 = vmatpush.msra.mxu0 0.0
    %129 = vmatpush.msra.mxu0 0.0
    %130 = vmatpush.msra.mxu0 0.0
    %131 = vmatpush.msra.mxu0 0.0
    %132 = vmatpush.msra.mxu0 0.0
    %133 = vmatpush.msra.mxu0 0.0
    %134 = vmatpush.msra.mxu0 0.0
    %135 = vmatpush.msra.mxu0 %v58
    %136 = vmatpush.msra.mxu0 %v57
    %137 = vmatpush.msra.mxu0 %v56
    %138 = vmatpush.msra.mxu0 %v55
    %139 = vmatmul.f32.gmra.mxu0 %v121
    %v140 = vpop.f32.mrf.mxu0
    %v141 = vadd.f32 %v103, %v140
    %142 = vdwg.mxu0
    %143 = vmatpush.msra.mxu0 0.0
    %144 = vmatpush.msra.mxu0 0.0
    %145 = vmatpush.msra.mxu0 0.0
    %146 = vmatpush.msra.mxu0 0.0
    %147 = vmatpush.msra.mxu0 0.0
    %148 = vmatpush.msra.mxu0 0.0
    %149 = vmatpush.msra.mxu0 0.0
    %150 = vmatpush.msra.mxu0 0.0
    %151 = vmatpush.msra.mxu0 0.0
    %152 = vmatpush.msra.mxu0 0.0
    %153 = vmatpush.msra.mxu0 0.0
    %154 = vmatpush.msra.mxu0 0.0
    %155 = vmatpush.msra.mxu0 %v62
    %156 = vmatpush.msra.mxu0 %v61
    %157 = vmatpush.msra.mxu0 %v60
    %158 = vmatpush.msra.mxu0 %v59
    %159 = vmatmul.f32.gmra.mxu0 %v121
    %v160 = vpop.f32.mrf.mxu0
    %v161 = vadd.f32 %v104, %v160
    %162 = vdwg.mxu0
    %163 = vmatpush.msra.mxu0 0.0
    %164 = vmatpush.msra.mxu0 0.0
    %165 = vmatpush.msra.mxu0 0.0
    %166 = vmatpush.msra.mxu0 0.0
    %167 = vmatpush.msra.mxu0 0.0
    %168 = vmatpush.msra.mxu0 0.0
    %169 = vmatpush.msra.mxu0 0.0
    %170 = vmatpush.msra.mxu0 0.0
    %171 = vmatpush.msra.mxu0 0.0
    %172 = vmatpush.msra.mxu0 0.0
    %173 = vmatpush.msra.mxu0 0.0
    %174 = vmatpush.msra.mxu0 0.0
    %175 = vmatpush.msra.mxu0 %v66
    %176 = vmatpush.msra.mxu0 %v65
    %177 = vmatpush.msra.mxu0 %v64
    %178 = vmatpush.msra.mxu0 %v63
    %179 = vmatmul.f32.gmra.mxu0 %v121
    %v180 = vpop.f32.mrf.mxu0
    %v181 = vadd.f32 %v105, %v180
    %182 = vdwg.mxu0
    %183 = vmatpush.msra.mxu0 0.0
    %184 = vmatpush.msra.mxu0 0.0
    %185 = vmatpush.msra.mxu0 0.0
    %186 = vmatpush.msra.mxu0 0.0
    %187 = vmatpush.msra.mxu0 0.0
    %188 = vmatpush.msra.mxu0 0.0
    %189 = vmatpush.msra.mxu0 0.0
    %190 = vmatpush.msra.mxu0 0.0
    %191 = vmatpush.msra.mxu0 0.0
    %192 = vmatpush.msra.mxu0 0.0
    %193 = vmatpush.msra.mxu0 0.0
    %194 = vmatpush.msra.mxu0 0.0
    %195 = vmatpush.msra.mxu0 %v70
    %196 = vmatpush.msra.mxu0 %v69
    %197 = vmatpush.msra.mxu0 %v68
    %198 = vmatpush.msra.mxu0 %v67
    %199 = vmatmul.f32.gmra.mxu0 %v121
    %v200 = vpop.f32.mrf.mxu0
    %v201 = vadd.f32 %v106, %v200
    %202 = vdwg.mxu0
    %v204 = vsel %vm119, %v46, 0
    %206 = vmatpush.msra.mxu0 0.0
    %207 = vmatpush.msra.mxu0 0.0
    %208 = vmatpush.msra.mxu0 0.0
    %209 = vmatpush.msra.mxu0 0.0
    %210 = vmatpush.msra.mxu0 0.0
    %211 = vmatpush.msra.mxu0 0.0
    %212 = vmatpush.msra.mxu0 0.0
    %213 = vmatpush.msra.mxu0 0.0
    %214 = vmatpush.msra.mxu0 0.0
    %215 = vmatpush.msra.mxu0 0.0
    %216 = vmatpush.msra.mxu0 0.0
    %217 = vmatpush.msra.mxu0 0.0
    %218 = vmatpush.msra.mxu0 %v74
    %219 = vmatpush.msra.mxu0 %v73
    %220 = vmatpush.msra.mxu0 %v72
    %221 = vmatpush.msra.mxu0 %v71
    %222 = vmatmul.f32.gmra.mxu0 %v204
    %v223 = vpop.f32.mrf.mxu0
    %v224 = vadd.f32 %v107, %v223
    %225 = vdwg.mxu0
    %226 = vmatpush.msra.mxu0 0.0
    %227 = vmatpush.msra.mxu0 0.0
    %228 = vmatpush.msra.mxu0 0.0
    %229 = vmatpush.msra.mxu0 0.0
    %230 = vmatpush.msra.mxu0 0.0
    %231 = vmatpush.msra.mxu0 0.0
    %232 = vmatpush.msra.mxu0 0.0
    %233 = vmatpush.msra.mxu0 0.0
    %234 = vmatpush.msra.mxu0 0.0
    %235 = vmatpush.msra.mxu0 0.0
    %236 = vmatpush.msra.mxu0 0.0
    %237 = vmatpush.msra.mxu0 0.0
    %238 = vmatpush.msra.mxu0 %v78
    %239 = vmatpush.msra.mxu0 %v77
    %240 = vmatpush.msra.mxu0 %v76
    %241 = vmatpush.msra.mxu0 %v75
    %242 = vmatmul.f32.gmra.mxu0 %v204
    %v243 = vpop.f32.mrf.mxu0
    %v244 = vadd.f32 %v108, %v243
    %245 = vdwg.mxu0
    %246 = vmatpush.msra.mxu0 0.0
    %247 = vmatpush.msra.mxu0 0.0
    %248 = vmatpush.msra.mxu0 0.0
    %249 = vmatpush.msra.mxu0 0.0
    %250 = vmatpush.msra.mxu0 0.0
    %251 = vmatpush.msra.mxu0 0.0
    %252 = vmatpush.msra.mxu0 0.0
    %253 = vmatpush.msra.mxu0 0.0
    %254 = vmatpush.msra.mxu0 0.0
    %255 = vmatpush.msra.mxu0 0.0
    %256 = vmatpush.msra.mxu0 0.0
    %257 = vmatpush.msra.mxu0 0.0
    %258 = vmatpush.msra.mxu0 %v82
    %259 = vmatpush.msra.mxu0 %v81
    %260 = vmatpush.msra.mxu0 %v80
    %261 = vmatpush.msra.mxu0 %v79
    %262 = vmatmul.f32.gmra.mxu0 %v204
    %v263 = vpop.f32.mrf.mxu0
    %v264 = vadd.f32 %v109, %v263
    %265 = vdwg.mxu0
    %266 = vmatpush.msra.mxu0 0.0
    %267 = vmatpush.msra.mxu0 0.0
    %268 = vmatpush.msra.mxu0 0.0
    %269 = vmatpush.msra.mxu0 0.0
    %270 = vmatpush.msra.mxu0 0.0
    %271 = vmatpush.msra.mxu0 0.0
    %272 = vmatpush.msra.mxu0 0.0
    %273 = vmatpush.msra.mxu0 0.0
    %274 = vmatpush.msra.mxu0 0.0
    %275 = vmatpush.msra.mxu0 0.0
    %276 = vmatpush.msra.mxu0 0.0
    %277 = vmatpush.msra.mxu0 0.0
    %278 = vmatpush.msra.mxu0 %v86
    %279 = vmatpush.msra.mxu0 %v85
    %280 = vmatpush.msra.mxu0 %v84
    %281 = vmatpush.msra.mxu0 %v83
    %282 = vmatmul.f32.gmra.mxu0 %v204
    %v283 = vpop.f32.mrf.mxu0
    %v284 = vadd.f32 %v110, %v283
    %285 = vdwg.mxu0
    %s286 = scalar_lea.vmem %s2, 256
    %v287 = vld [vmem:[%s286] sm:$0xff]
    %v288 = vld [vmem:[%s286 + $0x8] sm:$0xff]
    %v289 = vld [vmem:[%s286 + $0x10] sm:$0xff]
    %v290 = vld [vmem:[%s286 + $0x18] sm:$0xff]
    %v291 = vld [vmem:[%s286 + $0x20] sm:$0xff]
    %v292 = vld [vmem:[%s286 + $0x28] sm:$0xff]
    %v293 = vld [vmem:[%s286 + $0x30] sm:$0xff]
    %v294 = vld [vmem:[%s286 + $0x38] sm:$0xff]
    %v295 = vld [vmem:[%s286 + $0x40] sm:$0xff]
    %v296 = vld [vmem:[%s286 + $0x48] sm:$0xff]
    %v297 = vld [vmem:[%s286 + $0x50] sm:$0xff]
    %v298 = vld [vmem:[%s286 + $0x58] sm:$0xff]
    %v299 = vld [vmem:[%s286 + $0x60] sm:$0xff]
    %v300 = vld [vmem:[%s286 + $0x68] sm:$0xff]
    %v301 = vld [vmem:[%s286 + $0x70] sm:$0xff]
    %v302 = vld [vmem:[%s286 + $0x78] sm:$0xff]
    %v303 = vld [vmem:[%s286 + $0x80] sm:$0xff]
    %v304 = vld [vmem:[%s286 + $0x88] sm:$0xff]
    %v305 = vld [vmem:[%s286 + $0x90] sm:$0xff]
    %v306 = vld [vmem:[%s286 + $0x98] sm:$0xff]
    %v307 = vld [vmem:[%s286 + $0xa0] sm:$0xff]
    %v308 = vld [vmem:[%s286 + $0xa8] sm:$0xff]
    %v309 = vld [vmem:[%s286 + $0xb0] sm:$0xff]
    %v310 = vld [vmem:[%s286 + $0xb8] sm:$0xff]
    %v311 = vld [vmem:[%s286 + $0xc0] sm:$0xff]
    %v312 = vld [vmem:[%s286 + $0xc8] sm:$0xff]
    %v313 = vld [vmem:[%s286 + $0xd0] sm:$0xff]
    %v314 = vld [vmem:[%s286 + $0xd8] sm:$0xff]
    %v315 = vld [vmem:[%s286 + $0xe0] sm:$0xff]
    %v316 = vld [vmem:[%s286 + $0xe8] sm:$0xff]
    %v317 = vld [vmem:[%s286 + $0xf0] sm:$0xff]
    %v318 = vld [vmem:[%s286 + $0xf8] sm:$0xff]
    %s319 = scalar_lea.vmem %s3, 8
    %v320 = vld [vmem:[%s319] sm:$0x1]
    %v321 = vld [vmem:[%s319 + $0x1] sm:$0x1]
    %v322 = vld [vmem:[%s319 + $0x2] sm:$0x1]
    %v323 = vld [vmem:[%s319 + $0x3] sm:$0x1]
    %v324 = vld [vmem:[%s319 + $0x4] sm:$0x1]
    %v325 = vld [vmem:[%s319 + $0x5] sm:$0x1]
    %v326 = vld [vmem:[%s319 + $0x6] sm:$0x1]
    %v327 = vld [vmem:[%s319 + $0x7] sm:$0x1]
    %v336 = vperm.slane %v320, 0
    %v337 = vperm.slane %v321, 0
    %v338 = vperm.slane %v322, 0
    %v339 = vperm.slane %v323, 0
    %v340 = vperm.slane %v324, 0
    %v341 = vperm.slane %v325, 0
    %v342 = vperm.slane %v326, 0
    %v343 = vperm.slane %v327, 0
    %352 = vmatpush.msra.mxu0 0.0
    %353 = vmatpush.msra.mxu0 0.0
    %354 = vmatpush.msra.mxu0 0.0
    %355 = vmatpush.msra.mxu0 0.0
    %356 = vmatpush.msra.mxu0 0.0
    %357 = vmatpush.msra.mxu0 0.0
    %358 = vmatpush.msra.mxu0 0.0
    %359 = vmatpush.msra.mxu0 0.0
    %360 = vmatpush.msra.mxu0 0.0
    %361 = vmatpush.msra.mxu0 0.0
    %362 = vmatpush.msra.mxu0 0.0
    %363 = vmatpush.msra.mxu0 0.0
    %364 = vmatpush.msra.mxu0 %v290
    %365 = vmatpush.msra.mxu0 %v289
    %366 = vmatpush.msra.mxu0 %v288
    %367 = vmatpush.msra.mxu0 %v287
    %368 = vmatmul.f32.gmra.mxu0 %v121
    %v369 = vpop.f32.mrf.mxu0
    %v370 = vadd.f32 %v336, %v369
    %371 = vdwg.mxu0
    %372 = vmatpush.msra.mxu0 0.0
    %373 = vmatpush.msra.mxu0 0.0
    %374 = vmatpush.msra.mxu0 0.0
    %375 = vmatpush.msra.mxu0 0.0
    %376 = vmatpush.msra.mxu0 0.0
    %377 = vmatpush.msra.mxu0 0.0
    %378 = vmatpush.msra.mxu0 0.0
    %379 = vmatpush.msra.mxu0 0.0
    %380 = vmatpush.msra.mxu0 0.0
    %381 = vmatpush.msra.mxu0 0.0
    %382 = vmatpush.msra.mxu0 0.0
    %383 = vmatpush.msra.mxu0 0.0
    %384 = vmatpush.msra.mxu0 %v294
    %385 = vmatpush.msra.mxu0 %v293
    %386 = vmatpush.msra.mxu0 %v292
    %387 = vmatpush.msra.mxu0 %v291
    %388 = vmatmul.f32.gmra.mxu0 %v121
    %v389 = vpop.f32.mrf.mxu0
    %v390 = vadd.f32 %v337, %v389
    %391 = vdwg.mxu0
    %392 = vmatpush.msra.mxu0 0.0
    %393 = vmatpush.msra.mxu0 0.0
    %394 = vmatpush.msra.mxu0 0.0
    %395 = vmatpush.msra.mxu0 0.0
    %396 = vmatpush.msra.mxu0 0.0
    %397 = vmatpush.msra.mxu0 0.0
    %398 = vmatpush.msra.mxu0 0.0
    %399 = vmatpush.msra.mxu0 0.0
    %400 = vmatpush.msra.mxu0 0.0
    %401 = vmatpush.msra.mxu0 0.0
    %402 = vmatpush.msra.mxu0 0.0
    %403 = vmatpush.msra.mxu0 0.0
    %404 = vmatpush.msra.mxu0 %v298
    %405 = vmatpush.msra.mxu0 %v297
    %406 = vmatpush.msra.mxu0 %v296
    %407 = vmatpush.msra.mxu0 %v295
    %408 = vmatmul.f32.gmra.mxu0 %v121
    %v409 = vpop.f32.mrf.mxu0
    %v410 = vadd.f32 %v338, %v409
    %411 = vdwg.mxu0
    %412 = vmatpush.msra.mxu0 0.0
    %413 = vmatpush.msra.mxu0 0.0
    %414 = vmatpush.msra.mxu0 0.0
    %415 = vmatpush.msra.mxu0 0.0
    %416 = vmatpush.msra.mxu0 0.0
    %417 = vmatpush.msra.mxu0 0.0
    %418 = vmatpush.msra.mxu0 0.0
    %419 = vmatpush.msra.mxu0 0.0
    %420 = vmatpush.msra.mxu0 0.0
    %421 = vmatpush.msra.mxu0 0.0
    %422 = vmatpush.msra.mxu0 0.0
    %423 = vmatpush.msra.mxu0 0.0
    %424 = vmatpush.msra.mxu0 %v302
    %425 = vmatpush.msra.mxu0 %v301
    %426 = vmatpush.msra.mxu0 %v300
    %427 = vmatpush.msra.mxu0 %v299
    %428 = vmatmul.f32.gmra.mxu0 %v121
    %v429 = vpop.f32.mrf.mxu0
    %v430 = vadd.f32 %v339, %v429
    %431 = vdwg.mxu0
    %432 = vmatpush.msra.mxu0 0.0
    %433 = vmatpush.msra.mxu0 0.0
    %434 = vmatpush.msra.mxu0 0.0
    %435 = vmatpush.msra.mxu0 0.0
    %436 = vmatpush.msra.mxu0 0.0
    %437 = vmatpush.msra.mxu0 0.0
    %438 = vmatpush.msra.mxu0 0.0
    %439 = vmatpush.msra.mxu0 0.0
    %440 = vmatpush.msra.mxu0 0.0
    %441 = vmatpush.msra.mxu0 0.0
    %442 = vmatpush.msra.mxu0 0.0
    %443 = vmatpush.msra.mxu0 0.0
    %444 = vmatpush.msra.mxu0 %v306
    %445 = vmatpush.msra.mxu0 %v305
    %446 = vmatpush.msra.mxu0 %v304
    %447 = vmatpush.msra.mxu0 %v303
    %448 = vmatmul.f32.gmra.mxu0 %v204
    %v449 = vpop.f32.mrf.mxu0
    %v450 = vadd.f32 %v340, %v449
    %451 = vdwg.mxu0
    %452 = vmatpush.msra.mxu0 0.0
    %453 = vmatpush.msra.mxu0 0.0
    %454 = vmatpush.msra.mxu0 0.0
    %455 = vmatpush.msra.mxu0 0.0
    %456 = vmatpush.msra.mxu0 0.0
    %457 = vmatpush.msra.mxu0 0.0
    %458 = vmatpush.msra.mxu0 0.0
    %459 = vmatpush.msra.mxu0 0.0
    %460 = vmatpush.msra.mxu0 0.0
    %461 = vmatpush.msra.mxu0 0.0
    %462 = vmatpush.msra.mxu0 0.0
    %463 = vmatpush.msra.mxu0 0.0
    %464 = vmatpush.msra.mxu0 %v310
    %465 = vmatpush.msra.mxu0 %v309
    %466 = vmatpush.msra.mxu0 %v308
    %467 = vmatpush.msra.mxu0 %v307
    %468 = vmatmul.f32.gmra.mxu0 %v204
    %v469 = vpop.f32.mrf.mxu0
    %v470 = vadd.f32 %v341, %v469
    %471 = vdwg.mxu0
    %472 = vmatpush.msra.mxu0 0.0
    %473 = vmatpush.msra.mxu0 0.0
    %474 = vmatpush.msra.mxu0 0.0
    %475 = vmatpush.msra.mxu0 0.0
    %476 = vmatpush.msra.mxu0 0.0
    %477 = vmatpush.msra.mxu0 0.0
    %478 = vmatpush.msra.mxu0 0.0
    %479 = vmatpush.msra.mxu0 0.0
    %480 = vmatpush.msra.mxu0 0.0
    %481 = vmatpush.msra.mxu0 0.0
    %482 = vmatpush.msra.mxu0 0.0
    %483 = vmatpush.msra.mxu0 0.0
    %484 = vmatpush.msra.mxu0 %v314
    %485 = vmatpush.msra.mxu0 %v313
    %486 = vmatpush.msra.mxu0 %v312
    %487 = vmatpush.msra.mxu0 %v311
    %488 = vmatmul.f32.gmra.mxu0 %v204
    %v489 = vpop.f32.mrf.mxu0
    %v490 = vadd.f32 %v342, %v489
    %491 = vdwg.mxu0
    %492 = vmatpush.msra.mxu0 0.0
    %493 = vmatpush.msra.mxu0 0.0
    %494 = vmatpush.msra.mxu0 0.0
    %495 = vmatpush.msra.mxu0 0.0
    %496 = vmatpush.msra.mxu0 0.0
    %497 = vmatpush.msra.mxu0 0.0
    %498 = vmatpush.msra.mxu0 0.0
    %499 = vmatpush.msra.mxu0 0.0
    %500 = vmatpush.msra.mxu0 0.0
    %501 = vmatpush.msra.mxu0 0.0
    %502 = vmatpush.msra.mxu0 0.0
    %503 = vmatpush.msra.mxu0 0.0
    %504 = vmatpush.msra.mxu0 %v318
    %505 = vmatpush.msra.mxu0 %v317
    %506 = vmatpush.msra.mxu0 %v316
    %507 = vmatpush.msra.mxu0 %v315
    %508 = vmatmul.f32.gmra.mxu0 %v204
    %v509 = vpop.f32.mrf.mxu0
    %v510 = vadd.f32 %v343, %v509
    %511 = vdwg.mxu0
    %s512 = scalar_lea.vmem %s2, 512
    %v513 = vld [vmem:[%s512] sm:$0xff]
    %v514 = vld [vmem:[%s512 + $0x8] sm:$0xff]
    %v515 = vld [vmem:[%s512 + $0x10] sm:$0xff]
    %v516 = vld [vmem:[%s512 + $0x18] sm:$0xff]
    %v517 = vld [vmem:[%s512 + $0x20] sm:$0xff]
    %v518 = vld [vmem:[%s512 + $0x28] sm:$0xff]
    %v519 = vld [vmem:[%s512 + $0x30] sm:$0xff]
    %v520 = vld [vmem:[%s512 + $0x38] sm:$0xff]
    %v521 = vld [vmem:[%s512 + $0x40] sm:$0xff]
    %v522 = vld [vmem:[%s512 + $0x48] sm:$0xff]
    %v523 = vld [vmem:[%s512 + $0x50] sm:$0xff]
    %v524 = vld [vmem:[%s512 + $0x58] sm:$0xff]
    %v525 = vld [vmem:[%s512 + $0x60] sm:$0xff]
    %v526 = vld [vmem:[%s512 + $0x68] sm:$0xff]
    %v527 = vld [vmem:[%s512 + $0x70] sm:$0xff]
    %v528 = vld [vmem:[%s512 + $0x78] sm:$0xff]
    %v529 = vld [vmem:[%s512 + $0x80] sm:$0xff]
    %v530 = vld [vmem:[%s512 + $0x88] sm:$0xff]
    %v531 = vld [vmem:[%s512 + $0x90] sm:$0xff]
    %v532 = vld [vmem:[%s512 + $0x98] sm:$0xff]
    %v533 = vld [vmem:[%s512 + $0xa0] sm:$0xff]
    %v534 = vld [vmem:[%s512 + $0xa8] sm:$0xff]
    %v535 = vld [vmem:[%s512 + $0xb0] sm:$0xff]
    %v536 = vld [vmem:[%s512 + $0xb8] sm:$0xff]
    %v537 = vld [vmem:[%s512 + $0xc0] sm:$0xff]
    %v538 = vld [vmem:[%s512 + $0xc8] sm:$0xff]
    %v539 = vld [vmem:[%s512 + $0xd0] sm:$0xff]
    %v540 = vld [vmem:[%s512 + $0xd8] sm:$0xff]
    %v541 = vld [vmem:[%s512 + $0xe0] sm:$0xff]
    %v542 = vld [vmem:[%s512 + $0xe8] sm:$0xff]
    %v543 = vld [vmem:[%s512 + $0xf0] sm:$0xff]
    %v544 = vld [vmem:[%s512 + $0xf8] sm:$0xff]
    %s545 = scalar_lea.vmem %s3, 16
    %v546 = vld [vmem:[%s545] sm:$0x1]
    %v547 = vld [vmem:[%s545 + $0x1] sm:$0x1]
    %v548 = vld [vmem:[%s545 + $0x2] sm:$0x1]
    %v549 = vld [vmem:[%s545 + $0x3] sm:$0x1]
    %v550 = vld [vmem:[%s545 + $0x4] sm:$0x1]
    %v551 = vld [vmem:[%s545 + $0x5] sm:$0x1]
    %v552 = vld [vmem:[%s545 + $0x6] sm:$0x1]
    %v553 = vld [vmem:[%s545 + $0x7] sm:$0x1]
    %v562 = vperm.slane %v546, 0
    %v563 = vperm.slane %v547, 0
    %v564 = vperm.slane %v548, 0
    %v565 = vperm.slane %v549, 0
    %v566 = vperm.slane %v550, 0
    %v567 = vperm.slane %v551, 0
    %v568 = vperm.slane %v552, 0
    %v569 = vperm.slane %v553, 0
    %578 = vmatpush.msra.mxu0 0.0
    %579 = vmatpush.msra.mxu0 0.0
    %580 = vmatpush.msra.mxu0 0.0
    %581 = vmatpush.msra.mxu0 0.0
    %582 = vmatpush.msra.mxu0 0.0
    %583 = vmatpush.msra.mxu0 0.0
    %584 = vmatpush.msra.mxu0 0.0
    %585 = vmatpush.msra.mxu0 0.0
    %586 = vmatpush.msra.mxu0 0.0
    %587 = vmatpush.msra.mxu0 0.0
    %588 = vmatpush.msra.mxu0 0.0
    %589 = vmatpush.msra.mxu0 0.0
    %590 = vmatpush.msra.mxu0 %v516
    %591 = vmatpush.msra.mxu0 %v515
    %592 = vmatpush.msra.mxu0 %v514
    %593 = vmatpush.msra.mxu0 %v513
    %594 = vmatmul.f32.gmra.mxu0 %v121
    %v595 = vpop.f32.mrf.mxu0
    %v596 = vadd.f32 %v562, %v595
    %597 = vdwg.mxu0
    %598 = vmatpush.msra.mxu0 0.0
    %599 = vmatpush.msra.mxu0 0.0
    %600 = vmatpush.msra.mxu0 0.0
    %601 = vmatpush.msra.mxu0 0.0
    %602 = vmatpush.msra.mxu0 0.0
    %603 = vmatpush.msra.mxu0 0.0
    %604 = vmatpush.msra.mxu0 0.0
    %605 = vmatpush.msra.mxu0 0.0
    %606 = vmatpush.msra.mxu0 0.0
    %607 = vmatpush.msra.mxu0 0.0
    %608 = vmatpush.msra.mxu0 0.0
    %609 = vmatpush.msra.mxu0 0.0
    %610 = vmatpush.msra.mxu0 %v520
    %611 = vmatpush.msra.mxu0 %v519
    %612 = vmatpush.msra.mxu0 %v518
    %613 = vmatpush.msra.mxu0 %v517
    %614 = vmatmul.f32.gmra.mxu0 %v121
    %v615 = vpop.f32.mrf.mxu0
    %v616 = vadd.f32 %v563, %v615
    %617 = vdwg.mxu0
    %618 = vmatpush.msra.mxu0 0.0
    %619 = vmatpush.msra.mxu0 0.0
    %620 = vmatpush.msra.mxu0 0.0
    %621 = vmatpush.msra.mxu0 0.0
    %622 = vmatpush.msra.mxu0 0.0
    %623 = vmatpush.msra.mxu0 0.0
    %624 = vmatpush.msra.mxu0 0.0
    %625 = vmatpush.msra.mxu0 0.0
    %626 = vmatpush.msra.mxu0 0.0
    %627 = vmatpush.msra.mxu0 0.0
    %628 = vmatpush.msra.mxu0 0.0
    %629 = vmatpush.msra.mxu0 0.0
    %630 = vmatpush.msra.mxu0 %v524
    %631 = vmatpush.msra.mxu0 %v523
    %632 = vmatpush.msra.mxu0 %v522
    %633 = vmatpush.msra.mxu0 %v521
    %634 = vmatmul.f32.gmra.mxu0 %v121
    %v635 = vpop.f32.mrf.mxu0
    %v636 = vadd.f32 %v564, %v635
    %637 = vdwg.mxu0
    %638 = vmatpush.msra.mxu0 0.0
    %639 = vmatpush.msra.mxu0 0.0
    %640 = vmatpush.msra.mxu0 0.0
    %641 = vmatpush.msra.mxu0 0.0
    %642 = vmatpush.msra.mxu0 0.0
    %643 = vmatpush.msra.mxu0 0.0
    %644 = vmatpush.msra.mxu0 0.0
    %645 = vmatpush.msra.mxu0 0.0
    %646 = vmatpush.msra.mxu0 0.0
    %647 = vmatpush.msra.mxu0 0.0
    %648 = vmatpush.msra.mxu0 0.0
    %649 = vmatpush.msra.mxu0 0.0
    %650 = vmatpush.msra.mxu0 %v528
    %651 = vmatpush.msra.mxu0 %v527
    %652 = vmatpush.msra.mxu0 %v526
    %653 = vmatpush.msra.mxu0 %v525
    %654 = vmatmul.f32.gmra.mxu0 %v121
    %v655 = vpop.f32.mrf.mxu0
    %v656 = vadd.f32 %v565, %v655
    %657 = vdwg.mxu0
    %658 = vmatpush.msra.mxu0 0.0
    %659 = vmatpush.msra.mxu0 0.0
    %660 = vmatpush.msra.mxu0 0.0
    %661 = vmatpush.msra.mxu0 0.0
    %662 = vmatpush.msra.mxu0 0.0
    %663 = vmatpush.msra.mxu0 0.0
    %664 = vmatpush.msra.mxu0 0.0
    %665 = vmatpush.msra.mxu0 0.0
    %666 = vmatpush.msra.mxu0 0.0
    %667 = vmatpush.msra.mxu0 0.0
    %668 = vmatpush.msra.mxu0 0.0
    %669 = vmatpush.msra.mxu0 0.0
    %670 = vmatpush.msra.mxu0 %v532
    %671 = vmatpush.msra.mxu0 %v531
    %672 = vmatpush.msra.mxu0 %v530
    %673 = vmatpush.msra.mxu0 %v529
    %674 = vmatmul.f32.gmra.mxu0 %v204
    %v675 = vpop.f32.mrf.mxu0
    %v676 = vadd.f32 %v566, %v675
    %677 = vdwg.mxu0
    %678 = vmatpush.msra.mxu0 0.0
    %679 = vmatpush.msra.mxu0 0.0
    %680 = vmatpush.msra.mxu0 0.0
    %681 = vmatpush.msra.mxu0 0.0
    %682 = vmatpush.msra.mxu0 0.0
    %683 = vmatpush.msra.mxu0 0.0
    %684 = vmatpush.msra.mxu0 0.0
    %685 = vmatpush.msra.mxu0 0.0
    %686 = vmatpush.msra.mxu0 0.0
    %687 = vmatpush.msra.mxu0 0.0
    %688 = vmatpush.msra.mxu0 0.0
    %689 = vmatpush.msra.mxu0 0.0
    %690 = vmatpush.msra.mxu0 %v536
    %691 = vmatpush.msra.mxu0 %v535
    %692 = vmatpush.msra.mxu0 %v534
    %693 = vmatpush.msra.mxu0 %v533
    %694 = vmatmul.f32.gmra.mxu0 %v204
    %v695 = vpop.f32.mrf.mxu0
    %v696 = vadd.f32 %v567, %v695
    %697 = vdwg.mxu0
    %698 = vmatpush.msra.mxu0 0.0
    %699 = vmatpush.msra.mxu0 0.0
    %700 = vmatpush.msra.mxu0 0.0
    %701 = vmatpush.msra.mxu0 0.0
    %702 = vmatpush.msra.mxu0 0.0
    %703 = vmatpush.msra.mxu0 0.0
    %704 = vmatpush.msra.mxu0 0.0
    %705 = vmatpush.msra.mxu0 0.0
    %706 = vmatpush.msra.mxu0 0.0
    %707 = vmatpush.msra.mxu0 0.0
    %708 = vmatpush.msra.mxu0 0.0
    %709 = vmatpush.msra.mxu0 0.0
    %710 = vmatpush.msra.mxu0 %v540
    %711 = vmatpush.msra.mxu0 %v539
    %712 = vmatpush.msra.mxu0 %v538
    %713 = vmatpush.msra.mxu0 %v537
    %714 = vmatmul.f32.gmra.mxu0 %v204
    %v715 = vpop.f32.mrf.mxu0
    %v716 = vadd.f32 %v568, %v715
    %717 = vdwg.mxu0
    %718 = vmatpush.msra.mxu0 0.0
    %719 = vmatpush.msra.mxu0 0.0
    %720 = vmatpush.msra.mxu0 0.0
    %721 = vmatpush.msra.mxu0 0.0
    %722 = vmatpush.msra.mxu0 0.0
    %723 = vmatpush.msra.mxu0 0.0
    %724 = vmatpush.msra.mxu0 0.0
    %725 = vmatpush.msra.mxu0 0.0
    %726 = vmatpush.msra.mxu0 0.0
    %727 = vmatpush.msra.mxu0 0.0
    %728 = vmatpush.msra.mxu0 0.0
    %729 = vmatpush.msra.mxu0 0.0
    %730 = vmatpush.msra.mxu0 %v544
    %731 = vmatpush.msra.mxu0 %v543
    %732 = vmatpush.msra.mxu0 %v542
    %733 = vmatpush.msra.mxu0 %v541
    %734 = vmatmul.f32.gmra.mxu0 %v204
    %v735 = vpop.f32.mrf.mxu0
    %v736 = vadd.f32 %v569, %v735
    %737 = vdwg.mxu0
    %vm738 = vcmask 64512
    %v740 = vsel %vm738, %v141, 0
    %v743 = vsel %vm738, %v370, 0
    %745 = vmatpush.xpose.msra.mxu0 0.0
    %746 = vmatpush.xpose.msra.mxu0 0.0
    %747 = vmatpush.xpose.msra.mxu0 0.0
    %748 = vmatpush.xpose.msra.mxu0 0.0
    %749 = vmatpush.xpose.msra.mxu0 0.0
    %750 = vmatpush.xpose.msra.mxu0 0.0
    %751 = vmatpush.xpose.msra.mxu0 0.0
    %752 = vmatpush.xpose.msra.mxu0 0.0
    %753 = vmatpush.xpose.msra.mxu0 0.0
    %754 = vmatpush.xpose.msra.mxu0 0.0
    %755 = vmatpush.xpose.msra.mxu0 0.0
    %756 = vmatpush.xpose.msra.mxu0 0.0
    %757 = vmatpush.xpose.msra.mxu0 0.0
    %758 = vmatpush.xpose.msra.mxu0 0.0
    %759 = vmatpush.xpose.msra.mxu0 0.0
    %760 = vmatpush.xpose.msra.mxu0 %v743
    %761 = vmatmul.f32.gmra.mxu0 %v740
    %v762 = vpop.f32.mrf.mxu0
    %v763 = vadd.f32 0.0, %v762
    %764 = vdwg.mxu0
    %v766 = vsel %vm738, %v161, 0
    %v769 = vsel %vm738, %v390, 0
    %771 = vmatpush.xpose.msra.mxu0 0.0
    %772 = vmatpush.xpose.msra.mxu0 0.0
    %773 = vmatpush.xpose.msra.mxu0 0.0
    %774 = vmatpush.xpose.msra.mxu0 0.0
    %775 = vmatpush.xpose.msra.mxu0 0.0
    %776 = vmatpush.xpose.msra.mxu0 0.0
    %777 = vmatpush.xpose.msra.mxu0 0.0
    %778 = vmatpush.xpose.msra.mxu0 0.0
    %779 = vmatpush.xpose.msra.mxu0 0.0
    %780 = vmatpush.xpose.msra.mxu0 0.0
    %781 = vmatpush.xpose.msra.mxu0 0.0
    %782 = vmatpush.xpose.msra.mxu0 0.0
    %783 = vmatpush.xpose.msra.mxu0 0.0
    %784 = vmatpush.xpose.msra.mxu0 0.0
    %785 = vmatpush.xpose.msra.mxu0 0.0
    %786 = vmatpush.xpose.msra.mxu0 %v769
    %787 = vmatmul.f32.gmra.mxu0 %v766
    %v788 = vpop.f32.mrf.mxu0
    %v789 = vadd.f32 0.0, %v788
    %790 = vdwg.mxu0
    %v792 = vsel %vm738, %v181, 0
    %v795 = vsel %vm738, %v410, 0
    %797 = vmatpush.xpose.msra.mxu0 0.0
    %798 = vmatpush.xpose.msra.mxu0 0.0
    %799 = vmatpush.xpose.msra.mxu0 0.0
    %800 = vmatpush.xpose.msra.mxu0 0.0
    %801 = vmatpush.xpose.msra.mxu0 0.0
    %802 = vmatpush.xpose.msra.mxu0 0.0
    %803 = vmatpush.xpose.msra.mxu0 0.0
    %804 = vmatpush.xpose.msra.mxu0 0.0
    %805 = vmatpush.xpose.msra.mxu0 0.0
    %806 = vmatpush.xpose.msra.mxu0 0.0
    %807 = vmatpush.xpose.msra.mxu0 0.0
    %808 = vmatpush.xpose.msra.mxu0 0.0
    %809 = vmatpush.xpose.msra.mxu0 0.0
    %810 = vmatpush.xpose.msra.mxu0 0.0
    %811 = vmatpush.xpose.msra.mxu0 0.0
    %812 = vmatpush.xpose.msra.mxu0 %v795
    %813 = vmatmul.f32.gmra.mxu0 %v792
    %v814 = vpop.f32.mrf.mxu0
    %v815 = vadd.f32 0.0, %v814
    %816 = vdwg.mxu0
    %v818 = vsel %vm738, %v201, 0
    %v821 = vsel %vm738, %v430, 0
    %823 = vmatpush.xpose.msra.mxu0 0.0
    %824 = vmatpush.xpose.msra.mxu0 0.0
    %825 = vmatpush.xpose.msra.mxu0 0.0
    %826 = vmatpush.xpose.msra.mxu0 0.0
    %827 = vmatpush.xpose.msra.mxu0 0.0
    %828 = vmatpush.xpose.msra.mxu0 0.0
    %829 = vmatpush.xpose.msra.mxu0 0.0
    %830 = vmatpush.xpose.msra.mxu0 0.0
    %831 = vmatpush.xpose.msra.mxu0 0.0
    %832 = vmatpush.xpose.msra.mxu0 0.0
    %833 = vmatpush.xpose.msra.mxu0 0.0
    %834 = vmatpush.xpose.msra.mxu0 0.0
    %835 = vmatpush.xpose.msra.mxu0 0.0
    %836 = vmatpush.xpose.msra.mxu0 0.0
    %837 = vmatpush.xpose.msra.mxu0 0.0
    %838 = vmatpush.xpose.msra.mxu0 %v821
    %839 = vmatmul.f32.gmra.mxu0 %v818
    %v840 = vpop.f32.mrf.mxu0
    %v841 = vadd.f32 0.0, %v840
    %842 = vdwg.mxu0
    %v844 = vsel %vm738, %v224, 0
    %v847 = vsel %vm738, %v450, 0
    %849 = vmatpush.xpose.msra.mxu0 0.0
    %850 = vmatpush.xpose.msra.mxu0 0.0
    %851 = vmatpush.xpose.msra.mxu0 0.0
    %852 = vmatpush.xpose.msra.mxu0 0.0
    %853 = vmatpush.xpose.msra.mxu0 0.0
    %854 = vmatpush.xpose.msra.mxu0 0.0
    %855 = vmatpush.xpose.msra.mxu0 0.0
    %856 = vmatpush.xpose.msra.mxu0 0.0
    %857 = vmatpush.xpose.msra.mxu0 0.0
    %858 = vmatpush.xpose.msra.mxu0 0.0
    %859 = vmatpush.xpose.msra.mxu0 0.0
    %860 = vmatpush.xpose.msra.mxu0 0.0
    %861 = vmatpush.xpose.msra.mxu0 0.0
    %862 = vmatpush.xpose.msra.mxu0 0.0
    %863 = vmatpush.xpose.msra.mxu0 0.0
    %864 = vmatpush.xpose.msra.mxu0 %v847
    %865 = vmatmul.f32.gmra.mxu0 %v844
    %v866 = vpop.f32.mrf.mxu0
    %v867 = vadd.f32 0.0, %v866
    %868 = vdwg.mxu0
    %v870 = vsel %vm738, %v244, 0
    %v873 = vsel %vm738, %v470, 0
    %875 = vmatpush.xpose.msra.mxu0 0.0
    %876 = vmatpush.xpose.msra.mxu0 0.0
    %877 = vmatpush.xpose.msra.mxu0 0.0
    %878 = vmatpush.xpose.msra.mxu0 0.0
    %879 = vmatpush.xpose.msra.mxu0 0.0
    %880 = vmatpush.xpose.msra.mxu0 0.0
    %881 = vmatpush.xpose.msra.mxu0 0.0
    %882 = vmatpush.xpose.msra.mxu0 0.0
    %883 = vmatpush.xpose.msra.mxu0 0.0
    %884 = vmatpush.xpose.msra.mxu0 0.0
    %885 = vmatpush.xpose.msra.mxu0 0.0
    %886 = vmatpush.xpose.msra.mxu0 0.0
    %887 = vmatpush.xpose.msra.mxu0 0.0
    %888 = vmatpush.xpose.msra.mxu0 0.0
    %889 = vmatpush.xpose.msra.mxu0 0.0
    %890 = vmatpush.xpose.msra.mxu0 %v873
    %891 = vmatmul.f32.gmra.mxu0 %v870
    %v892 = vpop.f32.mrf.mxu0
    %v893 = vadd.f32 0.0, %v892
    %894 = vdwg.mxu0
    %v896 = vsel %vm738, %v264, 0
    %v899 = vsel %vm738, %v490, 0
    %901 = vmatpush.xpose.msra.mxu0 0.0
    %902 = vmatpush.xpose.msra.mxu0 0.0
    %903 = vmatpush.xpose.msra.mxu0 0.0
    %904 = vmatpush.xpose.msra.mxu0 0.0
    %905 = vmatpush.xpose.msra.mxu0 0.0
    %906 = vmatpush.xpose.msra.mxu0 0.0
    %907 = vmatpush.xpose.msra.mxu0 0.0
    %908 = vmatpush.xpose.msra.mxu0 0.0
    %909 = vmatpush.xpose.msra.mxu0 0.0
    %910 = vmatpush.xpose.msra.mxu0 0.0
    %911 = vmatpush.xpose.msra.mxu0 0.0
    %912 = vmatpush.xpose.msra.mxu0 0.0
    %913 = vmatpush.xpose.msra.mxu0 0.0
    %914 = vmatpush.xpose.msra.mxu0 0.0
    %915 = vmatpush.xpose.msra.mxu0 0.0
    %916 = vmatpush.xpose.msra.mxu0 %v899
    %917 = vmatmul.f32.gmra.mxu0 %v896
    %v918 = vpop.f32.mrf.mxu0
    %v919 = vadd.f32 0.0, %v918
    %920 = vdwg.mxu0
    %v922 = vsel %vm738, %v284, 0
    %v925 = vsel %vm738, %v510, 0
    %927 = vmatpush.xpose.msra.mxu0 0.0
    %928 = vmatpush.xpose.msra.mxu0 0.0
    %929 = vmatpush.xpose.msra.mxu0 0.0
    %930 = vmatpush.xpose.msra.mxu0 0.0
    %931 = vmatpush.xpose.msra.mxu0 0.0
    %932 = vmatpush.xpose.msra.mxu0 0.0
    %933 = vmatpush.xpose.msra.mxu0 0.0
    %934 = vmatpush.xpose.msra.mxu0 0.0
    %935 = vmatpush.xpose.msra.mxu0 0.0
    %936 = vmatpush.xpose.msra.mxu0 0.0
    %937 = vmatpush.xpose.msra.mxu0 0.0
    %938 = vmatpush.xpose.msra.mxu0 0.0
    %939 = vmatpush.xpose.msra.mxu0 0.0
    %940 = vmatpush.xpose.msra.mxu0 0.0
    %941 = vmatpush.xpose.msra.mxu0 0.0
    %942 = vmatpush.xpose.msra.mxu0 %v925
    %943 = vmatmul.f32.gmra.mxu0 %v922
    %v944 = vpop.f32.mrf.mxu0
    %v945 = vadd.f32 0.0, %v944
    %946 = vdwg.mxu0
    %v947 = vmul.f32 %v763, 0.35355338
    %v948 = vmul.f32 %v789, 0.35355338
    %v949 = vmul.f32 %v815, 0.35355338
    %v950 = vmul.f32 %v841, 0.35355338
    %v951 = vmul.f32 %v867, 0.35355338
    %v952 = vmul.f32 %v893, 0.35355338
    %v953 = vmul.f32 %v919, 0.35355338
    %v954 = vmul.f32 %v945, 0.35355338
    %v963 = vperm.slane %v47, 0
    %v964 = vperm.slane %v48, 0
    %v965 = vperm.slane %v49, 0
    %v966 = vperm.slane %v50, 0
    %v967 = vperm.slane %v51, 0
    %v968 = vperm.slane %v52, 0
    %v969 = vperm.slane %v53, 0
    %v970 = vperm.slane %v54, 0
    %v979 = vadd.f32 %v947, %v963
    %v980 = vadd.f32 %v948, %v964
    %v981 = vadd.f32 %v949, %v965
    %v982 = vadd.f32 %v950, %v966
    %v983 = vadd.f32 %v951, %v967
    %v984 = vadd.f32 %v952, %v968
    %v985 = vadd.f32 %v953, %v969
    %v986 = vadd.f32 %v954, %v970
    %v987 = vsel %vm738, %v979, -inf
    %988 = vmax.xlane.f32.xlu0 %v987
    %v989 = vpop.xlane.xlu0 %988
    %v990 = vsel %vm738, %v980, -inf
    %991 = vmax.xlane.f32.xlu0 %v990
    %v992 = vpop.xlane.xlu0 %991
    %v993 = vsel %vm738, %v981, -inf
    %994 = vmax.xlane.f32.xlu0 %v993
    %v995 = vpop.xlane.xlu0 %994
    %v996 = vsel %vm738, %v982, -inf
    %997 = vmax.xlane.f32.xlu0 %v996
    %v998 = vpop.xlane.xlu0 %997
    %v999 = vsel %vm738, %v983, -inf
    %1000 = vmax.xlane.f32.xlu0 %v999
    %v1001 = vpop.xlane.xlu0 %1000
    %v1002 = vsel %vm738, %v984, -inf
    %1003 = vmax.xlane.f32.xlu0 %v1002
    %v1004 = vpop.xlane.xlu0 %1003
    %v1005 = vsel %vm738, %v985, -inf
    %1006 = vmax.xlane.f32.xlu0 %v1005
    %v1007 = vpop.xlane.xlu0 %1006
    %v1008 = vsel %vm738, %v986, -inf
    %1009 = vmax.xlane.f32.xlu0 %v1008
    %v1010 = vpop.xlane.xlu0 %1009
    %v1011 = vsub.f32 %v979, %v989
    %v1012 = vsub.f32 %v980, %v992
    %v1013 = vsub.f32 %v981, %v995
    %v1014 = vsub.f32 %v982, %v998
    %v1015 = vsub.f32 %v983, %v1001
    %v1016 = vsub.f32 %v984, %v1004
    %v1017 = vsub.f32 %v985, %v1007
    %v1018 = vsub.f32 %v986, %v1010
    %v1019 = vmul.f32 %v1011, 1.442695
    %v1020 = vpow.pop %v1019
    %v1021 = vmul.f32 %v1012, 1.442695
    %v1022 = vpow.pop %v1021
    %v1023 = vmul.f32 %v1013, 1.442695
    %v1024 = vpow.pop %v1023
    %v1025 = vmul.f32 %v1014, 1.442695
    %v1026 = vpow.pop %v1025
    %v1027 = vmul.f32 %v1015, 1.442695
    %v1028 = vpow.pop %v1027
    %v1029 = vmul.f32 %v1016, 1.442695
    %v1030 = vpow.pop %v1029
    %v1031 = vmul.f32 %v1017, 1.442695
    %v1032 = vpow.pop %v1031
    %v1033 = vmul.f32 %v1018, 1.442695
    %v1034 = vpow.pop %v1033
    %v1035 = vsel %vm738, %v1020, 0.0
    %1036 = vadd.xlane.f32.xlu0 %v1035
    %v1037 = vpop.xlane.xlu0 %1036
    %v1038 = vsel %vm738, %v1022, 0.0
    %1039 = vadd.xlane.f32.xlu0 %v1038
    %v1040 = vpop.xlane.xlu0 %1039
    %v1041 = vsel %vm738, %v1024, 0.0
    %1042 = vadd.xlane.f32.xlu0 %v1041
    %v1043 = vpop.xlane.xlu0 %1042
    %v1044 = vsel %vm738, %v1026, 0.0
    %1045 = vadd.xlane.f32.xlu0 %v1044
    %v1046 = vpop.xlane.xlu0 %1045
    %v1047 = vsel %vm738, %v1028, 0.0
    %1048 = vadd.xlane.f32.xlu0 %v1047
    %v1049 = vpop.xlane.xlu0 %1048
    %v1050 = vsel %vm738, %v1030, 0.0
    %1051 = vadd.xlane.f32.xlu0 %v1050
    %v1052 = vpop.xlane.xlu0 %1051
    %v1053 = vsel %vm738, %v1032, 0.0
    %1054 = vadd.xlane.f32.xlu0 %v1053
    %v1055 = vpop.xlane.xlu0 %1054
    %v1056 = vsel %vm738, %v1034, 0.0
    %1057 = vadd.xlane.f32.xlu0 %v1056
    %v1058 = vpop.xlane.xlu0 %1057
    %v1059 = vrcp.pop %v1037
    %v1060 = vrcp.pop %v1040
    %v1061 = vrcp.pop %v1043
    %v1062 = vrcp.pop %v1046
    %v1063 = vrcp.pop %v1049
    %v1064 = vrcp.pop %v1052
    %v1065 = vrcp.pop %v1055
    %v1066 = vrcp.pop %v1058
    %v1067 = vmul.f32 %v1020, %v1059
    %v1068 = vmul.f32 %v1022, %v1060
    %v1069 = vmul.f32 %v1024, %v1061
    %v1070 = vmul.f32 %v1026, %v1062
    %v1071 = vmul.f32 %v1028, %v1063
    %v1072 = vmul.f32 %v1030, %v1064
    %v1073 = vmul.f32 %v1032, %v1065
    %v1074 = vmul.f32 %v1034, %v1066
    %v1076 = vsel %vm738, %v1067, 0
    %1078 = vmatpush.msra.mxu0 0.0
    %1079 = vmatpush.msra.mxu0 0.0
    %1080 = vmatpush.msra.mxu0 0.0
    %1081 = vmatpush.msra.mxu0 0.0
    %1082 = vmatpush.msra.mxu0 0.0
    %1083 = vmatpush.msra.mxu0 0.0
    %1084 = vmatpush.msra.mxu0 0.0
    %1085 = vmatpush.msra.mxu0 0.0
    %1086 = vmatpush.msra.mxu0 0.0
    %1087 = vmatpush.msra.mxu0 0.0
    %1088 = vmatpush.msra.mxu0 0.0
    %1089 = vmatpush.msra.mxu0 0.0
    %1090 = vmatpush.msra.mxu0 0.0
    %1091 = vmatpush.msra.mxu0 0.0
    %1092 = vmatpush.msra.mxu0 0.0
    %1093 = vmatpush.msra.mxu0 %v596
    %1094 = vmatmul.f32.gmra.mxu0 %v1076
    %v1095 = vpop.f32.mrf.mxu0
    %v1096 = vadd.f32 0.0, %v1095
    %1097 = vdwg.mxu0
    %v1099 = vsel %vm738, %v1068, 0
    %1101 = vmatpush.msra.mxu0 0.0
    %1102 = vmatpush.msra.mxu0 0.0
    %1103 = vmatpush.msra.mxu0 0.0
    %1104 = vmatpush.msra.mxu0 0.0
    %1105 = vmatpush.msra.mxu0 0.0
    %1106 = vmatpush.msra.mxu0 0.0
    %1107 = vmatpush.msra.mxu0 0.0
    %1108 = vmatpush.msra.mxu0 0.0
    %1109 = vmatpush.msra.mxu0 0.0
    %1110 = vmatpush.msra.mxu0 0.0
    %1111 = vmatpush.msra.mxu0 0.0
    %1112 = vmatpush.msra.mxu0 0.0
    %1113 = vmatpush.msra.mxu0 0.0
    %1114 = vmatpush.msra.mxu0 0.0
    %1115 = vmatpush.msra.mxu0 0.0
    %1116 = vmatpush.msra.mxu0 %v616
    %1117 = vmatmul.f32.gmra.mxu0 %v1099
    %v1118 = vpop.f32.mrf.mxu0
    %v1119 = vadd.f32 0.0, %v1118
    %1120 = vdwg.mxu0
    %v1122 = vsel %vm738, %v1069, 0
    %1124 = vmatpush.msra.mxu0 0.0
    %1125 = vmatpush.msra.mxu0 0.0
    %1126 = vmatpush.msra.mxu0 0.0
    %1127 = vmatpush.msra.mxu0 0.0
    %1128 = vmatpush.msra.mxu0 0.0
    %1129 = vmatpush.msra.mxu0 0.0
    %1130 = vmatpush.msra.mxu0 0.0
    %1131 = vmatpush.msra.mxu0 0.0
    %1132 = vmatpush.msra.mxu0 0.0
    %1133 = vmatpush.msra.mxu0 0.0
    %1134 = vmatpush.msra.mxu0 0.0
    %1135 = vmatpush.msra.mxu0 0.0
    %1136 = vmatpush.msra.mxu0 0.0
    %1137 = vmatpush.msra.mxu0 0.0
    %1138 = vmatpush.msra.mxu0 0.0
    %1139 = vmatpush.msra.mxu0 %v636
    %1140 = vmatmul.f32.gmra.mxu0 %v1122
    %v1141 = vpop.f32.mrf.mxu0
    %v1142 = vadd.f32 0.0, %v1141
    %1143 = vdwg.mxu0
    %v1145 = vsel %vm738, %v1070, 0
    %1147 = vmatpush.msra.mxu0 0.0
    %1148 = vmatpush.msra.mxu0 0.0
    %1149 = vmatpush.msra.mxu0 0.0
    %1150 = vmatpush.msra.mxu0 0.0
    %1151 = vmatpush.msra.mxu0 0.0
    %1152 = vmatpush.msra.mxu0 0.0
    %1153 = vmatpush.msra.mxu0 0.0
    %1154 = vmatpush.msra.mxu0 0.0
    %1155 = vmatpush.msra.mxu0 0.0
    %1156 = vmatpush.msra.mxu0 0.0
    %1157 = vmatpush.msra.mxu0 0.0
    %1158 = vmatpush.msra.mxu0 0.0
    %1159 = vmatpush.msra.mxu0 0.0
    %1160 = vmatpush.msra.mxu0 0.0
    %1161 = vmatpush.msra.mxu0 0.0
    %1162 = vmatpush.msra.mxu0 %v656
    %1163 = vmatmul.f32.gmra.mxu0 %v1145
    %v1164 = vpop.f32.mrf.mxu0
    %v1165 = vadd.f32 0.0, %v1164
    %1166 = vdwg.mxu0
    %v1168 = vsel %vm738, %v1071, 0
    %1170 = vmatpush.msra.mxu0 0.0
    %1171 = vmatpush.msra.mxu0 0.0
    %1172 = vmatpush.msra.mxu0 0.0
    %1173 = vmatpush.msra.mxu0 0.0
    %1174 = vmatpush.msra.mxu0 0.0
    %1175 = vmatpush.msra.mxu0 0.0
    %1176 = vmatpush.msra.mxu0 0.0
    %1177 = vmatpush.msra.mxu0 0.0
    %1178 = vmatpush.msra.mxu0 0.0
    %1179 = vmatpush.msra.mxu0 0.0
    %1180 = vmatpush.msra.mxu0 0.0
    %1181 = vmatpush.msra.mxu0 0.0
    %1182 = vmatpush.msra.mxu0 0.0
    %1183 = vmatpush.msra.mxu0 0.0
    %1184 = vmatpush.msra.mxu0 0.0
    %1185 = vmatpush.msra.mxu0 %v676
    %1186 = vmatmul.f32.gmra.mxu0 %v1168
    %v1187 = vpop.f32.mrf.mxu0
    %v1188 = vadd.f32 0.0, %v1187
    %1189 = vdwg.mxu0
    %v1191 = vsel %vm738, %v1072, 0
    %1193 = vmatpush.msra.mxu0 0.0
    %1194 = vmatpush.msra.mxu0 0.0
    %1195 = vmatpush.msra.mxu0 0.0
    %1196 = vmatpush.msra.mxu0 0.0
    %1197 = vmatpush.msra.mxu0 0.0
    %1198 = vmatpush.msra.mxu0 0.0
    %1199 = vmatpush.msra.mxu0 0.0
    %1200 = vmatpush.msra.mxu0 0.0
    %1201 = vmatpush.msra.mxu0 0.0
    %1202 = vmatpush.msra.mxu0 0.0
    %1203 = vmatpush.msra.mxu0 0.0
    %1204 = vmatpush.msra.mxu0 0.0
    %1205 = vmatpush.msra.mxu0 0.0
    %1206 = vmatpush.msra.mxu0 0.0
    %1207 = vmatpush.msra.mxu0 0.0
    %1208 = vmatpush.msra.mxu0 %v696
    %1209 = vmatmul.f32.gmra.mxu0 %v1191
    %v1210 = vpop.f32.mrf.mxu0
    %v1211 = vadd.f32 0.0, %v1210
    %1212 = vdwg.mxu0
    %v1214 = vsel %vm738, %v1073, 0
    %1216 = vmatpush.msra.mxu0 0.0
    %1217 = vmatpush.msra.mxu0 0.0
    %1218 = vmatpush.msra.mxu0 0.0
    %1219 = vmatpush.msra.mxu0 0.0
    %1220 = vmatpush.msra.mxu0 0.0
    %1221 = vmatpush.msra.mxu0 0.0
    %1222 = vmatpush.msra.mxu0 0.0
    %1223 = vmatpush.msra.mxu0 0.0
    %1224 = vmatpush.msra.mxu0 0.0
    %1225 = vmatpush.msra.mxu0 0.0
    %1226 = vmatpush.msra.mxu0 0.0
    %1227 = vmatpush.msra.mxu0 0.0
    %1228 = vmatpush.msra.mxu0 0.0
    %1229 = vmatpush.msra.mxu0 0.0
    %1230 = vmatpush.msra.mxu0 0.0
    %1231 = vmatpush.msra.mxu0 %v716
    %1232 = vmatmul.f32.gmra.mxu0 %v1214
    %v1233 = vpop.f32.mrf.mxu0
    %v1234 = vadd.f32 0.0, %v1233
    %1235 = vdwg.mxu0
    %v1237 = vsel %vm738, %v1074, 0
    %1239 = vmatpush.msra.mxu0 0.0
    %1240 = vmatpush.msra.mxu0 0.0
    %1241 = vmatpush.msra.mxu0 0.0
    %1242 = vmatpush.msra.mxu0 0.0
    %1243 = vmatpush.msra.mxu0 0.0
    %1244 = vmatpush.msra.mxu0 0.0
    %1245 = vmatpush.msra.mxu0 0.0
    %1246 = vmatpush.msra.mxu0 0.0
    %1247 = vmatpush.msra.mxu0 0.0
    %1248 = vmatpush.msra.mxu0 0.0
    %1249 = vmatpush.msra.mxu0 0.0
    %1250 = vmatpush.msra.mxu0 0.0
    %1251 = vmatpush.msra.mxu0 0.0
    %1252 = vmatpush.msra.mxu0 0.0
    %1253 = vmatpush.msra.mxu0 0.0
    %1254 = vmatpush.msra.mxu0 %v736
    %1255 = vmatmul.f32.gmra.mxu0 %v1237
    %v1256 = vpop.f32.mrf.mxu0
    %v1257 = vadd.f32 0.0, %v1256
    %1258 = vdwg.mxu0
    %v1259 = vld [vmem:[%s4] sm:$0xff]
    %v1260 = vld [vmem:[%s4 + $0x8] sm:$0xff]
    %v1261 = vld [vmem:[%s4 + $0x10] sm:$0xff]
    %v1262 = vld [vmem:[%s4 + $0x18] sm:$0xff]
    %v1263 = vld [vmem:[%s4 + $0x20] sm:$0xff]
    %v1264 = vld [vmem:[%s4 + $0x28] sm:$0xff]
    %v1265 = vld [vmem:[%s4 + $0x30] sm:$0xff]
    %v1266 = vld [vmem:[%s4 + $0x38] sm:$0xff]
    %v1268 = vsel %vm738, %v1096, 0
    %1270 = vmatpush.msra.mxu0 0.0
    %1271 = vmatpush.msra.mxu0 0.0
    %1272 = vmatpush.msra.mxu0 0.0
    %1273 = vmatpush.msra.mxu0 0.0
    %1274 = vmatpush.msra.mxu0 0.0
    %1275 = vmatpush.msra.mxu0 0.0
    %1276 = vmatpush.msra.mxu0 0.0
    %1277 = vmatpush.msra.mxu0 0.0
    %1278 = vmatpush.msra.mxu0 0.0
    %1279 = vmatpush.msra.mxu0 0.0
    %1280 = vmatpush.msra.mxu0 0.0
    %1281 = vmatpush.msra.mxu0 0.0
    %1282 = vmatpush.msra.mxu0 0.0
    %1283 = vmatpush.msra.mxu0 0.0
    %1284 = vmatpush.msra.mxu0 0.0
    %1285 = vmatpush.msra.mxu0 %v1259
    %1286 = vmatmul.f32.gmra.mxu0 %v1268
    %v1287 = vpop.f32.mrf.mxu0
    %v1288 = vadd.f32 0.0, %v1287
    %1289 = vdwg.mxu0
    %v1291 = vsel %vm738, %v1119, 0
    %1293 = vmatpush.msra.mxu0 0.0
    %1294 = vmatpush.msra.mxu0 0.0
    %1295 = vmatpush.msra.mxu0 0.0
    %1296 = vmatpush.msra.mxu0 0.0
    %1297 = vmatpush.msra.mxu0 0.0
    %1298 = vmatpush.msra.mxu0 0.0
    %1299 = vmatpush.msra.mxu0 0.0
    %1300 = vmatpush.msra.mxu0 0.0
    %1301 = vmatpush.msra.mxu0 0.0
    %1302 = vmatpush.msra.mxu0 0.0
    %1303 = vmatpush.msra.mxu0 0.0
    %1304 = vmatpush.msra.mxu0 0.0
    %1305 = vmatpush.msra.mxu0 0.0
    %1306 = vmatpush.msra.mxu0 0.0
    %1307 = vmatpush.msra.mxu0 0.0
    %1308 = vmatpush.msra.mxu0 %v1260
    %1309 = vmatmul.f32.gmra.mxu0 %v1291
    %v1310 = vpop.f32.mrf.mxu0
    %v1311 = vadd.f32 0.0, %v1310
    %1312 = vdwg.mxu0
    %v1314 = vsel %vm738, %v1142, 0
    %1316 = vmatpush.msra.mxu0 0.0
    %1317 = vmatpush.msra.mxu0 0.0
    %1318 = vmatpush.msra.mxu0 0.0
    %1319 = vmatpush.msra.mxu0 0.0
    %1320 = vmatpush.msra.mxu0 0.0
    %1321 = vmatpush.msra.mxu0 0.0
    %1322 = vmatpush.msra.mxu0 0.0
    %1323 = vmatpush.msra.mxu0 0.0
    %1324 = vmatpush.msra.mxu0 0.0
    %1325 = vmatpush.msra.mxu0 0.0
    %1326 = vmatpush.msra.mxu0 0.0
    %1327 = vmatpush.msra.mxu0 0.0
    %1328 = vmatpush.msra.mxu0 0.0
    %1329 = vmatpush.msra.mxu0 0.0
    %1330 = vmatpush.msra.mxu0 0.0
    %1331 = vmatpush.msra.mxu0 %v1261
    %1332 = vmatmul.f32.gmra.mxu0 %v1314
    %v1333 = vpop.f32.mrf.mxu0
    %v1334 = vadd.f32 0.0, %v1333
    %1335 = vdwg.mxu0
    %v1337 = vsel %vm738, %v1165, 0
    %1339 = vmatpush.msra.mxu0 0.0
    %1340 = vmatpush.msra.mxu0 0.0
    %1341 = vmatpush.msra.mxu0 0.0
    %1342 = vmatpush.msra.mxu0 0.0
    %1343 = vmatpush.msra.mxu0 0.0
    %1344 = vmatpush.msra.mxu0 0.0
    %1345 = vmatpush.msra.mxu0 0.0
    %1346 = vmatpush.msra.mxu0 0.0
    %1347 = vmatpush.msra.mxu0 0.0
    %1348 = vmatpush.msra.mxu0 0.0
    %1349 = vmatpush.msra.mxu0 0.0
    %1350 = vmatpush.msra.mxu0 0.0
    %1351 = vmatpush.msra.mxu0 0.0
    %1352 = vmatpush.msra.mxu0 0.0
    %1353 = vmatpush.msra.mxu0 0.0
    %1354 = vmatpush.msra.mxu0 %v1262
    %1355 = vmatmul.f32.gmra.mxu0 %v1337
    %v1356 = vpop.f32.mrf.mxu0
    %v1357 = vadd.f32 0.0, %v1356
    %1358 = vdwg.mxu0
    %v1360 = vsel %vm738, %v1188, 0
    %1362 = vmatpush.msra.mxu0 0.0
    %1363 = vmatpush.msra.mxu0 0.0
    %1364 = vmatpush.msra.mxu0 0.0
    %1365 = vmatpush.msra.mxu0 0.0
    %1366 = vmatpush.msra.mxu0 0.0
    %1367 = vmatpush.msra.mxu0 0.0
    %1368 = vmatpush.msra.mxu0 0.0
    %1369 = vmatpush.msra.mxu0 0.0
    %1370 = vmatpush.msra.mxu0 0.0
    %1371 = vmatpush.msra.mxu0 0.0
    %1372 = vmatpush.msra.mxu0 0.0
    %1373 = vmatpush.msra.mxu0 0.0
    %1374 = vmatpush.msra.mxu0 0.0
    %1375 = vmatpush.msra.mxu0 0.0
    %1376 = vmatpush.msra.mxu0 0.0
    %1377 = vmatpush.msra.mxu0 %v1263
    %1378 = vmatmul.f32.gmra.mxu0 %v1360
    %v1379 = vpop.f32.mrf.mxu0
    %v1380 = vadd.f32 0.0, %v1379
    %1381 = vdwg.mxu0
    %v1383 = vsel %vm738, %v1211, 0
    %1385 = vmatpush.msra.mxu0 0.0
    %1386 = vmatpush.msra.mxu0 0.0
    %1387 = vmatpush.msra.mxu0 0.0
    %1388 = vmatpush.msra.mxu0 0.0
    %1389 = vmatpush.msra.mxu0 0.0
    %1390 = vmatpush.msra.mxu0 0.0
    %1391 = vmatpush.msra.mxu0 0.0
    %1392 = vmatpush.msra.mxu0 0.0
    %1393 = vmatpush.msra.mxu0 0.0
    %1394 = vmatpush.msra.mxu0 0.0
    %1395 = vmatpush.msra.mxu0 0.0
    %1396 = vmatpush.msra.mxu0 0.0
    %1397 = vmatpush.msra.mxu0 0.0
    %1398 = vmatpush.msra.mxu0 0.0
    %1399 = vmatpush.msra.mxu0 0.0
    %1400 = vmatpush.msra.mxu0 %v1264
    %1401 = vmatmul.f32.gmra.mxu0 %v1383
    %v1402 = vpop.f32.mrf.mxu0
    %v1403 = vadd.f32 0.0, %v1402
    %1404 = vdwg.mxu0
    %v1406 = vsel %vm738, %v1234, 0
    %1408 = vmatpush.msra.mxu0 0.0
    %1409 = vmatpush.msra.mxu0 0.0
    %1410 = vmatpush.msra.mxu0 0.0
    %1411 = vmatpush.msra.mxu0 0.0
    %1412 = vmatpush.msra.mxu0 0.0
    %1413 = vmatpush.msra.mxu0 0.0
    %1414 = vmatpush.msra.mxu0 0.0
    %1415 = vmatpush.msra.mxu0 0.0
    %1416 = vmatpush.msra.mxu0 0.0
    %1417 = vmatpush.msra.mxu0 0.0
    %1418 = vmatpush.msra.mxu0 0.0
    %1419 = vmatpush.msra.mxu0 0.0
    %1420 = vmatpush.msra.mxu0 0.0
    %1421 = vmatpush.msra.mxu0 0.0
    %1422 = vmatpush.msra.mxu0 0.0
    %1423 = vmatpush.msra.mxu0 %v1265
    %1424 = vmatmul.f32.gmra.mxu0 %v1406
    %v1425 = vpop.f32.mrf.mxu0
    %v1426 = vadd.f32 0.0, %v1425
    %1427 = vdwg.mxu0
    %v1429 = vsel %vm738, %v1257, 0
    %1431 = vmatpush.msra.mxu0 0.0
    %1432 = vmatpush.msra.mxu0 0.0
    %1433 = vmatpush.msra.mxu0 0.0
    %1434 = vmatpush.msra.mxu0 0.0
    %1435 = vmatpush.msra.mxu0 0.0
    %1436 = vmatpush.msra.mxu0 0.0
    %1437 = vmatpush.msra.mxu0 0.0
    %1438 = vmatpush.msra.mxu0 0.0
    %1439 = vmatpush.msra.mxu0 0.0
    %1440 = vmatpush.msra.mxu0 0.0
    %1441 = vmatpush.msra.mxu0 0.0
    %1442 = vmatpush.msra.mxu0 0.0
    %1443 = vmatpush.msra.mxu0 0.0
    %1444 = vmatpush.msra.mxu0 0.0
    %1445 = vmatpush.msra.mxu0 0.0
    %1446 = vmatpush.msra.mxu0 %v1266
    %1447 = vmatmul.f32.gmra.mxu0 %v1429
    %v1448 = vpop.f32.mrf.mxu0
    %v1449 = vadd.f32 0.0, %v1448
    %1450 = vdwg.mxu0
    %v1451 = vsel %vm119, %v1288, 0.0
    %v1452 = vsel %vm119, %v1311, 0.0
    %v1453 = vadd.f32 %v1451, %v1452
    %v1454 = vsel %vm119, %v1334, 0.0
    %v1455 = vadd.f32 %v1453, %v1454
    %v1456 = vsel %vm119, %v1357, 0.0
    %v1457 = vadd.f32 %v1455, %v1456
    %v1458 = vsel %vm119, %v1380, 0.0
    %v1459 = vsel %vm119, %v1403, 0.0
    %v1460 = vadd.f32 %v1458, %v1459
    %v1461 = vsel %vm119, %v1426, 0.0
    %v1462 = vadd.f32 %v1460, %v1461
    %v1463 = vsel %vm119, %v1449, 0.0
    %v1464 = vadd.f32 %v1462, %v1463
    %v1465 = vld [vmem:[%s8] sm:$0x3f]
    %v1466 = vadd.f32 %v45, %v1457
    %v1467 = vadd.f32 %v46, %v1464
    %v1468 = vperm.slane %v1465, 0
    %v1469 = vadd.f32 %v1466, %v1468
    %v1470 = vadd.f32 %v1467, %v1468
    %v1471 = vsel %vm119, %v1469, 0.0
    %1472 = vadd.xlane.f32.xlu0 %v1471
    %v1473 = vpop.xlane.xlu0 %1472
    %v1474 = vsel %vm119, %v1470, 0.0
    %1475 = vadd.xlane.f32.xlu0 %v1474
    %v1476 = vpop.xlane.xlu0 %1475
    %v1477 = vrcp.pop 32.0
    %v1478 = vmul.f32 32.0, %v1477
    %v1479 = vsub.f32 1.0, %v1478
    %v1480 = vmul.f32 %v1477, %v1479
    %v1481 = vadd.f32 %v1477, %v1480
    %vm1482 = vweird.f32 %v1477
    %v1483 = vsel %vm1482, %v1477, %v1481
    %v1484 = vmul.f32 %v1473, %v1483
    %v1485 = vmul.f32 %v1476, %v1483
    %v1486 = vsub.f32 %v1469, %v1484
    %v1487 = vsub.f32 %v1470, %v1485
    %v1488 = vmul.f32 %v1486, %v1486
    %v1489 = vmul.f32 %v1487, %v1487
    %v1490 = vsel %vm119, %v1488, 0.0
    %1491 = vadd.xlane.f32.xlu0 %v1490
    %v1492 = vpop.xlane.xlu0 %1491
    %v1493 = vsel %vm119, %v1489, 0.0
    %1494 = vadd.xlane.f32.xlu0 %v1493
    %v1495 = vpop.xlane.xlu0 %1494
    %v1496 = vmul.f32 %v1492, %v1483
    %v1497 = vmul.f32 %v1495, %v1483
    %v1498 = vadd.f32 %v1496, 1e-05
    %v1499 = vadd.f32 %v1497, 1e-05
    %v1500 = vrsqrt.pop %v1498
    %v1501 = vmul.f32 %v1500, %v1498
    %v1502 = vmul.f32 %v1501, %v1500
    %v1503 = vmul.f32 0.5, %v1502
    %v1504 = vsub.f32 1.5, %v1503
    %v1505 = vmul.f32 %v1500, %v1504
    %vm1506 = vweird.f32 %v1498
    %vm1507 = vweird.f32 %v1500
    %vm1508 = vmor %vm1506, %vm1507
    %v1509 = vsel %vm1508, %v1500, %v1505
    %v1510 = vrsqrt.pop %v1499
    %v1511 = vmul.f32 %v1510, %v1499
    %v1512 = vmul.f32 %v1511, %v1510
    %v1513 = vmul.f32 0.5, %v1512
    %v1514 = vsub.f32 1.5, %v1513
    %v1515 = vmul.f32 %v1510, %v1514
    %vm1516 = vweird.f32 %v1499
    %vm1517 = vweird.f32 %v1510
    %vm1518 = vmor %vm1516, %vm1517
    %v1519 = vsel %vm1518, %v1510, %v1515
    %v1520 = vmul.f32 %v1486, %v1509
    %v1521 = vmul.f32 %v1487, %v1519
    %v1522 = vperm.slane %v1465, 1
    %v1523 = vmul.f32 %v1520, %v1522
    %v1524 = vmul.f32 %v1521, %v1522
    %v1525 = vperm.slane %v1465, 2
    %v1526 = vadd.f32 %v1523, %v1525
    %v1527 = vadd.f32 %v1524, %v1525
    %v1528 = vld [vmem:[%s5] sm:$0xff]
    %v1529 = vld [vmem:[%s5 + $0x8] sm:$0xff]
    %v1530 = vld [vmem:[%s5 + $0x10] sm:$0xff]
    %v1531 = vld [vmem:[%s5 + $0x18] sm:$0xff]
    %v1532 = vld [vmem:[%s5 + $0x20] sm:$0xff]
    %v1533 = vld [vmem:[%s5 + $0x28] sm:$0xff]
    %v1534 = vld [vmem:[%s5 + $0x30] sm:$0xff]
    %v1535 = vld [vmem:[%s5 + $0x38] sm:$0xff]
    %v1536 = vld [vmem:[%s6] sm:$0x1]
    %v1538 = vperm.slane %v1536, 0
    %v1541 = vsel %vm119, %v1526, 0
    %1543 = vmatpush.msra.mxu0 0.0
    %1544 = vmatpush.msra.mxu0 0.0
    %1545 = vmatpush.msra.mxu0 0.0
    %1546 = vmatpush.msra.mxu0 0.0
    %1547 = vmatpush.msra.mxu0 0.0
    %1548 = vmatpush.msra.mxu0 0.0
    %1549 = vmatpush.msra.mxu0 0.0
    %1550 = vmatpush.msra.mxu0 0.0
    %1551 = vmatpush.msra.mxu0 0.0
    %1552 = vmatpush.msra.mxu0 0.0
    %1553 = vmatpush.msra.mxu0 0.0
    %1554 = vmatpush.msra.mxu0 0.0
    %1555 = vmatpush.msra.mxu0 %v1531
    %1556 = vmatpush.msra.mxu0 %v1530
    %1557 = vmatpush.msra.mxu0 %v1529
    %1558 = vmatpush.msra.mxu0 %v1528
    %1559 = vmatmul.f32.gmra.mxu0 %v1541
    %v1560 = vpop.f32.mrf.mxu0
    %v1561 = vadd.f32 %v1538, %v1560
    %1562 = vdwg.mxu0
    %v1564 = vsel %vm119, %v1527, 0
    %1566 = vmatpush.msra.mxu0 0.0
    %1567 = vmatpush.msra.mxu0 0.0
    %1568 = vmatpush.msra.mxu0 0.0
    %1569 = vmatpush.msra.mxu0 0.0
    %1570 = vmatpush.msra.mxu0 0.0
    %1571 = vmatpush.msra.mxu0 0.0
    %1572 = vmatpush.msra.mxu0 0.0
    %1573 = vmatpush.msra.mxu0 0.0
    %1574 = vmatpush.msra.mxu0 0.0
    %1575 = vmatpush.msra.mxu0 0.0
    %1576 = vmatpush.msra.mxu0 0.0
    %1577 = vmatpush.msra.mxu0 0.0
    %1578 = vmatpush.msra.mxu0 %v1535
    %1579 = vmatpush.msra.mxu0 %v1534
    %1580 = vmatpush.msra.mxu0 %v1533
    %1581 = vmatpush.msra.mxu0 %v1532
    %1582 = vmatmul.f32.gmra.mxu0 %v1564
    %v1583 = vpop.f32.mrf.mxu0
    %v1584 = vadd.f32 %v1538, %v1583
    %1585 = vdwg.mxu0
    %v1586 = vmax.f32 %v1561, 0.0
    %v1587 = vmax.f32 %v1584, 0.0
    %v1588 = vld [vmem:[%s7] sm:$0xff]
    %v1589 = vld [vmem:[%s7 + $0x8] sm:$0xff]
    %v1590 = vld [vmem:[%s7 + $0x10] sm:$0xff]
    %v1591 = vld [vmem:[%s7 + $0x18] sm:$0xff]
    %v1592 = vld [vmem:[%s7 + $0x20] sm:$0xff]
    %v1593 = vld [vmem:[%s7 + $0x28] sm:$0xff]
    %v1594 = vld [vmem:[%s7 + $0x30] sm:$0xff]
    %v1595 = vld [vmem:[%s7 + $0x38] sm:$0xff]
    %v1596 = vld [vmem:[%s7 + $0x40] sm:$0xff]
    %v1597 = vld [vmem:[%s7 + $0x48] sm:$0xff]
    %v1598 = vld [vmem:[%s7 + $0x50] sm:$0xff]
    %v1599 = vld [vmem:[%s7 + $0x58] sm:$0xff]
    %v1600 = vld [vmem:[%s7 + $0x60] sm:$0xff]
    %v1601 = vld [vmem:[%s7 + $0x68] sm:$0xff]
    %v1602 = vld [vmem:[%s7 + $0x70] sm:$0xff]
    %v1603 = vld [vmem:[%s7 + $0x78] sm:$0xff]
    %v1604 = vperm.slane %v1465, 3
    %vm1605 = vcmask 523264
    %v1607 = vsel %vm1605, %v1586, 0
    %1609 = vmatpush.msra.mxu0 0.0
    %1610 = vmatpush.msra.mxu0 0.0
    %1611 = vmatpush.msra.mxu0 0.0
    %1612 = vmatpush.msra.mxu0 0.0
    %1613 = vmatpush.msra.mxu0 0.0
    %1614 = vmatpush.msra.mxu0 0.0
    %1615 = vmatpush.msra.mxu0 0.0
    %1616 = vmatpush.msra.mxu0 0.0
    %1617 = vmatpush.msra.mxu0 %v1595
    %1618 = vmatpush.msra.mxu0 %v1594
    %1619 = vmatpush.msra.mxu0 %v1593
    %1620 = vmatpush.msra.mxu0 %v1592
    %1621 = vmatpush.msra.mxu0 %v1591
    %1622 = vmatpush.msra.mxu0 %v1590
    %1623 = vmatpush.msra.mxu0 %v1589
    %1624 = vmatpush.msra.mxu0 %v1588
    %1625 = vmatmul.f32.gmra.mxu0 %v1607
    %v1626 = vpop.f32.mrf.mxu0
    %v1627 = vadd.f32 %v1604, %v1626
    %1628 = vdwg.mxu0
    %v1630 = vsel %vm1605, %v1587, 0
    %1632 = vmatpush.msra.mxu0 0.0
    %1633 = vmatpush.msra.mxu0 0.0
    %1634 = vmatpush.msra.mxu0 0.0
    %1635 = vmatpush.msra.mxu0 0.0
    %1636 = vmatpush.msra.mxu0 0.0
    %1637 = vmatpush.msra.mxu0 0.0
    %1638 = vmatpush.msra.mxu0 0.0
    %1639 = vmatpush.msra.mxu0 0.0
    %1640 = vmatpush.msra.mxu0 %v1603
    %1641 = vmatpush.msra.mxu0 %v1602
    %1642 = vmatpush.msra.mxu0 %v1601
    %1643 = vmatpush.msra.mxu0 %v1600
    %1644 = vmatpush.msra.mxu0 %v1599
    %1645 = vmatpush.msra.mxu0 %v1598
    %1646 = vmatpush.msra.mxu0 %v1597
    %1647 = vmatpush.msra.mxu0 %v1596
    %1648 = vmatmul.f32.gmra.mxu0 %v1630
    %v1649 = vpop.f32.mrf.mxu0
    %v1650 = vadd.f32 %v1604, %v1649
    %1651 = vdwg.mxu0
    %v1652 = vadd.f32 %v1526, %v1627
    %v1653 = vadd.f32 %v1527, %v1650
    %v1654 = vsel %vm119, %v1652, 0.0
    %1655 = vadd.xlane.f32.xlu0 %v1654
    %v1656 = vpop.xlane.xlu0 %1655
    %v1657 = vsel %vm119, %v1653, 0.0
    %1658 = vadd.xlane.f32.xlu0 %v1657
    %v1659 = vpop.xlane.xlu0 %1658
    %v1660 = vmul.f32 %v1656, %v1483
    %v1661 = vmul.f32 %v1659, %v1483
    %v1662 = vsub.f32 %v1652, %v1660
    %v1663 = vsub.f32 %v1653, %v1661
    %v1664 = vmul.f32 %v1662, %v1662
    %v1665 = vmul.f32 %v1663, %v1663
    %v1666 = vsel %vm119, %v1664, 0.0
    %1667 = vadd.xlane.f32.xlu0 %v1666
    %v1668 = vpop.xlane.xlu0 %1667
    %v1669 = vsel %vm119, %v1665, 0.0
    %1670 = vadd.xlane.f32.xlu0 %v1669
    %v1671 = vpop.xlane.xlu0 %1670
    %v1672 = vmul.f32 %v1668, %v1483
    %v1673 = vmul.f32 %v1671, %v1483
    %v1674 = vadd.f32 %v1672, 1e-05
    %v1675 = vadd.f32 %v1673, 1e-05
    %v1676 = vrsqrt.pop %v1674
    %v1677 = vmul.f32 %v1676, %v1674
    %v1678 = vmul.f32 %v1677, %v1676
    %v1679 = vmul.f32 0.5, %v1678
    %v1680 = vsub.f32 1.5, %v1679
    %v1681 = vmul.f32 %v1676, %v1680
    %vm1682 = vweird.f32 %v1674
    %vm1683 = vweird.f32 %v1676
    %vm1684 = vmor %vm1682, %vm1683
    %v1685 = vsel %vm1684, %v1676, %v1681
    %v1686 = vrsqrt.pop %v1675
    %v1687 = vmul.f32 %v1686, %v1675
    %v1688 = vmul.f32 %v1687, %v1686
    %v1689 = vmul.f32 0.5, %v1688
    %v1690 = vsub.f32 1.5, %v1689
    %v1691 = vmul.f32 %v1686, %v1690
    %vm1692 = vweird.f32 %v1675
    %vm1693 = vweird.f32 %v1686
    %vm1694 = vmor %vm1692, %vm1693
    %v1695 = vsel %vm1694, %v1686, %v1691
    %v1696 = vmul.f32 %v1662, %v1685
    %v1697 = vmul.f32 %v1663, %v1695
    %v1698 = vperm.slane %v1465, 4
    %v1699 = vmul.f32 %v1696, %v1698
    %v1700 = vmul.f32 %v1697, %v1698
    %v1701 = vperm.slane %v1465, 5
    %v1702 = vadd.f32 %v1699, %v1701
    %v1703 = vadd.f32 %v1700, %v1701
    %s1704 = scalar_lea.vmem %s2, 768
    %v1705 = vld [vmem:[%s1704] sm:$0xff]
    %v1706 = vld [vmem:[%s1704 + $0x8] sm:$0xff]
    %v1707 = vld [vmem:[%s1704 + $0x10] sm:$0xff]
    %v1708 = vld [vmem:[%s1704 + $0x18] sm:$0xff]
    %v1709 = vld [vmem:[%s1704 + $0x20] sm:$0xff]
    %v1710 = vld [vmem:[%s1704 + $0x28] sm:$0xff]
    %v1711 = vld [vmem:[%s1704 + $0x30] sm:$0xff]
    %v1712 = vld [vmem:[%s1704 + $0x38] sm:$0xff]
    %v1713 = vld [vmem:[%s1704 + $0x40] sm:$0xff]
    %v1714 = vld [vmem:[%s1704 + $0x48] sm:$0xff]
    %v1715 = vld [vmem:[%s1704 + $0x50] sm:$0xff]
    %v1716 = vld [vmem:[%s1704 + $0x58] sm:$0xff]
    %v1717 = vld [vmem:[%s1704 + $0x60] sm:$0xff]
    %v1718 = vld [vmem:[%s1704 + $0x68] sm:$0xff]
    %v1719 = vld [vmem:[%s1704 + $0x70] sm:$0xff]
    %v1720 = vld [vmem:[%s1704 + $0x78] sm:$0xff]
    %v1721 = vld [vmem:[%s1704 + $0x80] sm:$0xff]
    %v1722 = vld [vmem:[%s1704 + $0x88] sm:$0xff]
    %v1723 = vld [vmem:[%s1704 + $0x90] sm:$0xff]
    %v1724 = vld [vmem:[%s1704 + $0x98] sm:$0xff]
    %v1725 = vld [vmem:[%s1704 + $0xa0] sm:$0xff]
    %v1726 = vld [vmem:[%s1704 + $0xa8] sm:$0xff]
    %v1727 = vld [vmem:[%s1704 + $0xb0] sm:$0xff]
    %v1728 = vld [vmem:[%s1704 + $0xb8] sm:$0xff]
    %v1729 = vld [vmem:[%s1704 + $0xc0] sm:$0xff]
    %v1730 = vld [vmem:[%s1704 + $0xc8] sm:$0xff]
    %v1731 = vld [vmem:[%s1704 + $0xd0] sm:$0xff]
    %v1732 = vld [vmem:[%s1704 + $0xd8] sm:$0xff]
    %v1733 = vld [vmem:[%s1704 + $0xe0] sm:$0xff]
    %v1734 = vld [vmem:[%s1704 + $0xe8] sm:$0xff]
    %v1735 = vld [vmem:[%s1704 + $0xf0] sm:$0xff]
    %v1736 = vld [vmem:[%s1704 + $0xf8] sm:$0xff]
    %s1737 = scalar_lea.vmem %s3, 24
    %v1738 = vld [vmem:[%s1737] sm:$0x1]
    %v1739 = vld [vmem:[%s1737 + $0x1] sm:$0x1]
    %v1740 = vld [vmem:[%s1737 + $0x2] sm:$0x1]
    %v1741 = vld [vmem:[%s1737 + $0x3] sm:$0x1]
    %v1742 = vld [vmem:[%s1737 + $0x4] sm:$0x1]
    %v1743 = vld [vmem:[%s1737 + $0x5] sm:$0x1]
    %v1744 = vld [vmem:[%s1737 + $0x6] sm:$0x1]
    %v1745 = vld [vmem:[%s1737 + $0x7] sm:$0x1]
    %v1754 = vperm.slane %v1738, 0
    %v1755 = vperm.slane %v1739, 0
    %v1756 = vperm.slane %v1740, 0
    %v1757 = vperm.slane %v1741, 0
    %v1758 = vperm.slane %v1742, 0
    %v1759 = vperm.slane %v1743, 0
    %v1760 = vperm.slane %v1744, 0
    %v1761 = vperm.slane %v1745, 0
    %v1771 = vsel %vm119, %v1702, 0
    %1773 = vmatpush.msra.mxu0 0.0
    %1774 = vmatpush.msra.mxu0 0.0
    %1775 = vmatpush.msra.mxu0 0.0
    %1776 = vmatpush.msra.mxu0 0.0
    %1777 = vmatpush.msra.mxu0 0.0
    %1778 = vmatpush.msra.mxu0 0.0
    %1779 = vmatpush.msra.mxu0 0.0
    %1780 = vmatpush.msra.mxu0 0.0
    %1781 = vmatpush.msra.mxu0 0.0
    %1782 = vmatpush.msra.mxu0 0.0
    %1783 = vmatpush.msra.mxu0 0.0
    %1784 = vmatpush.msra.mxu0 0.0
    %1785 = vmatpush.msra.mxu0 %v1708
    %1786 = vmatpush.msra.mxu0 %v1707
    %1787 = vmatpush.msra.mxu0 %v1706
    %1788 = vmatpush.msra.mxu0 %v1705
    %1789 = vmatmul.f32.gmra.mxu0 %v1771
    %v1790 = vpop.f32.mrf.mxu0
    %v1791 = vadd.f32 %v1754, %v1790
    %1792 = vdwg.mxu0
    %1793 = vmatpush.msra.mxu0 0.0
    %1794 = vmatpush.msra.mxu0 0.0
    %1795 = vmatpush.msra.mxu0 0.0
    %1796 = vmatpush.msra.mxu0 0.0
    %1797 = vmatpush.msra.mxu0 0.0
    %1798 = vmatpush.msra.mxu0 0.0
    %1799 = vmatpush.msra.mxu0 0.0
    %1800 = vmatpush.msra.mxu0 0.0
    %1801 = vmatpush.msra.mxu0 0.0
    %1802 = vmatpush.msra.mxu0 0.0
    %1803 = vmatpush.msra.mxu0 0.0
    %1804 = vmatpush.msra.mxu0 0.0
    %1805 = vmatpush.msra.mxu0 %v1712
    %1806 = vmatpush.msra.mxu0 %v1711
    %1807 = vmatpush.msra.mxu0 %v1710
    %1808 = vmatpush.msra.mxu0 %v1709
    %1809 = vmatmul.f32.gmra.mxu0 %v1771
    %v1810 = vpop.f32.mrf.mxu0
    %v1811 = vadd.f32 %v1755, %v1810
    %1812 = vdwg.mxu0
    %1813 = vmatpush.msra.mxu0 0.0
    %1814 = vmatpush.msra.mxu0 0.0
    %1815 = vmatpush.msra.mxu0 0.0
    %1816 = vmatpush.msra.mxu0 0.0
    %1817 = vmatpush.msra.mxu0 0.0
    %1818 = vmatpush.msra.mxu0 0.0
    %1819 = vmatpush.msra.mxu0 0.0
    %1820 = vmatpush.msra.mxu0 0.0
    %1821 = vmatpush.msra.mxu0 0.0
    %1822 = vmatpush.msra.mxu0 0.0
    %1823 = vmatpush.msra.mxu0 0.0
    %1824 = vmatpush.msra.mxu0 0.0
    %1825 = vmatpush.msra.mxu0 %v1716
    %1826 = vmatpush.msra.mxu0 %v1715
    %1827 = vmatpush.msra.mxu0 %v1714
    %1828 = vmatpush.msra.mxu0 %v1713
    %1829 = vmatmul.f32.gmra.mxu0 %v1771
    %v1830 = vpop.f32.mrf.mxu0
    %v1831 = vadd.f32 %v1756, %v1830
    %1832 = vdwg.mxu0
    %1833 = vmatpush.msra.mxu0 0.0
    %1834 = vmatpush.msra.mxu0 0.0
    %1835 = vmatpush.msra.mxu0 0.0
    %1836 = vmatpush.msra.mxu0 0.0
    %1837 = vmatpush.msra.mxu0 0.0
    %1838 = vmatpush.msra.mxu0 0.0
    %1839 = vmatpush.msra.mxu0 0.0
    %1840 = vmatpush.msra.mxu0 0.0
    %1841 = vmatpush.msra.mxu0 0.0
    %1842 = vmatpush.msra.mxu0 0.0
    %1843 = vmatpush.msra.mxu0 0.0
    %1844 = vmatpush.msra.mxu0 0.0
    %1845 = vmatpush.msra.mxu0 %v1720
    %1846 = vmatpush.msra.mxu0 %v1719
    %1847 = vmatpush.msra.mxu0 %v1718
    %1848 = vmatpush.msra.mxu0 %v1717
    %1849 = vmatmul.f32.gmra.mxu0 %v1771
    %v1850 = vpop.f32.mrf.mxu0
    %v1851 = vadd.f32 %v1757, %v1850
    %1852 = vdwg.mxu0
    %v1854 = vsel %vm119, %v1703, 0
    %1856 = vmatpush.msra.mxu0 0.0
    %1857 = vmatpush.msra.mxu0 0.0
    %1858 = vmatpush.msra.mxu0 0.0
    %1859 = vmatpush.msra.mxu0 0.0
    %1860 = vmatpush.msra.mxu0 0.0
    %1861 = vmatpush.msra.mxu0 0.0
    %1862 = vmatpush.msra.mxu0 0.0
    %1863 = vmatpush.msra.mxu0 0.0
    %1864 = vmatpush.msra.mxu0 0.0
    %1865 = vmatpush.msra.mxu0 0.0
    %1866 = vmatpush.msra.mxu0 0.0
    %1867 = vmatpush.msra.mxu0 0.0
    %1868 = vmatpush.msra.mxu0 %v1724
    %1869 = vmatpush.msra.mxu0 %v1723
    %1870 = vmatpush.msra.mxu0 %v1722
    %1871 = vmatpush.msra.mxu0 %v1721
    %1872 = vmatmul.f32.gmra.mxu0 %v1854
    %v1873 = vpop.f32.mrf.mxu0
    %v1874 = vadd.f32 %v1758, %v1873
    %1875 = vdwg.mxu0
    %1876 = vmatpush.msra.mxu0 0.0
    %1877 = vmatpush.msra.mxu0 0.0
    %1878 = vmatpush.msra.mxu0 0.0
    %1879 = vmatpush.msra.mxu0 0.0
    %1880 = vmatpush.msra.mxu0 0.0
    %1881 = vmatpush.msra.mxu0 0.0
    %1882 = vmatpush.msra.mxu0 0.0
    %1883 = vmatpush.msra.mxu0 0.0
    %1884 = vmatpush.msra.mxu0 0.0
    %1885 = vmatpush.msra.mxu0 0.0
    %1886 = vmatpush.msra.mxu0 0.0
    %1887 = vmatpush.msra.mxu0 0.0
    %1888 = vmatpush.msra.mxu0 %v1728
    %1889 = vmatpush.msra.mxu0 %v1727
    %1890 = vmatpush.msra.mxu0 %v1726
    %1891 = vmatpush.msra.mxu0 %v1725
    %1892 = vmatmul.f32.gmra.mxu0 %v1854
    %v1893 = vpop.f32.mrf.mxu0
    %v1894 = vadd.f32 %v1759, %v1893
    %1895 = vdwg.mxu0
    %1896 = vmatpush.msra.mxu0 0.0
    %1897 = vmatpush.msra.mxu0 0.0
    %1898 = vmatpush.msra.mxu0 0.0
    %1899 = vmatpush.msra.mxu0 0.0
    %1900 = vmatpush.msra.mxu0 0.0
    %1901 = vmatpush.msra.mxu0 0.0
    %1902 = vmatpush.msra.mxu0 0.0
    %1903 = vmatpush.msra.mxu0 0.0
    %1904 = vmatpush.msra.mxu0 0.0
    %1905 = vmatpush.msra.mxu0 0.0
    %1906 = vmatpush.msra.mxu0 0.0
    %1907 = vmatpush.msra.mxu0 0.0
    %1908 = vmatpush.msra.mxu0 %v1732
    %1909 = vmatpush.msra.mxu0 %v1731
    %1910 = vmatpush.msra.mxu0 %v1730
    %1911 = vmatpush.msra.mxu0 %v1729
    %1912 = vmatmul.f32.gmra.mxu0 %v1854
    %v1913 = vpop.f32.mrf.mxu0
    %v1914 = vadd.f32 %v1760, %v1913
    %1915 = vdwg.mxu0
    %1916 = vmatpush.msra.mxu0 0.0
    %1917 = vmatpush.msra.mxu0 0.0
    %1918 = vmatpush.msra.mxu0 0.0
    %1919 = vmatpush.msra.mxu0 0.0
    %1920 = vmatpush.msra.mxu0 0.0
    %1921 = vmatpush.msra.mxu0 0.0
    %1922 = vmatpush.msra.mxu0 0.0
    %1923 = vmatpush.msra.mxu0 0.0
    %1924 = vmatpush.msra.mxu0 0.0
    %1925 = vmatpush.msra.mxu0 0.0
    %1926 = vmatpush.msra.mxu0 0.0
    %1927 = vmatpush.msra.mxu0 0.0
    %1928 = vmatpush.msra.mxu0 %v1736
    %1929 = vmatpush.msra.mxu0 %v1735
    %1930 = vmatpush.msra.mxu0 %v1734
    %1931 = vmatpush.msra.mxu0 %v1733
    %1932 = vmatmul.f32.gmra.mxu0 %v1854
    %v1933 = vpop.f32.mrf.mxu0
    %v1934 = vadd.f32 %v1761, %v1933
    %1935 = vdwg.mxu0
    %s1936 = scalar_lea.vmem %s2, 1024
    %v1937 = vld [vmem:[%s1936] sm:$0xff]
    %v1938 = vld [vmem:[%s1936 + $0x8] sm:$0xff]
    %v1939 = vld [vmem:[%s1936 + $0x10] sm:$0xff]
    %v1940 = vld [vmem:[%s1936 + $0x18] sm:$0xff]
    %v1941 = vld [vmem:[%s1936 + $0x20] sm:$0xff]
    %v1942 = vld [vmem:[%s1936 + $0x28] sm:$0xff]
    %v1943 = vld [vmem:[%s1936 + $0x30] sm:$0xff]
    %v1944 = vld [vmem:[%s1936 + $0x38] sm:$0xff]
    %v1945 = vld [vmem:[%s1936 + $0x40] sm:$0xff]
    %v1946 = vld [vmem:[%s1936 + $0x48] sm:$0xff]
    %v1947 = vld [vmem:[%s1936 + $0x50] sm:$0xff]
    %v1948 = vld [vmem:[%s1936 + $0x58] sm:$0xff]
    %v1949 = vld [vmem:[%s1936 + $0x60] sm:$0xff]
    %v1950 = vld [vmem:[%s1936 + $0x68] sm:$0xff]
    %v1951 = vld [vmem:[%s1936 + $0x70] sm:$0xff]
    %v1952 = vld [vmem:[%s1936 + $0x78] sm:$0xff]
    %v1953 = vld [vmem:[%s1936 + $0x80] sm:$0xff]
    %v1954 = vld [vmem:[%s1936 + $0x88] sm:$0xff]
    %v1955 = vld [vmem:[%s1936 + $0x90] sm:$0xff]
    %v1956 = vld [vmem:[%s1936 + $0x98] sm:$0xff]
    %v1957 = vld [vmem:[%s1936 + $0xa0] sm:$0xff]
    %v1958 = vld [vmem:[%s1936 + $0xa8] sm:$0xff]
    %v1959 = vld [vmem:[%s1936 + $0xb0] sm:$0xff]
    %v1960 = vld [vmem:[%s1936 + $0xb8] sm:$0xff]
    %v1961 = vld [vmem:[%s1936 + $0xc0] sm:$0xff]
    %v1962 = vld [vmem:[%s1936 + $0xc8] sm:$0xff]
    %v1963 = vld [vmem:[%s1936 + $0xd0] sm:$0xff]
    %v1964 = vld [vmem:[%s1936 + $0xd8] sm:$0xff]
    %v1965 = vld [vmem:[%s1936 + $0xe0] sm:$0xff]
    %v1966 = vld [vmem:[%s1936 + $0xe8] sm:$0xff]
    %v1967 = vld [vmem:[%s1936 + $0xf0] sm:$0xff]
    %v1968 = vld [vmem:[%s1936 + $0xf8] sm:$0xff]
    %s1969 = scalar_lea.vmem %s3, 32
    %v1970 = vld [vmem:[%s1969] sm:$0x1]
    %v1971 = vld [vmem:[%s1969 + $0x1] sm:$0x1]
    %v1972 = vld [vmem:[%s1969 + $0x2] sm:$0x1]
    %v1973 = vld [vmem:[%s1969 + $0x3] sm:$0x1]
    %v1974 = vld [vmem:[%s1969 + $0x4] sm:$0x1]
    %v1975 = vld [vmem:[%s1969 + $0x5] sm:$0x1]
    %v1976 = vld [vmem:[%s1969 + $0x6] sm:$0x1]
    %v1977 = vld [vmem:[%s1969 + $0x7] sm:$0x1]
    %v1986 = vperm.slane %v1970, 0
    %v1987 = vperm.slane %v1971, 0
    %v1988 = vperm.slane %v1972, 0
    %v1989 = vperm.slane %v1973, 0
    %v1990 = vperm.slane %v1974, 0
    %v1991 = vperm.slane %v1975, 0
    %v1992 = vperm.slane %v1976, 0
    %v1993 = vperm.slane %v1977, 0
    %2002 = vmatpush.msra.mxu0 0.0
    %2003 = vmatpush.msra.mxu0 0.0
    %2004 = vmatpush.msra.mxu0 0.0
    %2005 = vmatpush.msra.mxu0 0.0
    %2006 = vmatpush.msra.mxu0 0.0
    %2007 = vmatpush.msra.mxu0 0.0
    %2008 = vmatpush.msra.mxu0 0.0
    %2009 = vmatpush.msra.mxu0 0.0
    %2010 = vmatpush.msra.mxu0 0.0
    %2011 = vmatpush.msra.mxu0 0.0
    %2012 = vmatpush.msra.mxu0 0.0
    %2013 = vmatpush.msra.mxu0 0.0
    %2014 = vmatpush.msra.mxu0 %v1940
    %2015 = vmatpush.msra.mxu0 %v1939
    %2016 = vmatpush.msra.mxu0 %v1938
    %2017 = vmatpush.msra.mxu0 %v1937
    %2018 = vmatmul.f32.gmra.mxu0 %v1771
    %v2019 = vpop.f32.mrf.mxu0
    %v2020 = vadd.f32 %v1986, %v2019
    %2021 = vdwg.mxu0
    %2022 = vmatpush.msra.mxu0 0.0
    %2023 = vmatpush.msra.mxu0 0.0
    %2024 = vmatpush.msra.mxu0 0.0
    %2025 = vmatpush.msra.mxu0 0.0
    %2026 = vmatpush.msra.mxu0 0.0
    %2027 = vmatpush.msra.mxu0 0.0
    %2028 = vmatpush.msra.mxu0 0.0
    %2029 = vmatpush.msra.mxu0 0.0
    %2030 = vmatpush.msra.mxu0 0.0
    %2031 = vmatpush.msra.mxu0 0.0
    %2032 = vmatpush.msra.mxu0 0.0
    %2033 = vmatpush.msra.mxu0 0.0
    %2034 = vmatpush.msra.mxu0 %v1944
    %2035 = vmatpush.msra.mxu0 %v1943
    %2036 = vmatpush.msra.mxu0 %v1942
    %2037 = vmatpush.msra.mxu0 %v1941
    %2038 = vmatmul.f32.gmra.mxu0 %v1771
    %v2039 = vpop.f32.mrf.mxu0
    %v2040 = vadd.f32 %v1987, %v2039
    %2041 = vdwg.mxu0
    %2042 = vmatpush.msra.mxu0 0.0
    %2043 = vmatpush.msra.mxu0 0.0
    %2044 = vmatpush.msra.mxu0 0.0
    %2045 = vmatpush.msra.mxu0 0.0
    %2046 = vmatpush.msra.mxu0 0.0
    %2047 = vmatpush.msra.mxu0 0.0
    %2048 = vmatpush.msra.mxu0 0.0
    %2049 = vmatpush.msra.mxu0 0.0
    %2050 = vmatpush.msra.mxu0 0.0
    %2051 = vmatpush.msra.mxu0 0.0
    %2052 = vmatpush.msra.mxu0 0.0
    %2053 = vmatpush.msra.mxu0 0.0
    %2054 = vmatpush.msra.mxu0 %v1948
    %2055 = vmatpush.msra.mxu0 %v1947
    %2056 = vmatpush.msra.mxu0 %v1946
    %2057 = vmatpush.msra.mxu0 %v1945
    %2058 = vmatmul.f32.gmra.mxu0 %v1771
    %v2059 = vpop.f32.mrf.mxu0
    %v2060 = vadd.f32 %v1988, %v2059
    %2061 = vdwg.mxu0
    %2062 = vmatpush.msra.mxu0 0.0
    %2063 = vmatpush.msra.mxu0 0.0
    %2064 = vmatpush.msra.mxu0 0.0
    %2065 = vmatpush.msra.mxu0 0.0
    %2066 = vmatpush.msra.mxu0 0.0
    %2067 = vmatpush.msra.mxu0 0.0
    %2068 = vmatpush.msra.mxu0 0.0
    %2069 = vmatpush.msra.mxu0 0.0
    %2070 = vmatpush.msra.mxu0 0.0
    %2071 = vmatpush.msra.mxu0 0.0
    %2072 = vmatpush.msra.mxu0 0.0
    %2073 = vmatpush.msra.mxu0 0.0
    %2074 = vmatpush.msra.mxu0 %v1952
    %2075 = vmatpush.msra.mxu0 %v1951
    %2076 = vmatpush.msra.mxu0 %v1950
    %2077 = vmatpush.msra.mxu0 %v1949
    %2078 = vmatmul.f32.gmra.mxu0 %v1771
    %v2079 = vpop.f32.mrf.mxu0
    %v2080 = vadd.f32 %v1989, %v2079
    %2081 = vdwg.mxu0
    %2082 = vmatpush.msra.mxu0 0.0
    %2083 = vmatpush.msra.mxu0 0.0
    %2084 = vmatpush.msra.mxu0 0.0
    %2085 = vmatpush.msra.mxu0 0.0
    %2086 = vmatpush.msra.mxu0 0.0
    %2087 = vmatpush.msra.mxu0 0.0
    %2088 = vmatpush.msra.mxu0 0.0
    %2089 = vmatpush.msra.mxu0 0.0
    %2090 = vmatpush.msra.mxu0 0.0
    %2091 = vmatpush.msra.mxu0 0.0
    %2092 = vmatpush.msra.mxu0 0.0
    %2093 = vmatpush.msra.mxu0 0.0
    %2094 = vmatpush.msra.mxu0 %v1956
    %2095 = vmatpush.msra.mxu0 %v1955
    %2096 = vmatpush.msra.mxu0 %v1954
    %2097 = vmatpush.msra.mxu0 %v1953
    %2098 = vmatmul.f32.gmra.mxu0 %v1854
    %v2099 = vpop.f32.mrf.mxu0
    %v2100 = vadd.f32 %v1990, %v2099
    %2101 = vdwg.mxu0
    %2102 = vmatpush.msra.mxu0 0.0
    %2103 = vmatpush.msra.mxu0 0.0
    %2104 = vmatpush.msra.mxu0 0.0
    %2105 = vmatpush.msra.mxu0 0.0
    %2106 = vmatpush.msra.mxu0 0.0
    %2107 = vmatpush.msra.mxu0 0.0
    %2108 = vmatpush.msra.mxu0 0.0
    %2109 = vmatpush.msra.mxu0 0.0
    %2110 = vmatpush.msra.mxu0 0.0
    %2111 = vmatpush.msra.mxu0 0.0
    %2112 = vmatpush.msra.mxu0 0.0
    %2113 = vmatpush.msra.mxu0 0.0
    %2114 = vmatpush.msra.mxu0 %v1960
    %2115 = vmatpush.msra.mxu0 %v1959
    %2116 = vmatpush.msra.mxu0 %v1958
    %2117 = vmatpush.msra.mxu0 %v1957
    %2118 = vmatmul.f32.gmra.mxu0 %v1854
    %v2119 = vpop.f32.mrf.mxu0
    %v2120 = vadd.f32 %v1991, %v2119
    %2121 = vdwg.mxu0
    %2122 = vmatpush.msra.mxu0 0.0
    %2123 = vmatpush.msra.mxu0 0.0
    %2124 = vmatpush.msra.mxu0 0.0
    %2125 = vmatpush.msra.mxu0 0.0
    %2126 = vmatpush.msra.mxu0 0.0
    %2127 = vmatpush.msra.mxu0 0.0
    %2128 = vmatpush.msra.mxu0 0.0
    %2129 = vmatpush.msra.mxu0 0.0
    %2130 = vmatpush.msra.mxu0 0.0
    %2131 = vmatpush.msra.mxu0 0.0
    %2132 = vmatpush.msra.mxu0 0.0
    %2133 = vmatpush.msra.mxu0 0.0
    %2134 = vmatpush.msra.mxu0 %v1964
    %2135 = vmatpush.msra.mxu0 %v1963
    %2136 = vmatpush.msra.mxu0 %v1962
    %2137 = vmatpush.msra.mxu0 %v1961
    %2138 = vmatmul.f32.gmra.mxu0 %v1854
    %v2139 = vpop.f32.mrf.mxu0
    %v2140 = vadd.f32 %v1992, %v2139
    %2141 = vdwg.mxu0
    %2142 = vmatpush.msra.mxu0 0.0
    %2143 = vmatpush.msra.mxu0 0.0
    %2144 = vmatpush.msra.mxu0 0.0
    %2145 = vmatpush.msra.mxu0 0.0
    %2146 = vmatpush.msra.mxu0 0.0
    %2147 = vmatpush.msra.mxu0 0.0
    %2148 = vmatpush.msra.mxu0 0.0
    %2149 = vmatpush.msra.mxu0 0.0
    %2150 = vmatpush.msra.mxu0 0.0
    %2151 = vmatpush.msra.mxu0 0.0
    %2152 = vmatpush.msra.mxu0 0.0
    %2153 = vmatpush.msra.mxu0 0.0
    %2154 = vmatpush.msra.mxu0 %v1968
    %2155 = vmatpush.msra.mxu0 %v1967
    %2156 = vmatpush.msra.mxu0 %v1966
    %2157 = vmatpush.msra.mxu0 %v1965
    %2158 = vmatmul.f32.gmra.mxu0 %v1854
    %v2159 = vpop.f32.mrf.mxu0
    %v2160 = vadd.f32 %v1993, %v2159
    %2161 = vdwg.mxu0
    %s2162 = scalar_lea.vmem %s2, 1280
    %v2163 = vld [vmem:[%s2162] sm:$0xff]
    %v2164 = vld [vmem:[%s2162 + $0x8] sm:$0xff]
    %v2165 = vld [vmem:[%s2162 + $0x10] sm:$0xff]
    %v2166 = vld [vmem:[%s2162 + $0x18] sm:$0xff]
    %v2167 = vld [vmem:[%s2162 + $0x20] sm:$0xff]
    %v2168 = vld [vmem:[%s2162 + $0x28] sm:$0xff]
    %v2169 = vld [vmem:[%s2162 + $0x30] sm:$0xff]
    %v2170 = vld [vmem:[%s2162 + $0x38] sm:$0xff]
    %v2171 = vld [vmem:[%s2162 + $0x40] sm:$0xff]
    %v2172 = vld [vmem:[%s2162 + $0x48] sm:$0xff]
    %v2173 = vld [vmem:[%s2162 + $0x50] sm:$0xff]
    %v2174 = vld [vmem:[%s2162 + $0x58] sm:$0xff]
    %v2175 = vld [vmem:[%s2162 + $0x60] sm:$0xff]
    %v2176 = vld [vmem:[%s2162 + $0x68] sm:$0xff]
    %v2177 = vld [vmem:[%s2162 + $0x70] sm:$0xff]
    %v2178 = vld [vmem:[%s2162 + $0x78] sm:$0xff]
    %v2179 = vld [vmem:[%s2162 + $0x80] sm:$0xff]
    %v2180 = vld [vmem:[%s2162 + $0x88] sm:$0xff]
    %v2181 = vld [vmem:[%s2162 + $0x90] sm:$0xff]
    %v2182 = vld [vmem:[%s2162 + $0x98] sm:$0xff]
    %v2183 = vld [vmem:[%s2162 + $0xa0] sm:$0xff]
    %v2184 = vld [vmem:[%s2162 + $0xa8] sm:$0xff]
    %v2185 = vld [vmem:[%s2162 + $0xb0] sm:$0xff]
    %v2186 = vld [vmem:[%s2162 + $0xb8] sm:$0xff]
    %v2187 = vld [vmem:[%s2162 + $0xc0] sm:$0xff]
    %v2188 = vld [vmem:[%s2162 + $0xc8] sm:$0xff]
    %v2189 = vld [vmem:[%s2162 + $0xd0] sm:$0xff]
    %v2190 = vld [vmem:[%s2162 + $0xd8] sm:$0xff]
    %v2191 = vld [vmem:[%s2162 + $0xe0] sm:$0xff]
    %v2192 = vld [vmem:[%s2162 + $0xe8] sm:$0xff]
    %v2193 = vld [vmem:[%s2162 + $0xf0] sm:$0xff]
    %v2194 = vld [vmem:[%s2162 + $0xf8] sm:$0xff]
    %s2195 = scalar_lea.vmem %s3, 40
    %v2196 = vld [vmem:[%s2195] sm:$0x1]
    %v2197 = vld [vmem:[%s2195 + $0x1] sm:$0x1]
    %v2198 = vld [vmem:[%s2195 + $0x2] sm:$0x1]
    %v2199 = vld [vmem:[%s2195 + $0x3] sm:$0x1]
    %v2200 = vld [vmem:[%s2195 + $0x4] sm:$0x1]
    %v2201 = vld [vmem:[%s2195 + $0x5] sm:$0x1]
    %v2202 = vld [vmem:[%s2195 + $0x6] sm:$0x1]
    %v2203 = vld [vmem:[%s2195 + $0x7] sm:$0x1]
    %v2212 = vperm.slane %v2196, 0
    %v2213 = vperm.slane %v2197, 0
    %v2214 = vperm.slane %v2198, 0
    %v2215 = vperm.slane %v2199, 0
    %v2216 = vperm.slane %v2200, 0
    %v2217 = vperm.slane %v2201, 0
    %v2218 = vperm.slane %v2202, 0
    %v2219 = vperm.slane %v2203, 0
    %2228 = vmatpush.msra.mxu0 0.0
    %2229 = vmatpush.msra.mxu0 0.0
    %2230 = vmatpush.msra.mxu0 0.0
    %2231 = vmatpush.msra.mxu0 0.0
    %2232 = vmatpush.msra.mxu0 0.0
    %2233 = vmatpush.msra.mxu0 0.0
    %2234 = vmatpush.msra.mxu0 0.0
    %2235 = vmatpush.msra.mxu0 0.0
    %2236 = vmatpush.msra.mxu0 0.0
    %2237 = vmatpush.msra.mxu0 0.0
    %2238 = vmatpush.msra.mxu0 0.0
    %2239 = vmatpush.msra.mxu0 0.0
    %2240 = vmatpush.msra.mxu0 %v2166
    %2241 = vmatpush.msra.mxu0 %v2165
    %2242 = vmatpush.msra.mxu0 %v2164
    %2243 = vmatpush.msra.mxu0 %v2163
    %2244 = vmatmul.f32.gmra.mxu0 %v1771
    %v2245 = vpop.f32.mrf.mxu0
    %v2246 = vadd.f32 %v2212, %v2245
    %2247 = vdwg.mxu0
    %2248 = vmatpush.msra.mxu0 0.0
    %2249 = vmatpush.msra.mxu0 0.0
    %2250 = vmatpush.msra.mxu0 0.0
    %2251 = vmatpush.msra.mxu0 0.0
    %2252 = vmatpush.msra.mxu0 0.0
    %2253 = vmatpush.msra.mxu0 0.0
    %2254 = vmatpush.msra.mxu0 0.0
    %2255 = vmatpush.msra.mxu0 0.0
    %2256 = vmatpush.msra.mxu0 0.0
    %2257 = vmatpush.msra.mxu0 0.0
    %2258 = vmatpush.msra.mxu0 0.0
    %2259 = vmatpush.msra.mxu0 0.0
    %2260 = vmatpush.msra.mxu0 %v2170
    %2261 = vmatpush.msra.mxu0 %v2169
    %2262 = vmatpush.msra.mxu0 %v2168
    %2263 = vmatpush.msra.mxu0 %v2167
    %2264 = vmatmul.f32.gmra.mxu0 %v1771
    %v2265 = vpop.f32.mrf.mxu0
    %v2266 = vadd.f32 %v2213, %v2265
    %2267 = vdwg.mxu0
    %2268 = vmatpush.msra.mxu0 0.0
    %2269 = vmatpush.msra.mxu0 0.0
    %2270 = vmatpush.msra.mxu0 0.0
    %2271 = vmatpush.msra.mxu0 0.0
    %2272 = vmatpush.msra.mxu0 0.0
    %2273 = vmatpush.msra.mxu0 0.0
    %2274 = vmatpush.msra.mxu0 0.0
    %2275 = vmatpush.msra.mxu0 0.0
    %2276 = vmatpush.msra.mxu0 0.0
    %2277 = vmatpush.msra.mxu0 0.0
    %2278 = vmatpush.msra.mxu0 0.0
    %2279 = vmatpush.msra.mxu0 0.0
    %2280 = vmatpush.msra.mxu0 %v2174
    %2281 = vmatpush.msra.mxu0 %v2173
    %2282 = vmatpush.msra.mxu0 %v2172
    %2283 = vmatpush.msra.mxu0 %v2171
    %2284 = vmatmul.f32.gmra.mxu0 %v1771
    %v2285 = vpop.f32.mrf.mxu0
    %v2286 = vadd.f32 %v2214, %v2285
    %2287 = vdwg.mxu0
    %2288 = vmatpush.msra.mxu0 0.0
    %2289 = vmatpush.msra.mxu0 0.0
    %2290 = vmatpush.msra.mxu0 0.0
    %2291 = vmatpush.msra.mxu0 0.0
    %2292 = vmatpush.msra.mxu0 0.0
    %2293 = vmatpush.msra.mxu0 0.0
    %2294 = vmatpush.msra.mxu0 0.0
    %2295 = vmatpush.msra.mxu0 0.0
    %2296 = vmatpush.msra.mxu0 0.0
    %2297 = vmatpush.msra.mxu0 0.0
    %2298 = vmatpush.msra.mxu0 0.0
    %2299 = vmatpush.msra.mxu0 0.0
    %2300 = vmatpush.msra.mxu0 %v2178
    %2301 = vmatpush.msra.mxu0 %v2177
    %2302 = vmatpush.msra.mxu0 %v2176
    %2303 = vmatpush.msra.mxu0 %v2175
    %2304 = vmatmul.f32.gmra.mxu0 %v1771
    %v2305 = vpop.f32.mrf.mxu0
    %v2306 = vadd.f32 %v2215, %v2305
    %2307 = vdwg.mxu0
    %2308 = vmatpush.msra.mxu0 0.0
    %2309 = vmatpush.msra.mxu0 0.0
    %2310 = vmatpush.msra.mxu0 0.0
    %2311 = vmatpush.msra.mxu0 0.0
    %2312 = vmatpush.msra.mxu0 0.0
    %2313 = vmatpush.msra.mxu0 0.0
    %2314 = vmatpush.msra.mxu0 0.0
    %2315 = vmatpush.msra.mxu0 0.0
    %2316 = vmatpush.msra.mxu0 0.0
    %2317 = vmatpush.msra.mxu0 0.0
    %2318 = vmatpush.msra.mxu0 0.0
    %2319 = vmatpush.msra.mxu0 0.0
    %2320 = vmatpush.msra.mxu0 %v2182
    %2321 = vmatpush.msra.mxu0 %v2181
    %2322 = vmatpush.msra.mxu0 %v2180
    %2323 = vmatpush.msra.mxu0 %v2179
    %2324 = vmatmul.f32.gmra.mxu0 %v1854
    %v2325 = vpop.f32.mrf.mxu0
    %v2326 = vadd.f32 %v2216, %v2325
    %2327 = vdwg.mxu0
    %2328 = vmatpush.msra.mxu0 0.0
    %2329 = vmatpush.msra.mxu0 0.0
    %2330 = vmatpush.msra.mxu0 0.0
    %2331 = vmatpush.msra.mxu0 0.0
    %2332 = vmatpush.msra.mxu0 0.0
    %2333 = vmatpush.msra.mxu0 0.0
    %2334 = vmatpush.msra.mxu0 0.0
    %2335 = vmatpush.msra.mxu0 0.0
    %2336 = vmatpush.msra.mxu0 0.0
    %2337 = vmatpush.msra.mxu0 0.0
    %2338 = vmatpush.msra.mxu0 0.0
    %2339 = vmatpush.msra.mxu0 0.0
    %2340 = vmatpush.msra.mxu0 %v2186
    %2341 = vmatpush.msra.mxu0 %v2185
    %2342 = vmatpush.msra.mxu0 %v2184
    %2343 = vmatpush.msra.mxu0 %v2183
    %2344 = vmatmul.f32.gmra.mxu0 %v1854
    %v2345 = vpop.f32.mrf.mxu0
    %v2346 = vadd.f32 %v2217, %v2345
    %2347 = vdwg.mxu0
    %2348 = vmatpush.msra.mxu0 0.0
    %2349 = vmatpush.msra.mxu0 0.0
    %2350 = vmatpush.msra.mxu0 0.0
    %2351 = vmatpush.msra.mxu0 0.0
    %2352 = vmatpush.msra.mxu0 0.0
    %2353 = vmatpush.msra.mxu0 0.0
    %2354 = vmatpush.msra.mxu0 0.0
    %2355 = vmatpush.msra.mxu0 0.0
    %2356 = vmatpush.msra.mxu0 0.0
    %2357 = vmatpush.msra.mxu0 0.0
    %2358 = vmatpush.msra.mxu0 0.0
    %2359 = vmatpush.msra.mxu0 0.0
    %2360 = vmatpush.msra.mxu0 %v2190
    %2361 = vmatpush.msra.mxu0 %v2189
    %2362 = vmatpush.msra.mxu0 %v2188
    %2363 = vmatpush.msra.mxu0 %v2187
    %2364 = vmatmul.f32.gmra.mxu0 %v1854
    %v2365 = vpop.f32.mrf.mxu0
    %v2366 = vadd.f32 %v2218, %v2365
    %2367 = vdwg.mxu0
    %2368 = vmatpush.msra.mxu0 0.0
    %2369 = vmatpush.msra.mxu0 0.0
    %2370 = vmatpush.msra.mxu0 0.0
    %2371 = vmatpush.msra.mxu0 0.0
    %2372 = vmatpush.msra.mxu0 0.0
    %2373 = vmatpush.msra.mxu0 0.0
    %2374 = vmatpush.msra.mxu0 0.0
    %2375 = vmatpush.msra.mxu0 0.0
    %2376 = vmatpush.msra.mxu0 0.0
    %2377 = vmatpush.msra.mxu0 0.0
    %2378 = vmatpush.msra.mxu0 0.0
    %2379 = vmatpush.msra.mxu0 0.0
    %2380 = vmatpush.msra.mxu0 %v2194
    %2381 = vmatpush.msra.mxu0 %v2193
    %2382 = vmatpush.msra.mxu0 %v2192
    %2383 = vmatpush.msra.mxu0 %v2191
    %2384 = vmatmul.f32.gmra.mxu0 %v1854
    %v2385 = vpop.f32.mrf.mxu0
    %v2386 = vadd.f32 %v2219, %v2385
    %2387 = vdwg.mxu0
    %v2389 = vsel %vm738, %v1791, 0
    %v2392 = vsel %vm738, %v2020, 0
    %2394 = vmatpush.xpose.msra.mxu0 0.0
    %2395 = vmatpush.xpose.msra.mxu0 0.0
    %2396 = vmatpush.xpose.msra.mxu0 0.0
    %2397 = vmatpush.xpose.msra.mxu0 0.0
    %2398 = vmatpush.xpose.msra.mxu0 0.0
    %2399 = vmatpush.xpose.msra.mxu0 0.0
    %2400 = vmatpush.xpose.msra.mxu0 0.0
    %2401 = vmatpush.xpose.msra.mxu0 0.0
    %2402 = vmatpush.xpose.msra.mxu0 0.0
    %2403 = vmatpush.xpose.msra.mxu0 0.0
    %2404 = vmatpush.xpose.msra.mxu0 0.0
    %2405 = vmatpush.xpose.msra.mxu0 0.0
    %2406 = vmatpush.xpose.msra.mxu0 0.0
    %2407 = vmatpush.xpose.msra.mxu0 0.0
    %2408 = vmatpush.xpose.msra.mxu0 0.0
    %2409 = vmatpush.xpose.msra.mxu0 %v2392
    %2410 = vmatmul.f32.gmra.mxu0 %v2389
    %v2411 = vpop.f32.mrf.mxu0
    %v2412 = vadd.f32 0.0, %v2411
    %2413 = vdwg.mxu0
    %v2415 = vsel %vm738, %v1811, 0
    %v2418 = vsel %vm738, %v2040, 0
    %2420 = vmatpush.xpose.msra.mxu0 0.0
    %2421 = vmatpush.xpose.msra.mxu0 0.0
    %2422 = vmatpush.xpose.msra.mxu0 0.0
    %2423 = vmatpush.xpose.msra.mxu0 0.0
    %2424 = vmatpush.xpose.msra.mxu0 0.0
    %2425 = vmatpush.xpose.msra.mxu0 0.0
    %2426 = vmatpush.xpose.msra.mxu0 0.0
    %2427 = vmatpush.xpose.msra.mxu0 0.0
    %2428 = vmatpush.xpose.msra.mxu0 0.0
    %2429 = vmatpush.xpose.msra.mxu0 0.0
    %2430 = vmatpush.xpose.msra.mxu0 0.0
    %2431 = vmatpush.xpose.msra.mxu0 0.0
    %2432 = vmatpush.xpose.msra.mxu0 0.0
    %2433 = vmatpush.xpose.msra.mxu0 0.0
    %2434 = vmatpush.xpose.msra.mxu0 0.0
    %2435 = vmatpush.xpose.msra.mxu0 %v2418
    %2436 = vmatmul.f32.gmra.mxu0 %v2415
    %v2437 = vpop.f32.mrf.mxu0
    %v2438 = vadd.f32 0.0, %v2437
    %2439 = vdwg.mxu0
    %v2441 = vsel %vm738, %v1831, 0
    %v2444 = vsel %vm738, %v2060, 0
    %2446 = vmatpush.xpose.msra.mxu0 0.0
    %2447 = vmatpush.xpose.msra.mxu0 0.0
    %2448 = vmatpush.xpose.msra.mxu0 0.0
    %2449 = vmatpush.xpose.msra.mxu0 0.0
    %2450 = vmatpush.xpose.msra.mxu0 0.0
    %2451 = vmatpush.xpose.msra.mxu0 0.0
    %2452 = vmatpush.xpose.msra.mxu0 0.0
    %2453 = vmatpush.xpose.msra.mxu0 0.0
    %2454 = vmatpush.xpose.msra.mxu0 0.0
    %2455 = vmatpush.xpose.msra.mxu0 0.0
    %2456 = vmatpush.xpose.msra.mxu0 0.0
    %2457 = vmatpush.xpose.msra.mxu0 0.0
    %2458 = vmatpush.xpose.msra.mxu0 0.0
    %2459 = vmatpush.xpose.msra.mxu0 0.0
    %2460 = vmatpush.xpose.msra.mxu0 0.0
    %2461 = vmatpush.xpose.msra.mxu0 %v2444
    %2462 = vmatmul.f32.gmra.mxu0 %v2441
    %v2463 = vpop.f32.mrf.mxu0
    %v2464 = vadd.f32 0.0, %v2463
    %2465 = vdwg.mxu0
    %v2467 = vsel %vm738, %v1851, 0
    %v2470 = vsel %vm738, %v2080, 0
    %2472 = vmatpush.xpose.msra.mxu0 0.0
    %2473 = vmatpush.xpose.msra.mxu0 0.0
    %2474 = vmatpush.xpose.msra.mxu0 0.0
    %2475 = vmatpush.xpose.msra.mxu0 0.0
    %2476 = vmatpush.xpose.msra.mxu0 0.0
    %2477 = vmatpush.xpose.msra.mxu0 0.0
    %2478 = vmatpush.xpose.msra.mxu0 0.0
    %2479 = vmatpush.xpose.msra.mxu0 0.0
    %2480 = vmatpush.xpose.msra.mxu0 0.0
    %2481 = vmatpush.xpose.msra.mxu0 0.0
    %2482 = vmatpush.xpose.msra.mxu0 0.0
    %2483 = vmatpush.xpose.msra.mxu0 0.0
    %2484 = vmatpush.xpose.msra.mxu0 0.0
    %2485 = vmatpush.xpose.msra.mxu0 0.0
    %2486 = vmatpush.xpose.msra.mxu0 0.0
    %2487 = vmatpush.xpose.msra.mxu0 %v2470
    %2488 = vmatmul.f32.gmra.mxu0 %v2467
    %v2489 = vpop.f32.mrf.mxu0
    %v2490 = vadd.f32 0.0, %v2489
    %2491 = vdwg.mxu0
    %v2493 = vsel %vm738, %v1874, 0
    %v2496 = vsel %vm738, %v2100, 0
    %2498 = vmatpush.xpose.msra.mxu0 0.0
    %2499 = vmatpush.xpose.msra.mxu0 0.0
    %2500 = vmatpush.xpose.msra.mxu0 0.0
    %2501 = vmatpush.xpose.msra.mxu0 0.0
    %2502 = vmatpush.xpose.msra.mxu0 0.0
    %2503 = vmatpush.xpose.msra.mxu0 0.0
    %2504 = vmatpush.xpose.msra.mxu0 0.0
    %2505 = vmatpush.xpose.msra.mxu0 0.0
    %2506 = vmatpush.xpose.msra.mxu0 0.0
    %2507 = vmatpush.xpose.msra.mxu0 0.0
    %2508 = vmatpush.xpose.msra.mxu0 0.0
    %2509 = vmatpush.xpose.msra.mxu0 0.0
    %2510 = vmatpush.xpose.msra.mxu0 0.0
    %2511 = vmatpush.xpose.msra.mxu0 0.0
    %2512 = vmatpush.xpose.msra.mxu0 0.0
    %2513 = vmatpush.xpose.msra.mxu0 %v2496
    %2514 = vmatmul.f32.gmra.mxu0 %v2493
    %v2515 = vpop.f32.mrf.mxu0
    %v2516 = vadd.f32 0.0, %v2515
    %2517 = vdwg.mxu0
    %v2519 = vsel %vm738, %v1894, 0
    %v2522 = vsel %vm738, %v2120, 0
    %2524 = vmatpush.xpose.msra.mxu0 0.0
    %2525 = vmatpush.xpose.msra.mxu0 0.0
    %2526 = vmatpush.xpose.msra.mxu0 0.0
    %2527 = vmatpush.xpose.msra.mxu0 0.0
    %2528 = vmatpush.xpose.msra.mxu0 0.0
    %2529 = vmatpush.xpose.msra.mxu0 0.0
    %2530 = vmatpush.xpose.msra.mxu0 0.0
    %2531 = vmatpush.xpose.msra.mxu0 0.0
    %2532 = vmatpush.xpose.msra.mxu0 0.0
    %2533 = vmatpush.xpose.msra.mxu0 0.0
    %2534 = vmatpush.xpose.msra.mxu0 0.0
    %2535 = vmatpush.xpose.msra.mxu0 0.0
    %2536 = vmatpush.xpose.msra.mxu0 0.0
    %2537 = vmatpush.xpose.msra.mxu0 0.0
    %2538 = vmatpush.xpose.msra.mxu0 0.0
    %2539 = vmatpush.xpose.msra.mxu0 %v2522
    %2540 = vmatmul.f32.gmra.mxu0 %v2519
    %v2541 = vpop.f32.mrf.mxu0
    %v2542 = vadd.f32 0.0, %v2541
    %2543 = vdwg.mxu0
    %v2545 = vsel %vm738, %v1914, 0
    %v2548 = vsel %vm738, %v2140, 0
    %2550 = vmatpush.xpose.msra.mxu0 0.0
    %2551 = vmatpush.xpose.msra.mxu0 0.0
    %2552 = vmatpush.xpose.msra.mxu0 0.0
    %2553 = vmatpush.xpose.msra.mxu0 0.0
    %2554 = vmatpush.xpose.msra.mxu0 0.0
    %2555 = vmatpush.xpose.msra.mxu0 0.0
    %2556 = vmatpush.xpose.msra.mxu0 0.0
    %2557 = vmatpush.xpose.msra.mxu0 0.0
    %2558 = vmatpush.xpose.msra.mxu0 0.0
    %2559 = vmatpush.xpose.msra.mxu0 0.0
    %2560 = vmatpush.xpose.msra.mxu0 0.0
    %2561 = vmatpush.xpose.msra.mxu0 0.0
    %2562 = vmatpush.xpose.msra.mxu0 0.0
    %2563 = vmatpush.xpose.msra.mxu0 0.0
    %2564 = vmatpush.xpose.msra.mxu0 0.0
    %2565 = vmatpush.xpose.msra.mxu0 %v2548
    %2566 = vmatmul.f32.gmra.mxu0 %v2545
    %v2567 = vpop.f32.mrf.mxu0
    %v2568 = vadd.f32 0.0, %v2567
    %2569 = vdwg.mxu0
    %v2571 = vsel %vm738, %v1934, 0
    %v2574 = vsel %vm738, %v2160, 0
    %2576 = vmatpush.xpose.msra.mxu0 0.0
    %2577 = vmatpush.xpose.msra.mxu0 0.0
    %2578 = vmatpush.xpose.msra.mxu0 0.0
    %2579 = vmatpush.xpose.msra.mxu0 0.0
    %2580 = vmatpush.xpose.msra.mxu0 0.0
    %2581 = vmatpush.xpose.msra.mxu0 0.0
    %2582 = vmatpush.xpose.msra.mxu0 0.0
    %2583 = vmatpush.xpose.msra.mxu0 0.0
    %2584 = vmatpush.xpose.msra.mxu0 0.0
    %2585 = vmatpush.xpose.msra.mxu0 0.0
    %2586 = vmatpush.xpose.msra.mxu0 0.0
    %2587 = vmatpush.xpose.msra.mxu0 0.0
    %2588 = vmatpush.xpose.msra.mxu0 0.0
    %2589 = vmatpush.xpose.msra.mxu0 0.0
    %2590 = vmatpush.xpose.msra.mxu0 0.0
    %2591 = vmatpush.xpose.msra.mxu0 %v2574
    %2592 = vmatmul.f32.gmra.mxu0 %v2571
    %v2593 = vpop.f32.mrf.mxu0
    %v2594 = vadd.f32 0.0, %v2593
    %2595 = vdwg.mxu0
    %v2596 = vmul.f32 %v2412, 0.35355338
    %v2597 = vmul.f32 %v2438, 0.35355338
    %v2598 = vmul.f32 %v2464, 0.35355338
    %v2599 = vmul.f32 %v2490, 0.35355338
    %v2600 = vmul.f32 %v2516, 0.35355338
    %v2601 = vmul.f32 %v2542, 0.35355338
    %v2602 = vmul.f32 %v2568, 0.35355338
    %v2603 = vmul.f32 %v2594, 0.35355338
    %v2604 = vadd.f32 %v2596, %v963
    %v2605 = vadd.f32 %v2597, %v964
    %v2606 = vadd.f32 %v2598, %v965
    %v2607 = vadd.f32 %v2599, %v966
    %v2608 = vadd.f32 %v2600, %v967
    %v2609 = vadd.f32 %v2601, %v968
    %v2610 = vadd.f32 %v2602, %v969
    %v2611 = vadd.f32 %v2603, %v970
    %v2612 = vsel %vm738, %v2604, -inf
    %2613 = vmax.xlane.f32.xlu0 %v2612
    %v2614 = vpop.xlane.xlu0 %2613
    %v2615 = vsel %vm738, %v2605, -inf
    %2616 = vmax.xlane.f32.xlu0 %v2615
    %v2617 = vpop.xlane.xlu0 %2616
    %v2618 = vsel %vm738, %v2606, -inf
    %2619 = vmax.xlane.f32.xlu0 %v2618
    %v2620 = vpop.xlane.xlu0 %2619
    %v2621 = vsel %vm738, %v2607, -inf
    %2622 = vmax.xlane.f32.xlu0 %v2621
    %v2623 = vpop.xlane.xlu0 %2622
    %v2624 = vsel %vm738, %v2608, -inf
    %2625 = vmax.xlane.f32.xlu0 %v2624
    %v2626 = vpop.xlane.xlu0 %2625
    %v2627 = vsel %vm738, %v2609, -inf
    %2628 = vmax.xlane.f32.xlu0 %v2627
    %v2629 = vpop.xlane.xlu0 %2628
    %v2630 = vsel %vm738, %v2610, -inf
    %2631 = vmax.xlane.f32.xlu0 %v2630
    %v2632 = vpop.xlane.xlu0 %2631
    %v2633 = vsel %vm738, %v2611, -inf
    %2634 = vmax.xlane.f32.xlu0 %v2633
    %v2635 = vpop.xlane.xlu0 %2634
    %v2636 = vsub.f32 %v2604, %v2614
    %v2637 = vsub.f32 %v2605, %v2617
    %v2638 = vsub.f32 %v2606, %v2620
    %v2639 = vsub.f32 %v2607, %v2623
    %v2640 = vsub.f32 %v2608, %v2626
    %v2641 = vsub.f32 %v2609, %v2629
    %v2642 = vsub.f32 %v2610, %v2632
    %v2643 = vsub.f32 %v2611, %v2635
    %v2644 = vmul.f32 %v2636, 1.442695
    %v2645 = vpow.pop %v2644
    %v2646 = vmul.f32 %v2637, 1.442695
    %v2647 = vpow.pop %v2646
    %v2648 = vmul.f32 %v2638, 1.442695
    %v2649 = vpow.pop %v2648
    %v2650 = vmul.f32 %v2639, 1.442695
    %v2651 = vpow.pop %v2650
    %v2652 = vmul.f32 %v2640, 1.442695
    %v2653 = vpow.pop %v2652
    %v2654 = vmul.f32 %v2641, 1.442695
    %v2655 = vpow.pop %v2654
    %v2656 = vmul.f32 %v2642, 1.442695
    %v2657 = vpow.pop %v2656
    %v2658 = vmul.f32 %v2643, 1.442695
    %v2659 = vpow.pop %v2658
    %v2660 = vsel %vm738, %v2645, 0.0
    %2661 = vadd.xlane.f32.xlu0 %v2660
    %v2662 = vpop.xlane.xlu0 %2661
    %v2663 = vsel %vm738, %v2647, 0.0
    %2664 = vadd.xlane.f32.xlu0 %v2663
    %v2665 = vpop.xlane.xlu0 %2664
    %v2666 = vsel %vm738, %v2649, 0.0
    %2667 = vadd.xlane.f32.xlu0 %v2666
    %v2668 = vpop.xlane.xlu0 %2667
    %v2669 = vsel %vm738, %v2651, 0.0
    %2670 = vadd.xlane.f32.xlu0 %v2669
    %v2671 = vpop.xlane.xlu0 %2670
    %v2672 = vsel %vm738, %v2653, 0.0
    %2673 = vadd.xlane.f32.xlu0 %v2672
    %v2674 = vpop.xlane.xlu0 %2673
    %v2675 = vsel %vm738, %v2655, 0.0
    %2676 = vadd.xlane.f32.xlu0 %v2675
    %v2677 = vpop.xlane.xlu0 %2676
    %v2678 = vsel %vm738, %v2657, 0.0
    %2679 = vadd.xlane.f32.xlu0 %v2678
    %v2680 = vpop.xlane.xlu0 %2679
    %v2681 = vsel %vm738, %v2659, 0.0
    %2682 = vadd.xlane.f32.xlu0 %v2681
    %v2683 = vpop.xlane.xlu0 %2682
    %v2684 = vrcp.pop %v2662
    %v2685 = vrcp.pop %v2665
    %v2686 = vrcp.pop %v2668
    %v2687 = vrcp.pop %v2671
    %v2688 = vrcp.pop %v2674
    %v2689 = vrcp.pop %v2677
    %v2690 = vrcp.pop %v2680
    %v2691 = vrcp.pop %v2683
    %v2692 = vmul.f32 %v2645, %v2684
    %v2693 = vmul.f32 %v2647, %v2685
    %v2694 = vmul.f32 %v2649, %v2686
    %v2695 = vmul.f32 %v2651, %v2687
    %v2696 = vmul.f32 %v2653, %v2688
    %v2697 = vmul.f32 %v2655, %v2689
    %v2698 = vmul.f32 %v2657, %v2690
    %v2699 = vmul.f32 %v2659, %v2691
    %v2701 = vsel %vm738, %v2692, 0
    %2703 = vmatpush.msra.mxu0 0.0
    %2704 = vmatpush.msra.mxu0 0.0
    %2705 = vmatpush.msra.mxu0 0.0
    %2706 = vmatpush.msra.mxu0 0.0
    %2707 = vmatpush.msra.mxu0 0.0
    %2708 = vmatpush.msra.mxu0 0.0
    %2709 = vmatpush.msra.mxu0 0.0
    %2710 = vmatpush.msra.mxu0 0.0
    %2711 = vmatpush.msra.mxu0 0.0
    %2712 = vmatpush.msra.mxu0 0.0
    %2713 = vmatpush.msra.mxu0 0.0
    %2714 = vmatpush.msra.mxu0 0.0
    %2715 = vmatpush.msra.mxu0 0.0
    %2716 = vmatpush.msra.mxu0 0.0
    %2717 = vmatpush.msra.mxu0 0.0
    %2718 = vmatpush.msra.mxu0 %v2246
    %2719 = vmatmul.f32.gmra.mxu0 %v2701
    %v2720 = vpop.f32.mrf.mxu0
    %v2721 = vadd.f32 0.0, %v2720
    %2722 = vdwg.mxu0
    %v2724 = vsel %vm738, %v2693, 0
    %2726 = vmatpush.msra.mxu0 0.0
    %2727 = vmatpush.msra.mxu0 0.0
    %2728 = vmatpush.msra.mxu0 0.0
    %2729 = vmatpush.msra.mxu0 0.0
    %2730 = vmatpush.msra.mxu0 0.0
    %2731 = vmatpush.msra.mxu0 0.0
    %2732 = vmatpush.msra.mxu0 0.0
    %2733 = vmatpush.msra.mxu0 0.0
    %2734 = vmatpush.msra.mxu0 0.0
    %2735 = vmatpush.msra.mxu0 0.0
    %2736 = vmatpush.msra.mxu0 0.0
    %2737 = vmatpush.msra.mxu0 0.0
    %2738 = vmatpush.msra.mxu0 0.0
    %2739 = vmatpush.msra.mxu0 0.0
    %2740 = vmatpush.msra.mxu0 0.0
    %2741 = vmatpush.msra.mxu0 %v2266
    %2742 = vmatmul.f32.gmra.mxu0 %v2724
    %v2743 = vpop.f32.mrf.mxu0
    %v2744 = vadd.f32 0.0, %v2743
    %2745 = vdwg.mxu0
    %v2747 = vsel %vm738, %v2694, 0
    %2749 = vmatpush.msra.mxu0 0.0
    %2750 = vmatpush.msra.mxu0 0.0
    %2751 = vmatpush.msra.mxu0 0.0
    %2752 = vmatpush.msra.mxu0 0.0
    %2753 = vmatpush.msra.mxu0 0.0
    %2754 = vmatpush.msra.mxu0 0.0
    %2755 = vmatpush.msra.mxu0 0.0
    %2756 = vmatpush.msra.mxu0 0.0
    %2757 = vmatpush.msra.mxu0 0.0
    %2758 = vmatpush.msra.mxu0 0.0
    %2759 = vmatpush.msra.mxu0 0.0
    %2760 = vmatpush.msra.mxu0 0.0
    %2761 = vmatpush.msra.mxu0 0.0
    %2762 = vmatpush.msra.mxu0 0.0
    %2763 = vmatpush.msra.mxu0 0.0
    %2764 = vmatpush.msra.mxu0 %v2286
    %2765 = vmatmul.f32.gmra.mxu0 %v2747
    %v2766 = vpop.f32.mrf.mxu0
    %v2767 = vadd.f32 0.0, %v2766
    %2768 = vdwg.mxu0
    %v2770 = vsel %vm738, %v2695, 0
    %2772 = vmatpush.msra.mxu0 0.0
    %2773 = vmatpush.msra.mxu0 0.0
    %2774 = vmatpush.msra.mxu0 0.0
    %2775 = vmatpush.msra.mxu0 0.0
    %2776 = vmatpush.msra.mxu0 0.0
    %2777 = vmatpush.msra.mxu0 0.0
    %2778 = vmatpush.msra.mxu0 0.0
    %2779 = vmatpush.msra.mxu0 0.0
    %2780 = vmatpush.msra.mxu0 0.0
    %2781 = vmatpush.msra.mxu0 0.0
    %2782 = vmatpush.msra.mxu0 0.0
    %2783 = vmatpush.msra.mxu0 0.0
    %2784 = vmatpush.msra.mxu0 0.0
    %2785 = vmatpush.msra.mxu0 0.0
    %2786 = vmatpush.msra.mxu0 0.0
    %2787 = vmatpush.msra.mxu0 %v2306
    %2788 = vmatmul.f32.gmra.mxu0 %v2770
    %v2789 = vpop.f32.mrf.mxu0
    %v2790 = vadd.f32 0.0, %v2789
    %2791 = vdwg.mxu0
    %v2793 = vsel %vm738, %v2696, 0
    %2795 = vmatpush.msra.mxu0 0.0
    %2796 = vmatpush.msra.mxu0 0.0
    %2797 = vmatpush.msra.mxu0 0.0
    %2798 = vmatpush.msra.mxu0 0.0
    %2799 = vmatpush.msra.mxu0 0.0
    %2800 = vmatpush.msra.mxu0 0.0
    %2801 = vmatpush.msra.mxu0 0.0
    %2802 = vmatpush.msra.mxu0 0.0
    %2803 = vmatpush.msra.mxu0 0.0
    %2804 = vmatpush.msra.mxu0 0.0
    %2805 = vmatpush.msra.mxu0 0.0
    %2806 = vmatpush.msra.mxu0 0.0
    %2807 = vmatpush.msra.mxu0 0.0
    %2808 = vmatpush.msra.mxu0 0.0
    %2809 = vmatpush.msra.mxu0 0.0
    %2810 = vmatpush.msra.mxu0 %v2326
    %2811 = vmatmul.f32.gmra.mxu0 %v2793
    %v2812 = vpop.f32.mrf.mxu0
    %v2813 = vadd.f32 0.0, %v2812
    %2814 = vdwg.mxu0
    %v2816 = vsel %vm738, %v2697, 0
    %2818 = vmatpush.msra.mxu0 0.0
    %2819 = vmatpush.msra.mxu0 0.0
    %2820 = vmatpush.msra.mxu0 0.0
    %2821 = vmatpush.msra.mxu0 0.0
    %2822 = vmatpush.msra.mxu0 0.0
    %2823 = vmatpush.msra.mxu0 0.0
    %2824 = vmatpush.msra.mxu0 0.0
    %2825 = vmatpush.msra.mxu0 0.0
    %2826 = vmatpush.msra.mxu0 0.0
    %2827 = vmatpush.msra.mxu0 0.0
    %2828 = vmatpush.msra.mxu0 0.0
    %2829 = vmatpush.msra.mxu0 0.0
    %2830 = vmatpush.msra.mxu0 0.0
    %2831 = vmatpush.msra.mxu0 0.0
    %2832 = vmatpush.msra.mxu0 0.0
    %2833 = vmatpush.msra.mxu0 %v2346
    %2834 = vmatmul.f32.gmra.mxu0 %v2816
    %v2835 = vpop.f32.mrf.mxu0
    %v2836 = vadd.f32 0.0, %v2835
    %2837 = vdwg.mxu0
    %v2839 = vsel %vm738, %v2698, 0
    %2841 = vmatpush.msra.mxu0 0.0
    %2842 = vmatpush.msra.mxu0 0.0
    %2843 = vmatpush.msra.mxu0 0.0
    %2844 = vmatpush.msra.mxu0 0.0
    %2845 = vmatpush.msra.mxu0 0.0
    %2846 = vmatpush.msra.mxu0 0.0
    %2847 = vmatpush.msra.mxu0 0.0
    %2848 = vmatpush.msra.mxu0 0.0
    %2849 = vmatpush.msra.mxu0 0.0
    %2850 = vmatpush.msra.mxu0 0.0
    %2851 = vmatpush.msra.mxu0 0.0
    %2852 = vmatpush.msra.mxu0 0.0
    %2853 = vmatpush.msra.mxu0 0.0
    %2854 = vmatpush.msra.mxu0 0.0
    %2855 = vmatpush.msra.mxu0 0.0
    %2856 = vmatpush.msra.mxu0 %v2366
    %2857 = vmatmul.f32.gmra.mxu0 %v2839
    %v2858 = vpop.f32.mrf.mxu0
    %v2859 = vadd.f32 0.0, %v2858
    %2860 = vdwg.mxu0
    %v2862 = vsel %vm738, %v2699, 0
    %2864 = vmatpush.msra.mxu0 0.0
    %2865 = vmatpush.msra.mxu0 0.0
    %2866 = vmatpush.msra.mxu0 0.0
    %2867 = vmatpush.msra.mxu0 0.0
    %2868 = vmatpush.msra.mxu0 0.0
    %2869 = vmatpush.msra.mxu0 0.0
    %2870 = vmatpush.msra.mxu0 0.0
    %2871 = vmatpush.msra.mxu0 0.0
    %2872 = vmatpush.msra.mxu0 0.0
    %2873 = vmatpush.msra.mxu0 0.0
    %2874 = vmatpush.msra.mxu0 0.0
    %2875 = vmatpush.msra.mxu0 0.0
    %2876 = vmatpush.msra.mxu0 0.0
    %2877 = vmatpush.msra.mxu0 0.0
    %2878 = vmatpush.msra.mxu0 0.0
    %2879 = vmatpush.msra.mxu0 %v2386
    %2880 = vmatmul.f32.gmra.mxu0 %v2862
    %v2881 = vpop.f32.mrf.mxu0
    %v2882 = vadd.f32 0.0, %v2881
    %2883 = vdwg.mxu0
    %s2884 = scalar_lea.vmem %s4, 64
    %v2885 = vld [vmem:[%s2884] sm:$0xff]
    %v2886 = vld [vmem:[%s2884 + $0x8] sm:$0xff]
    %v2887 = vld [vmem:[%s2884 + $0x10] sm:$0xff]
    %v2888 = vld [vmem:[%s2884 + $0x18] sm:$0xff]
    %v2889 = vld [vmem:[%s2884 + $0x20] sm:$0xff]
    %v2890 = vld [vmem:[%s2884 + $0x28] sm:$0xff]
    %v2891 = vld [vmem:[%s2884 + $0x30] sm:$0xff]
    %v2892 = vld [vmem:[%s2884 + $0x38] sm:$0xff]
    %v2894 = vsel %vm738, %v2721, 0
    %2896 = vmatpush.msra.mxu0 0.0
    %2897 = vmatpush.msra.mxu0 0.0
    %2898 = vmatpush.msra.mxu0 0.0
    %2899 = vmatpush.msra.mxu0 0.0
    %2900 = vmatpush.msra.mxu0 0.0
    %2901 = vmatpush.msra.mxu0 0.0
    %2902 = vmatpush.msra.mxu0 0.0
    %2903 = vmatpush.msra.mxu0 0.0
    %2904 = vmatpush.msra.mxu0 0.0
    %2905 = vmatpush.msra.mxu0 0.0
    %2906 = vmatpush.msra.mxu0 0.0
    %2907 = vmatpush.msra.mxu0 0.0
    %2908 = vmatpush.msra.mxu0 0.0
    %2909 = vmatpush.msra.mxu0 0.0
    %2910 = vmatpush.msra.mxu0 0.0
    %2911 = vmatpush.msra.mxu0 %v2885
    %2912 = vmatmul.f32.gmra.mxu0 %v2894
    %v2913 = vpop.f32.mrf.mxu0
    %v2914 = vadd.f32 0.0, %v2913
    %2915 = vdwg.mxu0
    %v2917 = vsel %vm738, %v2744, 0
    %2919 = vmatpush.msra.mxu0 0.0
    %2920 = vmatpush.msra.mxu0 0.0
    %2921 = vmatpush.msra.mxu0 0.0
    %2922 = vmatpush.msra.mxu0 0.0
    %2923 = vmatpush.msra.mxu0 0.0
    %2924 = vmatpush.msra.mxu0 0.0
    %2925 = vmatpush.msra.mxu0 0.0
    %2926 = vmatpush.msra.mxu0 0.0
    %2927 = vmatpush.msra.mxu0 0.0
    %2928 = vmatpush.msra.mxu0 0.0
    %2929 = vmatpush.msra.mxu0 0.0
    %2930 = vmatpush.msra.mxu0 0.0
    %2931 = vmatpush.msra.mxu0 0.0
    %2932 = vmatpush.msra.mxu0 0.0
    %2933 = vmatpush.msra.mxu0 0.0
    %2934 = vmatpush.msra.mxu0 %v2886
    %2935 = vmatmul.f32.gmra.mxu0 %v2917
    %v2936 = vpop.f32.mrf.mxu0
    %v2937 = vadd.f32 0.0, %v2936
    %2938 = vdwg.mxu0
    %v2940 = vsel %vm738, %v2767, 0
    %2942 = vmatpush.msra.mxu0 0.0
    %2943 = vmatpush.msra.mxu0 0.0
    %2944 = vmatpush.msra.mxu0 0.0
    %2945 = vmatpush.msra.mxu0 0.0
    %2946 = vmatpush.msra.mxu0 0.0
    %2947 = vmatpush.msra.mxu0 0.0
    %2948 = vmatpush.msra.mxu0 0.0
    %2949 = vmatpush.msra.mxu0 0.0
    %2950 = vmatpush.msra.mxu0 0.0
    %2951 = vmatpush.msra.mxu0 0.0
    %2952 = vmatpush.msra.mxu0 0.0
    %2953 = vmatpush.msra.mxu0 0.0
    %2954 = vmatpush.msra.mxu0 0.0
    %2955 = vmatpush.msra.mxu0 0.0
    %2956 = vmatpush.msra.mxu0 0.0
    %2957 = vmatpush.msra.mxu0 %v2887
    %2958 = vmatmul.f32.gmra.mxu0 %v2940
    %v2959 = vpop.f32.mrf.mxu0
    %v2960 = vadd.f32 0.0, %v2959
    %2961 = vdwg.mxu0
    %v2963 = vsel %vm738, %v2790, 0
    %2965 = vmatpush.msra.mxu0 0.0
    %2966 = vmatpush.msra.mxu0 0.0
    %2967 = vmatpush.msra.mxu0 0.0
    %2968 = vmatpush.msra.mxu0 0.0
    %2969 = vmatpush.msra.mxu0 0.0
    %2970 = vmatpush.msra.mxu0 0.0
    %2971 = vmatpush.msra.mxu0 0.0
    %2972 = vmatpush.msra.mxu0 0.0
    %2973 = vmatpush.msra.mxu0 0.0
    %2974 = vmatpush.msra.mxu0 0.0
    %2975 = vmatpush.msra.mxu0 0.0
    %2976 = vmatpush.msra.mxu0 0.0
    %2977 = vmatpush.msra.mxu0 0.0
    %2978 = vmatpush.msra.mxu0 0.0
    %2979 = vmatpush.msra.mxu0 0.0
    %2980 = vmatpush.msra.mxu0 %v2888
    %2981 = vmatmul.f32.gmra.mxu0 %v2963
    %v2982 = vpop.f32.mrf.mxu0
    %v2983 = vadd.f32 0.0, %v2982
    %2984 = vdwg.mxu0
    %v2986 = vsel %vm738, %v2813, 0
    %2988 = vmatpush.msra.mxu0 0.0
    %2989 = vmatpush.msra.mxu0 0.0
    %2990 = vmatpush.msra.mxu0 0.0
    %2991 = vmatpush.msra.mxu0 0.0
    %2992 = vmatpush.msra.mxu0 0.0
    %2993 = vmatpush.msra.mxu0 0.0
    %2994 = vmatpush.msra.mxu0 0.0
    %2995 = vmatpush.msra.mxu0 0.0
    %2996 = vmatpush.msra.mxu0 0.0
    %2997 = vmatpush.msra.mxu0 0.0
    %2998 = vmatpush.msra.mxu0 0.0
    %2999 = vmatpush.msra.mxu0 0.0
    %3000 = vmatpush.msra.mxu0 0.0
    %3001 = vmatpush.msra.mxu0 0.0
    %3002 = vmatpush.msra.mxu0 0.0
    %3003 = vmatpush.msra.mxu0 %v2889
    %3004 = vmatmul.f32.gmra.mxu0 %v2986
    %v3005 = vpop.f32.mrf.mxu0
    %v3006 = vadd.f32 0.0, %v3005
    %3007 = vdwg.mxu0
    %v3009 = vsel %vm738, %v2836, 0
    %3011 = vmatpush.msra.mxu0 0.0
    %3012 = vmatpush.msra.mxu0 0.0
    %3013 = vmatpush.msra.mxu0 0.0
    %3014 = vmatpush.msra.mxu0 0.0
    %3015 = vmatpush.msra.mxu0 0.0
    %3016 = vmatpush.msra.mxu0 0.0
    %3017 = vmatpush.msra.mxu0 0.0
    %3018 = vmatpush.msra.mxu0 0.0
    %3019 = vmatpush.msra.mxu0 0.0
    %3020 = vmatpush.msra.mxu0 0.0
    %3021 = vmatpush.msra.mxu0 0.0
    %3022 = vmatpush.msra.mxu0 0.0
    %3023 = vmatpush.msra.mxu0 0.0
    %3024 = vmatpush.msra.mxu0 0.0
    %3025 = vmatpush.msra.mxu0 0.0
    %3026 = vmatpush.msra.mxu0 %v2890
    %3027 = vmatmul.f32.gmra.mxu0 %v3009
    %v3028 = vpop.f32.mrf.mxu0
    %v3029 = vadd.f32 0.0, %v3028
    %3030 = vdwg.mxu0
    %v3032 = vsel %vm738, %v2859, 0
    %3034 = vmatpush.msra.mxu0 0.0
    %3035 = vmatpush.msra.mxu0 0.0
    %3036 = vmatpush.msra.mxu0 0.0
    %3037 = vmatpush.msra.mxu0 0.0
    %3038 = vmatpush.msra.mxu0 0.0
    %3039 = vmatpush.msra.mxu0 0.0
    %3040 = vmatpush.msra.mxu0 0.0
    %3041 = vmatpush.msra.mxu0 0.0
    %3042 = vmatpush.msra.mxu0 0.0
    %3043 = vmatpush.msra.mxu0 0.0
    %3044 = vmatpush.msra.mxu0 0.0
    %3045 = vmatpush.msra.mxu0 0.0
    %3046 = vmatpush.msra.mxu0 0.0
    %3047 = vmatpush.msra.mxu0 0.0
    %3048 = vmatpush.msra.mxu0 0.0
    %3049 = vmatpush.msra.mxu0 %v2891
    %3050 = vmatmul.f32.gmra.mxu0 %v3032
    %v3051 = vpop.f32.mrf.mxu0
    %v3052 = vadd.f32 0.0, %v3051
    %3053 = vdwg.mxu0
    %v3055 = vsel %vm738, %v2882, 0
    %3057 = vmatpush.msra.mxu0 0.0
    %3058 = vmatpush.msra.mxu0 0.0
    %3059 = vmatpush.msra.mxu0 0.0
    %3060 = vmatpush.msra.mxu0 0.0
    %3061 = vmatpush.msra.mxu0 0.0
    %3062 = vmatpush.msra.mxu0 0.0
    %3063 = vmatpush.msra.mxu0 0.0
    %3064 = vmatpush.msra.mxu0 0.0
    %3065 = vmatpush.msra.mxu0 0.0
    %3066 = vmatpush.msra.mxu0 0.0
    %3067 = vmatpush.msra.mxu0 0.0
    %3068 = vmatpush.msra.mxu0 0.0
    %3069 = vmatpush.msra.mxu0 0.0
    %3070 = vmatpush.msra.mxu0 0.0
    %3071 = vmatpush.msra.mxu0 0.0
    %3072 = vmatpush.msra.mxu0 %v2892
    %3073 = vmatmul.f32.gmra.mxu0 %v3055
    %v3074 = vpop.f32.mrf.mxu0
    %v3075 = vadd.f32 0.0, %v3074
    %3076 = vdwg.mxu0
    %v3077 = vsel %vm119, %v2914, 0.0
    %v3078 = vsel %vm119, %v2937, 0.0
    %v3079 = vadd.f32 %v3077, %v3078
    %v3080 = vsel %vm119, %v2960, 0.0
    %v3081 = vadd.f32 %v3079, %v3080
    %v3082 = vsel %vm119, %v2983, 0.0
    %v3083 = vadd.f32 %v3081, %v3082
    %v3084 = vsel %vm119, %v3006, 0.0
    %v3085 = vsel %vm119, %v3029, 0.0
    %v3086 = vadd.f32 %v3084, %v3085
    %v3087 = vsel %vm119, %v3052, 0.0
    %v3088 = vadd.f32 %v3086, %v3087
    %v3089 = vsel %vm119, %v3075, 0.0
    %v3090 = vadd.f32 %v3088, %v3089
    %s3091 = scalar_lea.vmem %s8, 8
    %v3092 = vld [vmem:[%s3091] sm:$0x3f]
    %v3093 = vadd.f32 %v1702, %v3083
    %v3094 = vadd.f32 %v1703, %v3090
    %v3095 = vperm.slane %v3092, 0
    %v3096 = vadd.f32 %v3093, %v3095
    %v3097 = vadd.f32 %v3094, %v3095
    %v3098 = vsel %vm119, %v3096, 0.0
    %3099 = vadd.xlane.f32.xlu0 %v3098
    %v3100 = vpop.xlane.xlu0 %3099
    %v3101 = vsel %vm119, %v3097, 0.0
    %3102 = vadd.xlane.f32.xlu0 %v3101
    %v3103 = vpop.xlane.xlu0 %3102
    %v3104 = vmul.f32 %v3100, %v1483
    %v3105 = vmul.f32 %v3103, %v1483
    %v3106 = vsub.f32 %v3096, %v3104
    %v3107 = vsub.f32 %v3097, %v3105
    %v3108 = vmul.f32 %v3106, %v3106
    %v3109 = vmul.f32 %v3107, %v3107
    %v3110 = vsel %vm119, %v3108, 0.0
    %3111 = vadd.xlane.f32.xlu0 %v3110
    %v3112 = vpop.xlane.xlu0 %3111
    %v3113 = vsel %vm119, %v3109, 0.0
    %3114 = vadd.xlane.f32.xlu0 %v3113
    %v3115 = vpop.xlane.xlu0 %3114
    %v3116 = vmul.f32 %v3112, %v1483
    %v3117 = vmul.f32 %v3115, %v1483
    %v3118 = vadd.f32 %v3116, 1e-05
    %v3119 = vadd.f32 %v3117, 1e-05
    %v3120 = vrsqrt.pop %v3118
    %v3121 = vmul.f32 %v3120, %v3118
    %v3122 = vmul.f32 %v3121, %v3120
    %v3123 = vmul.f32 0.5, %v3122
    %v3124 = vsub.f32 1.5, %v3123
    %v3125 = vmul.f32 %v3120, %v3124
    %vm3126 = vweird.f32 %v3118
    %vm3127 = vweird.f32 %v3120
    %vm3128 = vmor %vm3126, %vm3127
    %v3129 = vsel %vm3128, %v3120, %v3125
    %v3130 = vrsqrt.pop %v3119
    %v3131 = vmul.f32 %v3130, %v3119
    %v3132 = vmul.f32 %v3131, %v3130
    %v3133 = vmul.f32 0.5, %v3132
    %v3134 = vsub.f32 1.5, %v3133
    %v3135 = vmul.f32 %v3130, %v3134
    %vm3136 = vweird.f32 %v3119
    %vm3137 = vweird.f32 %v3130
    %vm3138 = vmor %vm3136, %vm3137
    %v3139 = vsel %vm3138, %v3130, %v3135
    %v3140 = vmul.f32 %v3106, %v3129
    %v3141 = vmul.f32 %v3107, %v3139
    %v3142 = vperm.slane %v3092, 1
    %v3143 = vmul.f32 %v3140, %v3142
    %v3144 = vmul.f32 %v3141, %v3142
    %v3145 = vperm.slane %v3092, 2
    %v3146 = vadd.f32 %v3143, %v3145
    %v3147 = vadd.f32 %v3144, %v3145
    %s3148 = scalar_lea.vmem %s5, 64
    %v3149 = vld [vmem:[%s3148] sm:$0xff]
    %v3150 = vld [vmem:[%s3148 + $0x8] sm:$0xff]
    %v3151 = vld [vmem:[%s3148 + $0x10] sm:$0xff]
    %v3152 = vld [vmem:[%s3148 + $0x18] sm:$0xff]
    %v3153 = vld [vmem:[%s3148 + $0x20] sm:$0xff]
    %v3154 = vld [vmem:[%s3148 + $0x28] sm:$0xff]
    %v3155 = vld [vmem:[%s3148 + $0x30] sm:$0xff]
    %v3156 = vld [vmem:[%s3148 + $0x38] sm:$0xff]
    %s3157 = scalar_lea.vmem %s6, 1
    %v3158 = vld [vmem:[%s3157] sm:$0x1]
    %v3160 = vperm.slane %v3158, 0
    %v3163 = vsel %vm119, %v3146, 0
    %3165 = vmatpush.msra.mxu0 0.0
    %3166 = vmatpush.msra.mxu0 0.0
    %3167 = vmatpush.msra.mxu0 0.0
    %3168 = vmatpush.msra.mxu0 0.0
    %3169 = vmatpush.msra.mxu0 0.0
    %3170 = vmatpush.msra.mxu0 0.0
    %3171 = vmatpush.msra.mxu0 0.0
    %3172 = vmatpush.msra.mxu0 0.0
    %3173 = vmatpush.msra.mxu0 0.0
    %3174 = vmatpush.msra.mxu0 0.0
    %3175 = vmatpush.msra.mxu0 0.0
    %3176 = vmatpush.msra.mxu0 0.0
    %3177 = vmatpush.msra.mxu0 %v3152
    %3178 = vmatpush.msra.mxu0 %v3151
    %3179 = vmatpush.msra.mxu0 %v3150
    %3180 = vmatpush.msra.mxu0 %v3149
    %3181 = vmatmul.f32.gmra.mxu0 %v3163
    %v3182 = vpop.f32.mrf.mxu0
    %v3183 = vadd.f32 %v3160, %v3182
    %3184 = vdwg.mxu0
    %v3186 = vsel %vm119, %v3147, 0
    %3188 = vmatpush.msra.mxu0 0.0
    %3189 = vmatpush.msra.mxu0 0.0
    %3190 = vmatpush.msra.mxu0 0.0
    %3191 = vmatpush.msra.mxu0 0.0
    %3192 = vmatpush.msra.mxu0 0.0
    %3193 = vmatpush.msra.mxu0 0.0
    %3194 = vmatpush.msra.mxu0 0.0
    %3195 = vmatpush.msra.mxu0 0.0
    %3196 = vmatpush.msra.mxu0 0.0
    %3197 = vmatpush.msra.mxu0 0.0
    %3198 = vmatpush.msra.mxu0 0.0
    %3199 = vmatpush.msra.mxu0 0.0
    %3200 = vmatpush.msra.mxu0 %v3156
    %3201 = vmatpush.msra.mxu0 %v3155
    %3202 = vmatpush.msra.mxu0 %v3154
    %3203 = vmatpush.msra.mxu0 %v3153
    %3204 = vmatmul.f32.gmra.mxu0 %v3186
    %v3205 = vpop.f32.mrf.mxu0
    %v3206 = vadd.f32 %v3160, %v3205
    %3207 = vdwg.mxu0
    %v3208 = vmax.f32 %v3183, 0.0
    %v3209 = vmax.f32 %v3206, 0.0
    %s3210 = scalar_lea.vmem %s7, 128
    %v3211 = vld [vmem:[%s3210] sm:$0xff]
    %v3212 = vld [vmem:[%s3210 + $0x8] sm:$0xff]
    %v3213 = vld [vmem:[%s3210 + $0x10] sm:$0xff]
    %v3214 = vld [vmem:[%s3210 + $0x18] sm:$0xff]
    %v3215 = vld [vmem:[%s3210 + $0x20] sm:$0xff]
    %v3216 = vld [vmem:[%s3210 + $0x28] sm:$0xff]
    %v3217 = vld [vmem:[%s3210 + $0x30] sm:$0xff]
    %v3218 = vld [vmem:[%s3210 + $0x38] sm:$0xff]
    %v3219 = vld [vmem:[%s3210 + $0x40] sm:$0xff]
    %v3220 = vld [vmem:[%s3210 + $0x48] sm:$0xff]
    %v3221 = vld [vmem:[%s3210 + $0x50] sm:$0xff]
    %v3222 = vld [vmem:[%s3210 + $0x58] sm:$0xff]
    %v3223 = vld [vmem:[%s3210 + $0x60] sm:$0xff]
    %v3224 = vld [vmem:[%s3210 + $0x68] sm:$0xff]
    %v3225 = vld [vmem:[%s3210 + $0x70] sm:$0xff]
    %v3226 = vld [vmem:[%s3210 + $0x78] sm:$0xff]
    %v3227 = vperm.slane %v3092, 3
    %v3229 = vsel %vm1605, %v3208, 0
    %3231 = vmatpush.msra.mxu0 0.0
    %3232 = vmatpush.msra.mxu0 0.0
    %3233 = vmatpush.msra.mxu0 0.0
    %3234 = vmatpush.msra.mxu0 0.0
    %3235 = vmatpush.msra.mxu0 0.0
    %3236 = vmatpush.msra.mxu0 0.0
    %3237 = vmatpush.msra.mxu0 0.0
    %3238 = vmatpush.msra.mxu0 0.0
    %3239 = vmatpush.msra.mxu0 %v3218
    %3240 = vmatpush.msra.mxu0 %v3217
    %3241 = vmatpush.msra.mxu0 %v3216
    %3242 = vmatpush.msra.mxu0 %v3215
    %3243 = vmatpush.msra.mxu0 %v3214
    %3244 = vmatpush.msra.mxu0 %v3213
    %3245 = vmatpush.msra.mxu0 %v3212
    %3246 = vmatpush.msra.mxu0 %v3211
    %3247 = vmatmul.f32.gmra.mxu0 %v3229
    %v3248 = vpop.f32.mrf.mxu0
    %v3249 = vadd.f32 %v3227, %v3248
    %3250 = vdwg.mxu0
    %v3252 = vsel %vm1605, %v3209, 0
    %3254 = vmatpush.msra.mxu0 0.0
    %3255 = vmatpush.msra.mxu0 0.0
    %3256 = vmatpush.msra.mxu0 0.0
    %3257 = vmatpush.msra.mxu0 0.0
    %3258 = vmatpush.msra.mxu0 0.0
    %3259 = vmatpush.msra.mxu0 0.0
    %3260 = vmatpush.msra.mxu0 0.0
    %3261 = vmatpush.msra.mxu0 0.0
    %3262 = vmatpush.msra.mxu0 %v3226
    %3263 = vmatpush.msra.mxu0 %v3225
    %3264 = vmatpush.msra.mxu0 %v3224
    %3265 = vmatpush.msra.mxu0 %v3223
    %3266 = vmatpush.msra.mxu0 %v3222
    %3267 = vmatpush.msra.mxu0 %v3221
    %3268 = vmatpush.msra.mxu0 %v3220
    %3269 = vmatpush.msra.mxu0 %v3219
    %3270 = vmatmul.f32.gmra.mxu0 %v3252
    %v3271 = vpop.f32.mrf.mxu0
    %v3272 = vadd.f32 %v3227, %v3271
    %3273 = vdwg.mxu0
    %v3274 = vadd.f32 %v3146, %v3249
    %v3275 = vadd.f32 %v3147, %v3272
    %v3276 = vsel %vm119, %v3274, 0.0
    %3277 = vadd.xlane.f32.xlu0 %v3276
    %v3278 = vpop.xlane.xlu0 %3277
    %v3279 = vsel %vm119, %v3275, 0.0
    %3280 = vadd.xlane.f32.xlu0 %v3279
    %v3281 = vpop.xlane.xlu0 %3280
    %v3282 = vmul.f32 %v3278, %v1483
    %v3283 = vmul.f32 %v3281, %v1483
    %v3284 = vsub.f32 %v3274, %v3282
    %v3285 = vsub.f32 %v3275, %v3283
    %v3286 = vmul.f32 %v3284, %v3284
    %v3287 = vmul.f32 %v3285, %v3285
    %v3288 = vsel %vm119, %v3286, 0.0
    %3289 = vadd.xlane.f32.xlu0 %v3288
    %v3290 = vpop.xlane.xlu0 %3289
    %v3291 = vsel %vm119, %v3287, 0.0
    %3292 = vadd.xlane.f32.xlu0 %v3291
    %v3293 = vpop.xlane.xlu0 %3292
    %v3294 = vmul.f32 %v3290, %v1483
    %v3295 = vmul.f32 %v3293, %v1483
    %v3296 = vadd.f32 %v3294, 1e-05
    %v3297 = vadd.f32 %v3295, 1e-05
    %v3298 = vrsqrt.pop %v3296
    %v3299 = vmul.f32 %v3298, %v3296
    %v3300 = vmul.f32 %v3299, %v3298
    %v3301 = vmul.f32 0.5, %v3300
    %v3302 = vsub.f32 1.5, %v3301
    %v3303 = vmul.f32 %v3298, %v3302
    %vm3304 = vweird.f32 %v3296
    %vm3305 = vweird.f32 %v3298
    %vm3306 = vmor %vm3304, %vm3305
    %v3307 = vsel %vm3306, %v3298, %v3303
    %v3308 = vrsqrt.pop %v3297
    %v3309 = vmul.f32 %v3308, %v3297
    %v3310 = vmul.f32 %v3309, %v3308
    %v3311 = vmul.f32 0.5, %v3310
    %v3312 = vsub.f32 1.5, %v3311
    %v3313 = vmul.f32 %v3308, %v3312
    %vm3314 = vweird.f32 %v3297
    %vm3315 = vweird.f32 %v3308
    %vm3316 = vmor %vm3314, %vm3315
    %v3317 = vsel %vm3316, %v3308, %v3313
    %v3318 = vmul.f32 %v3284, %v3307
    %v3319 = vmul.f32 %v3285, %v3317
    %v3320 = vperm.slane %v3092, 4
    %v3321 = vmul.f32 %v3318, %v3320
    %v3322 = vmul.f32 %v3319, %v3320
    %v3323 = vperm.slane %v3092, 5
    %v3324 = vadd.f32 %v3321, %v3323
    %v3325 = vadd.f32 %v3322, %v3323
    %v3326 = vsel %vm119, %v3324, 0.0
    %v3327 = vrot.slane %v3326, 4
    %v3328 = vadd.f32 %v3326, %v3327
    %v3329 = vrot.slane %v3328, 2
    %v3330 = vadd.f32 %v3328, %v3329
    %v3331 = vrot.slane %v3330, 1
    %v3332 = vadd.f32 %v3330, %v3331
    %v3333 = vsel %vm119, %v3325, 0.0
    %v3334 = vrot.slane %v3333, 4
    %v3335 = vadd.f32 %v3333, %v3334
    %v3336 = vrot.slane %v3335, 2
    %v3337 = vadd.f32 %v3335, %v3336
    %v3338 = vrot.slane %v3337, 1
    %v3339 = vadd.f32 %v3337, %v3338
    %v3340 = vrcp.pop 8.0
    %v3341 = vmul.f32 8.0, %v3340
    %v3342 = vsub.f32 1.0, %v3341
    %v3343 = vmul.f32 %v3340, %v3342
    %v3344 = vadd.f32 %v3340, %v3343
    %vm3345 = vweird.f32 %v3340
    %v3346 = vsel %vm3345, %v3340, %v3344
    %v3347 = vmul.f32 %v3332, %v3346
    %v3348 = vmul.f32 %v3339, %v3346
    %v3349 = vld [vmem:[%s9] sm:$0xff]
    %v3350 = vld [vmem:[%s9 + $0x8] sm:$0xff]
    %v3351 = vld [vmem:[%s9 + $0x10] sm:$0xff]
    %v3352 = vld [vmem:[%s9 + $0x18] sm:$0xff]
    %v3353 = vld [vmem:[%s10] sm:$0x1]
    %v3355 = vperm.slane %v3353, 0
    %vm3359 = vcmask 1041409
    %v3360 = vsel %vm3359, %v3348, %v3347
    %v3361 = vsel %vm119, %v3360, 0
    %3363 = vmatpush.msra.mxu0 0.0
    %3364 = vmatpush.msra.mxu0 0.0
    %3365 = vmatpush.msra.mxu0 0.0
    %3366 = vmatpush.msra.mxu0 0.0
    %3367 = vmatpush.msra.mxu0 0.0
    %3368 = vmatpush.msra.mxu0 0.0
    %3369 = vmatpush.msra.mxu0 0.0
    %3370 = vmatpush.msra.mxu0 0.0
    %3371 = vmatpush.msra.mxu0 0.0
    %3372 = vmatpush.msra.mxu0 0.0
    %3373 = vmatpush.msra.mxu0 0.0
    %3374 = vmatpush.msra.mxu0 0.0
    %3375 = vmatpush.msra.mxu0 %v3352
    %3376 = vmatpush.msra.mxu0 %v3351
    %3377 = vmatpush.msra.mxu0 %v3350
    %3378 = vmatpush.msra.mxu0 %v3349
    %3379 = vmatmul.f32.gmra.mxu0 %v3361
    %v3380 = vpop.f32.mrf.mxu0
    %v3381 = vadd.f32 %v3355, %v3380
    %3382 = vdwg.mxu0
    %v3383 = vld [vmem:[%s11] sm:$0xff]
    %v3384 = vld [vmem:[%s11 + $0x8] sm:$0xff]
    %v3385 = vld [vmem:[%s11 + $0x10] sm:$0xff]
    %v3386 = vld [vmem:[%s11 + $0x18] sm:$0xff]
    %v3387 = vld [vmem:[%s12] sm:$0x1]
    %v3389 = vperm.slane %v3387, 0
    %v3392 = vsel %vm119, %v3381, 0
    %3394 = vmatpush.msra.mxu0 0.0
    %3395 = vmatpush.msra.mxu0 0.0
    %3396 = vmatpush.msra.mxu0 0.0
    %3397 = vmatpush.msra.mxu0 0.0
    %3398 = vmatpush.msra.mxu0 0.0
    %3399 = vmatpush.msra.mxu0 0.0
    %3400 = vmatpush.msra.mxu0 0.0
    %3401 = vmatpush.msra.mxu0 0.0
    %3402 = vmatpush.msra.mxu0 0.0
    %3403 = vmatpush.msra.mxu0 0.0
    %3404 = vmatpush.msra.mxu0 0.0
    %3405 = vmatpush.msra.mxu0 0.0
    %3406 = vmatpush.msra.mxu0 %v3386
    %3407 = vmatpush.msra.mxu0 %v3385
    %3408 = vmatpush.msra.mxu0 %v3384
    %3409 = vmatpush.msra.mxu0 %v3383
    %3410 = vmatmul.f32.gmra.mxu0 %v3392
    %v3411 = vpop.f32.mrf.mxu0
    %v3412 = vadd.f32 %v3389, %v3411
    %3413 = vdwg.mxu0
    %vm3414 = vcmask 1041408
    %v3415 = vsel %vm3414, %v3412, -inf
    %3416 = vmax.xlane.f32.xlu0 %v3415
    %v3417 = vpop.xlane.xlu0 %3416
    %v3418 = vsub.f32 %v3412, %v3417
    %v3419 = vmul.f32 %v3418, 1.442695
    %v3420 = vpow.pop %v3419
    %v3421 = vsel %vm3414, %v3420, 0.0
    %3422 = vadd.xlane.f32.xlu0 %v3421
    %v3423 = vpop.xlane.xlu0 %3422
    %v3424 = vrcp.pop %v3423
    %v3425 = vmul.f32 %v3423, %v3424
    %v3426 = vsub.f32 1.0, %v3425
    %v3427 = vmul.f32 %v3424, %v3426
    %v3428 = vadd.f32 %v3424, %v3427
    %vm3429 = vweird.f32 %v3423
    %vm3430 = vweird.f32 %v3424
    %vm3431 = vmor %vm3429, %vm3430
    %v3432 = vsel %vm3431, %v3424, %v3428
    %v3433 = vand.u32 2147483647, %v3423
    %vm3434 = vcmp.eq.f32.partialorder %v3433, 8.507059e+37
    %v3435 = vand.u32 %v3423, 2147483648
    %v3436 = vor.u32 1.1754944e-38, %v3435
    %v3437 = vsel %vm3434, %v3436, %v3432
    %v3438 = vmul.f32 %v3420, %v3437
    %3439 = vst [vmem:[#allocation2] sm:$0x3] %v3438
    // Predicated region
    $region54: #{tpu_custom_call.1} parent=1 // pred_check
      _
    $region55: #{tpu_custom_call.1} parent=1 // pred_check_branch
      %3441 = sbr.rel (0) target = $region57
    $region56: #{tpu_custom_call.1} parent=1 // pred_region
      %3443 = vsyncadd [#allocation3], 0
      %s3445 = sshll.u32 [#allocation2], 4
      %s3446 = int_to_ptr.vmem [resolvable:$true] %s3445
      %s3447 = sshll.u32 %s13, 4
      %s3448 = int_to_ptr.hbm [resolvable:$true] %s3447
      %3450 = dma.vmem_to_hbm [thread:$0]  %s3446, 32, %s3448, [#allocation3]
    $region57: #{tpu_custom_call.1} parent=1 // pred_fallthru
      _
    // Predicated region
    $region58: #{tpu_custom_call.1} parent=1 // pred_check
      _
    $region59: #{tpu_custom_call.1} parent=1 // pred_check_branch
      %3452 = sbr.rel (0) target = $region61
    $region60: #{tpu_custom_call.1} parent=1 // pred_region
      %3454 = dma.done [#allocation3], 32
    $region61: #{tpu_custom_call.1} parent=1 // pred_fallthru
      _
    %3455 = vsyncpa [#allocation3], 1

</llo_original>
